<compile_context>
chip_gen: v7x
topology: tpu7x:2x2x1
jax: 0.10.0
libtpu: 0.0.40
codegen_flags: <defaults>
</compile_context>

<pallas_src>
import numpy as np
import jax
import jax.numpy as jnp
from jax import lax
from jax.experimental import pallas as pl
from jax.experimental.pallas import tpu as pltpu

# ---- small, shape-consistent hyper-parameters (Res_CNN defaults scaled down) ----
B = 2            # batch
S = 16           # vector_len  (sequence length)
E = 32           # embedding_dim
V = 128          # vocab_size
C = 4            # filter_size
HO = S // 2      # feature-map height after conv_01_1 (k=7, stride=2, pad=3) -> 8
WO = E // 2      # feature-map width  after conv_01_1                         -> 16
HW = HO * WO     # pixels per channel                                          -> 128
P = C * HW       # flattened feature size per batch element                    -> 512
EPS = 1e-5       # BatchNorm eps


# ----------------------------- Pallas kernel ---------------------------------
def _bn_relu(x, gamma_row, beta_row, ind, indt, inv_n):
    """Training-mode BatchNorm2d (+ReLU) on a lane-dense (B, C*HW) f32 slab.

    Channel c occupies lanes [c*HW, (c+1)*HW).  Per-channel stats and their
    broadcast back use one (2,P)@(P,C) and one (2,C)@(C,P) indicator matmul
    (s1/s2 stacked), keeping the channel reduction on the otherwise-idle MXU.
    """
    s1 = jnp.sum(x, axis=0, keepdims=True)                    # (1, P)
    s2 = jnp.sum(x * x, axis=0, keepdims=True)                # (1, P)
    stats = jnp.concatenate([s1, s2], axis=0) * inv_n         # (2, P)
    ch = jnp.dot(stats, ind, preferred_element_type=jnp.float32)    # (2, C)
    bc = jnp.dot(ch, indt, preferred_element_type=jnp.float32)      # (2, P)
    mean = bc[0:1, :]
    # one-pass variance can go slightly negative from cancellation -> clamp
    var = jnp.maximum(bc[1:2, :] - mean * mean, 0.0)
    scale = gamma_row * lax.rsqrt(var + EPS)
    shift = beta_row - mean * scale
    return jnp.maximum(x * scale + shift, 0.0)


def res_cnn_kernel(ids_ref, table_ref, m1t_ref, m2t_ref, m3t_ref, m4t_ref,
                   ind_ref, indt_ref, bn_ref, wlin_ref, misc_ref, out_ref):
    ind = ind_ref[...]                                   # (P, C) f32
    indt = indt_ref[...]                                 # (C, P) f32
    bn = bn_ref[...]                                     # (6, P) f32: g1,b1,g2,b2,g3,b3
    inv_n = 1.0 / float(B * HW)

    # --- embedding lookup as a tiny one-hot matmul: (S*B, V) @ (V, E) ---
    # ids arrive s-major as an (S*B, 1) int32 column; one-hot is an integer
    # compare against the lane index (exact, no float equality involved).
    ids_col = ids_ref[...]                                            # (S*B, 1)
    lane_v = lax.broadcasted_iota(jnp.int32, (S * B, V), 1)
    onehot = (lane_v == ids_col).astype(jnp.bfloat16)                 # (S*B, V)
    emb = jnp.dot(onehot, table_ref[...],
                  preferred_element_type=jnp.float32)                 # (S*B, E) f32, exact

    # --- conv_01_1: x1[b,:] = sum_s emb[s*B+b, :] @ M1T[s*E:(s+1)*E, :] ---
    x1 = jnp.zeros((B, P), jnp.float32)
    for s in range(S):                                   # static unroll, S=16
        e_s = emb[s * B:(s + 1) * B, :].astype(jnp.bfloat16)          # (B, E)
        x1 = x1 + jnp.dot(e_s, m1t_ref[s * E:(s + 1) * E, :],
                          preferred_element_type=jnp.float32)
    x1 = _bn_relu(x1, bn[0:1, :], bn[1:2, :], ind, indt, inv_n)

    # --- conv_02_1: one (B,P)@(P,P) matmul ---
    x2 = jnp.dot(x1.astype(jnp.bfloat16), m2t_ref[...],
                 preferred_element_type=jnp.float32)
    x2 = _bn_relu(x2, bn[2:3, :], bn[3:4, :], ind, indt, inv_n)

    # --- conv_02_2 + residual add of conv_vec_1 ---
    x3 = jnp.dot(x2.astype(jnp.bfloat16), m3t_ref[...],
                 preferred_element_type=jnp.float32)
    x3 = _bn_relu(x3, bn[4:5, :], bn[5:6, :], ind, indt, inv_n) + x1

    # --- conv_03_1: single (B,P)@(P,HO) matmul ---
    y4 = jnp.dot(x3.astype(jnp.bfloat16), m4t_ref[...],
                 preferred_element_type=jnp.float32)                  # (B, HO)

    # BatchNorm2d(1) + ReLU over all B*HO elements
    n4 = float(B * HO)
    ssum = jnp.sum(y4, keepdims=True)                                 # (1, 1)
    ssq = jnp.sum(y4 * y4, keepdims=True)
    mean4 = ssum / n4
    var4 = jnp.maximum(ssq / n4 - mean4 * mean4, 0.0)
    sc4 = misc_ref[0] * lax.rsqrt(var4 + EPS)
    sh4 = misc_ref[1] - mean4 * sc4
    r = jnp.maximum(y4 * sc4 + sh4, 0.0)                              # (B, HO)

    # --- flatten + Linear(HO, 1) + sigmoid, all B rows at once ---
    logits = jnp.sum(r * wlin_ref[...], axis=1, keepdims=True) + misc_ref[2]
    out_ref[...] = 1.0 / (1.0 + jnp.exp(-logits))


# ------------------- host-side constant-matrix construction ------------------
def _build_m1(w1):
    """conv_01_1: Conv2d(1, C, 7, stride=2) after ZeroPad2d(3) -> (P, S*E)."""
    m1 = np.zeros((P, S * E), np.float32)
    for c in range(C):
        for h in range(HO):
            for w in range(WO):
                p = c * HW + h * WO + w
                for kh in range(7):
                    i = 2 * h + kh - 3
                    if not (0 <= i < S):
                        continue
                    for kw in range(7):
                        j = 2 * w + kw - 3
                        if 0 <= j < E:
                            m1[p, i * E + j] += w1[c, 0, kh, kw]
    return m1


def _build_m3x3(wc):
    """3x3 conv, stride 1, after ZeroPad2d(1) -> (P, P)."""
    m = np.zeros((P, P), np.float32)
    for co in range(C):
        for ci in range(C):
            for kh in range(3):
                for kw in range(3):
                    wv = wc[co, ci, kh, kw]
                    for h in range(HO):
                        i = h + kh - 1
                        if not (0 <= i < HO):
                            continue
                        for w in range(WO):
                            j = w + kw - 1
                            if 0 <= j < WO:
                                m[co * HW + h * WO + w, ci * HW + i * WO + j] += wv
    return m


def _build_m4(w4):
    """conv_03_1: Conv2d(C, 1, (3, WO)) after ZeroPad2d((0,0,1,1)) -> (HO, P)."""
    m4 = np.zeros((HO, P), np.float32)
    for h in range(HO):
        for c in range(C):
            for kh in range(3):
                i = h + kh - 1
                if not (0 <= i < HO):
                    continue
                for kw in range(WO):
                    m4[h, c * HW + i * WO + kw] += w4[0, c, kh, kw]
    return m4


def _build_ind():
    """(P, C) channel-indicator: IND[p, c] = 1 iff p // HW == c."""
    ind = np.zeros((P, C), np.float32)
    for c in range(C):
        ind[c * HW:(c + 1) * HW, c] = 1.0
    return ind


def init_params(key):
    ks = jax.random.split(key, 13)
    p = {}
    p['table'] = jax.random.normal(ks[0], (V, E), jnp.float32)
    p['W1'] = 0.2 * jax.random.normal(ks[1], (C, 1, 7, 7), jnp.float32)
    p['W2'] = 0.2 * jax.random.normal(ks[2], (C, C, 3, 3), jnp.float32)
    p['W3'] = 0.2 * jax.random.normal(ks[3], (C, C, 3, 3), jnp.float32)
    p['W4'] = 0.2 * jax.random.normal(ks[4], (1, C, 3, WO), jnp.float32)
    p['Wlin'] = 0.2 * jax.random.normal(ks[5], (1, HO), jnp.float32)
    p['b_lin'] = 0.1 * jax.random.normal(ks[6], (1,), jnp.float32)
    p['g1'] = 1.0 + 0.1 * jax.random.normal(ks[7], (C,), jnp.float32)
    p['be1'] = 0.1 * jax.random.normal(ks[8], (C,), jnp.float32)
    p['g2'] = 1.0 + 0.1 * jax.random.normal(ks[9], (C,), jnp.float32)
    p['be2'] = 0.1 * jax.random.normal(ks[10], (C,), jnp.float32)
    p['g3'] = 1.0 + 0.1 * jax.random.normal(ks[11], (C,), jnp.float32)
    p['be3'] = 0.1 * jax.random.normal(ks[12], (C,), jnp.float32)
    p['g4'] = jnp.ones((1,), jnp.float32)
    p['be4'] = jnp.zeros((1,), jnp.float32)
    # Round the large weights to bf16 once so kernel (bf16 storage) and the
    # f32 reference use identical effective weight values.
    for k in ('table', 'W1', 'W2', 'W3', 'W4'):
        p[k] = p[k].astype(jnp.bfloat16).astype(jnp.float32)
    # Conv biases fixed to 0 (they cancel exactly under train-mode BatchNorm).
    return p


def prepare_kernel_inputs(p):
    table = np.asarray(p['table'], np.float32)                 # (V, E)
    m1t = _build_m1(np.asarray(p['W1'], np.float32)).T         # (S*E, P)
    m2t = _build_m3x3(np.asarray(p['W2'], np.float32)).T       # (P, P)
    m3t = _build_m3x3(np.asarray(p['W3'], np.float32)).T       # (P, P)
    m4t = _build_m4(np.asarray(p['W4'], np.float32)).T         # (P, HO)
    ind = _build_ind()
    bn = np.stack([np.repeat(np.asarray(p['g1']), HW),
                   np.repeat(np.asarray(p['be1']), HW),
                   np.repeat(np.asarray(p['g2']), HW),
                   np.repeat(np.asarray(p['be2']), HW),
                   np.repeat(np.asarray(p['g3']), HW),
                   np.repeat(np.asarray(p['be3']), HW)], axis=0).astype(np.float32)
    return dict(
        # big constants in bf16 (matrix entries are single bf16 weight taps ->
        # the cast is exact); BN / indicator / linear path stays f32.
        TABLE=jnp.asarray(table, jnp.bfloat16),
        M1T=jnp.asarray(np.ascontiguousarray(m1t), jnp.bfloat16),
        M2T=jnp.asarray(np.ascontiguousarray(m2t), jnp.bfloat16),
        M3T=jnp.asarray(np.ascontiguousarray(m3t), jnp.bfloat16),
        M4T=jnp.asarray(np.ascontiguousarray(m4t), jnp.bfloat16),
        IND=jnp.asarray(ind, jnp.float32),
        INDT=jnp.asarray(np.ascontiguousarray(ind.T), jnp.float32),
        BN=jnp.asarray(bn, jnp.float32),
        wlin=jnp.asarray(p['Wlin'], jnp.float32),                       # (1, HO)
        misc=jnp.concatenate([p['g4'], p['be4'], p['b_lin']]).astype(jnp.float32),
    )


# ------------------------------- wrapper --------------------------------------
def res_cnn_forward(x_ids, kp):
    # s-major ids column: row r = s*B + b  ->  x_ids[b, s]
    ids_sb = jnp.transpose(x_ids.astype(jnp.int32)).reshape(S * B, 1)
    vmem = pl.BlockSpec(memory_space=pltpu.MemorySpace.VMEM)
    smem = pl.BlockSpec(memory_space=pltpu.MemorySpace.SMEM)
    call = pl.pallas_call(
        res_cnn_kernel,
        out_shape=jax.ShapeDtypeStruct((B, 1), jnp.float32),
        in_specs=[vmem] * 10 + [smem],
        out_specs=vmem,
    )
    return call(ids_sb, kp['TABLE'], kp['M1T'], kp['M2T'], kp['M3T'], kp['M4T'],
                kp['IND'], kp['INDT'], kp['BN'], kp['wlin'], kp['misc'])


# ------------------------- pure-JAX reference (check) -------------------------
def reference_forward(x_ids, p):
    emb = p['table'][x_ids]                       # (B, S, E)
    h = emb[:, None, :, :]                        # (B, 1, S, E)  NCHW

    def conv(x, w, stride, pad):
        return lax.conv_general_dilated(
            x, w, window_strides=(stride, stride), padding=pad,
            dimension_numbers=('NCHW', 'OIHW', 'NCHW'))

    def bn(x, g, b):
        mean = jnp.mean(x, axis=(0, 2, 3), keepdims=True)
        var = jnp.mean(jnp.square(x - mean), axis=(0, 2, 3), keepdims=True)
        return (g[None, :, None, None] * (x - mean) * lax.rsqrt(var + EPS)
                + b[None, :, None, None])

    relu = lambda t: jnp.maximum(t, 0.0)
    h1 = relu(bn(conv(h, p['W1'], 2, [(3, 3), (3, 3)]), p['g1'], p['be1']))
    h2 = relu(bn(conv(h1, p['W2'], 1, [(1, 1), (1, 1)]), p['g2'], p['be2']))
    h3 = relu(bn(conv(h2, p['W3'], 1, [(1, 1), (1, 1)]), p['g3'], p['be3'])) + h1
    h4 = relu(bn(conv(h3, p['W4'], 1, [(1, 1), (0, 0)]), p['g4'], p['be4']))
    flat = h4.reshape(x_ids.shape[0], -1)         # (B, HO)
    return jax.nn.sigmoid(flat @ p['Wlin'].T + p['b_lin'])


# --------------------------------- main ----------------------------------------
if __name__ == "__main__":
    key = jax.random.PRNGKey(0)
    raw = init_params(key)
    kparams = prepare_kernel_inputs(raw)

    x_ids = jax.random.randint(jax.random.fold_in(key, 123), (B, S), 0, V,
                               dtype=jnp.int32)

    out = jax.jit(res_cnn_forward)(x_ids, kparams)
    out = jax.block_until_ready(out)

    ref = jax.block_until_ready(reference_forward(x_ids, raw))
    np.testing.assert_allclose(np.asarray(out), np.asarray(ref),
                               atol=1e-2, rtol=1e-2)
    print("KERNEL_OK")
</pallas_src>

<mosaic_0001>
module attributes {stable_mosaic.version = 11 : i64} {
  func.func @res_cnn_kernel(%arg0: memref<32x1xi32, #tpu.memory_space<vmem>>, %arg1: memref<128x32xbf16, #tpu.memory_space<vmem>>, %arg2: memref<512x512xbf16, #tpu.memory_space<vmem>>, %arg3: memref<512x512xbf16, #tpu.memory_space<vmem>>, %arg4: memref<512x512xbf16, #tpu.memory_space<vmem>>, %arg5: memref<512x8xbf16, #tpu.memory_space<vmem>>, %arg6: memref<512x4xf32, #tpu.memory_space<vmem>>, %arg7: memref<4x512xf32, #tpu.memory_space<vmem>>, %arg8: memref<6x512xf32, #tpu.memory_space<vmem>>, %arg9: memref<1x8xf32, #tpu.memory_space<vmem>>, %arg10: memref<3xf32, #tpu.memory_space<smem>>, %arg11: memref<2x1xf32, #tpu.memory_space<vmem>>) attributes {dimension_semantics = [], scalar_prefetch = 0 : i64, scratch_operands = 0 : i64, tpu.core_type = #tpu.core_type<tc>} {
    %c0 = arith.constant 0 : index
    %c0_0 = arith.constant 0 : index
    %0 = vector.load %arg6[%c0, %c0_0] : memref<512x4xf32, #tpu.memory_space<vmem>>, vector<512x4xf32>
    %c0_1 = arith.constant 0 : index
    %c0_2 = arith.constant 0 : index
    %1 = vector.load %arg7[%c0_1, %c0_2] : memref<4x512xf32, #tpu.memory_space<vmem>>, vector<4x512xf32>
    %c0_3 = arith.constant 0 : index
    %c0_4 = arith.constant 0 : index
    %2 = vector.load %arg8[%c0_3, %c0_4] : memref<6x512xf32, #tpu.memory_space<vmem>>, vector<6x512xf32>
    %c0_5 = arith.constant 0 : index
    %c0_6 = arith.constant 0 : index
    %3 = vector.load %arg0[%c0_5, %c0_6] : memref<32x1xi32, #tpu.memory_space<vmem>>, vector<32x1xi32>
    %4 = tpu.iota {dimensions = array<i32: 1>} : vector<32x128xi32>
    %5 = vector.broadcast %3 : vector<32x1xi32> to vector<32x128xi32>
    %6 = arith.cmpi eq, %4, %5 : vector<32x128xi32>
    %7 = arith.extui %6 : vector<32x128xi1> to vector<32x128xi32>
    %8 = arith.sitofp %7 : vector<32x128xi32> to vector<32x128xf32>
    %9 = arith.truncf %8 : vector<32x128xf32> to vector<32x128xbf16>
    %c0_7 = arith.constant 0 : index
    %c0_8 = arith.constant 0 : index
    %10 = vector.load %arg1[%c0_7, %c0_8] : memref<128x32xbf16, #tpu.memory_space<vmem>>, vector<128x32xbf16>
    %cst = arith.constant dense<0.000000e+00> : vector<32x32xf32>
    %11 = tpu.matmul %9, %10, %cst {dimension_numbers = #tpu.dot_dimension_numbers<[1], [0], [0], [1], [0, 0, 1, 1], [], []>} : vector<32x128xbf16>, vector<128x32xbf16>, vector<32x32xf32> -> vector<32x32xf32>
    %cst_9 = arith.constant 0.000000e+00 : f32
    %12 = vector.broadcast %cst_9 : f32 to vector<2x512xf32>
    %13 = vector.extract_strided_slice %11 {offsets = [0, 0], sizes = [2, 32], strides = [1, 1]} : vector<32x32xf32> to vector<2x32xf32>
    %14 = arith.truncf %13 : vector<2x32xf32> to vector<2x32xbf16>
    %c0_10 = arith.constant 0 : index
    %c0_11 = arith.constant 0 : index
    %15 = vector.load %arg2[%c0_10, %c0_11] : memref<512x512xbf16, #tpu.memory_space<vmem>>, vector<32x512xbf16>
    %cst_12 = arith.constant dense<0.000000e+00> : vector<2x512xf32>
    %16 = tpu.matmul %14, %15, %cst_12 {dimension_numbers = #tpu.dot_dimension_numbers<[1], [0], [0], [1], [0, 0, 1, 1], [], []>} : vector<2x32xbf16>, vector<32x512xbf16>, vector<2x512xf32> -> vector<2x512xf32>
    %17 = arith.addf %12, %16 : vector<2x512xf32>
    %18 = vector.extract_strided_slice %11 {offsets = [2, 0], sizes = [2, 32], strides = [1, 1]} : vector<32x32xf32> to vector<2x32xf32>
    %19 = arith.truncf %18 : vector<2x32xf32> to vector<2x32xbf16>
    %c32 = arith.constant 32 : index
    %c0_13 = arith.constant 0 : index
    %20 = vector.load %arg2[%c32, %c0_13] : memref<512x512xbf16, #tpu.memory_space<vmem>>, vector<32x512xbf16>
    %cst_14 = arith.constant dense<0.000000e+00> : vector<2x512xf32>
    %21 = tpu.matmul %19, %20, %cst_14 {dimension_numbers = #tpu.dot_dimension_numbers<[1], [0], [0], [1], [0, 0, 1, 1], [], []>} : vector<2x32xbf16>, vector<32x512xbf16>, vector<2x512xf32> -> vector<2x512xf32>
    %22 = arith.addf %17, %21 : vector<2x512xf32>
    %23 = vector.extract_strided_slice %11 {offsets = [4, 0], sizes = [2, 32], strides = [1, 1]} : vector<32x32xf32> to vector<2x32xf32>
    %24 = arith.truncf %23 : vector<2x32xf32> to vector<2x32xbf16>
    %c64 = arith.constant 64 : index
    %c0_15 = arith.constant 0 : index
    %25 = vector.load %arg2[%c64, %c0_15] : memref<512x512xbf16, #tpu.memory_space<vmem>>, vector<32x512xbf16>
    %cst_16 = arith.constant dense<0.000000e+00> : vector<2x512xf32>
    %26 = tpu.matmul %24, %25, %cst_16 {dimension_numbers = #tpu.dot_dimension_numbers<[1], [0], [0], [1], [0, 0, 1, 1], [], []>} : vector<2x32xbf16>, vector<32x512xbf16>, vector<2x512xf32> -> vector<2x512xf32>
    %27 = arith.addf %22, %26 : vector<2x512xf32>
    %28 = vector.extract_strided_slice %11 {offsets = [6, 0], sizes = [2, 32], strides = [1, 1]} : vector<32x32xf32> to vector<2x32xf32>
    %29 = arith.truncf %28 : vector<2x32xf32> to vector<2x32xbf16>
    %c96 = arith.constant 96 : index
    %c0_17 = arith.constant 0 : index
    %30 = vector.load %arg2[%c96, %c0_17] : memref<512x512xbf16, #tpu.memory_space<vmem>>, vector<32x512xbf16>
    %cst_18 = arith.constant dense<0.000000e+00> : vector<2x512xf32>
    %31 = tpu.matmul %29, %30, %cst_18 {dimension_numbers = #tpu.dot_dimension_numbers<[1], [0], [0], [1], [0, 0, 1, 1], [], []>} : vector<2x32xbf16>, vector<32x512xbf16>, vector<2x512xf32> -> vector<2x512xf32>
    %32 = arith.addf %27, %31 : vector<2x512xf32>
    %33 = vector.extract_strided_slice %11 {offsets = [8, 0], sizes = [2, 32], strides = [1, 1]} : vector<32x32xf32> to vector<2x32xf32>
    %34 = arith.truncf %33 : vector<2x32xf32> to vector<2x32xbf16>
    %c128 = arith.constant 128 : index
    %c0_19 = arith.constant 0 : index
    %35 = vector.load %arg2[%c128, %c0_19] : memref<512x512xbf16, #tpu.memory_space<vmem>>, vector<32x512xbf16>
    %cst_20 = arith.constant dense<0.000000e+00> : vector<2x512xf32>
    %36 = tpu.matmul %34, %35, %cst_20 {dimension_numbers = #tpu.dot_dimension_numbers<[1], [0], [0], [1], [0, 0, 1, 1], [], []>} : vector<2x32xbf16>, vector<32x512xbf16>, vector<2x512xf32> -> vector<2x512xf32>
    %37 = arith.addf %32, %36 : vector<2x512xf32>
    %38 = vector.extract_strided_slice %11 {offsets = [10, 0], sizes = [2, 32], strides = [1, 1]} : vector<32x32xf32> to vector<2x32xf32>
    %39 = arith.truncf %38 : vector<2x32xf32> to vector<2x32xbf16>
    %c160 = arith.constant 160 : index
    %c0_21 = arith.constant 0 : index
    %40 = vector.load %arg2[%c160, %c0_21] : memref<512x512xbf16, #tpu.memory_space<vmem>>, vector<32x512xbf16>
    %cst_22 = arith.constant dense<0.000000e+00> : vector<2x512xf32>
    %41 = tpu.matmul %39, %40, %cst_22 {dimension_numbers = #tpu.dot_dimension_numbers<[1], [0], [0], [1], [0, 0, 1, 1], [], []>} : vector<2x32xbf16>, vector<32x512xbf16>, vector<2x512xf32> -> vector<2x512xf32>
    %42 = arith.addf %37, %41 : vector<2x512xf32>
    %43 = vector.extract_strided_slice %11 {offsets = [12, 0], sizes = [2, 32], strides = [1, 1]} : vector<32x32xf32> to vector<2x32xf32>
    %44 = arith.truncf %43 : vector<2x32xf32> to vector<2x32xbf16>
    %c192 = arith.constant 192 : index
    %c0_23 = arith.constant 0 : index
    %45 = vector.load %arg2[%c192, %c0_23] : memref<512x512xbf16, #tpu.memory_space<vmem>>, vector<32x512xbf16>
    %cst_24 = arith.constant dense<0.000000e+00> : vector<2x512xf32>
    %46 = tpu.matmul %44, %45, %cst_24 {dimension_numbers = #tpu.dot_dimension_numbers<[1], [0], [0], [1], [0, 0, 1, 1], [], []>} : vector<2x32xbf16>, vector<32x512xbf16>, vector<2x512xf32> -> vector<2x512xf32>
    %47 = arith.addf %42, %46 : vector<2x512xf32>
    %48 = vector.extract_strided_slice %11 {offsets = [14, 0], sizes = [2, 32], strides = [1, 1]} : vector<32x32xf32> to vector<2x32xf32>
    %49 = arith.truncf %48 : vector<2x32xf32> to vector<2x32xbf16>
    %c224 = arith.constant 224 : index
    %c0_25 = arith.constant 0 : index
    %50 = vector.load %arg2[%c224, %c0_25] : memref<512x512xbf16, #tpu.memory_space<vmem>>, vector<32x512xbf16>
    %cst_26 = arith.constant dense<0.000000e+00> : vector<2x512xf32>
    %51 = tpu.matmul %49, %50, %cst_26 {dimension_numbers = #tpu.dot_dimension_numbers<[1], [0], [0], [1], [0, 0, 1, 1], [], []>} : vector<2x32xbf16>, vector<32x512xbf16>, vector<2x512xf32> -> vector<2x512xf32>
    %52 = arith.addf %47, %51 : vector<2x512xf32>
    %53 = vector.extract_strided_slice %11 {offsets = [16, 0], sizes = [2, 32], strides = [1, 1]} : vector<32x32xf32> to vector<2x32xf32>
    %54 = arith.truncf %53 : vector<2x32xf32> to vector<2x32xbf16>
    %c256 = arith.constant 256 : index
    %c0_27 = arith.constant 0 : index
    %55 = vector.load %arg2[%c256, %c0_27] : memref<512x512xbf16, #tpu.memory_space<vmem>>, vector<32x512xbf16>
    %cst_28 = arith.constant dense<0.000000e+00> : vector<2x512xf32>
    %56 = tpu.matmul %54, %55, %cst_28 {dimension_numbers = #tpu.dot_dimension_numbers<[1], [0], [0], [1], [0, 0, 1, 1], [], []>} : vector<2x32xbf16>, vector<32x512xbf16>, vector<2x512xf32> -> vector<2x512xf32>
    %57 = arith.addf %52, %56 : vector<2x512xf32>
    %58 = vector.extract_strided_slice %11 {offsets = [18, 0], sizes = [2, 32], strides = [1, 1]} : vector<32x32xf32> to vector<2x32xf32>
    %59 = arith.truncf %58 : vector<2x32xf32> to vector<2x32xbf16>
    %c288 = arith.constant 288 : index
    %c0_29 = arith.constant 0 : index
    %60 = vector.load %arg2[%c288, %c0_29] : memref<512x512xbf16, #tpu.memory_space<vmem>>, vector<32x512xbf16>
    %cst_30 = arith.constant dense<0.000000e+00> : vector<2x512xf32>
    %61 = tpu.matmul %59, %60, %cst_30 {dimension_numbers = #tpu.dot_dimension_numbers<[1], [0], [0], [1], [0, 0, 1, 1], [], []>} : vector<2x32xbf16>, vector<32x512xbf16>, vector<2x512xf32> -> vector<2x512xf32>
    %62 = arith.addf %57, %61 : vector<2x512xf32>
    %63 = vector.extract_strided_slice %11 {offsets = [20, 0], sizes = [2, 32], strides = [1, 1]} : vector<32x32xf32> to vector<2x32xf32>
    %64 = arith.truncf %63 : vector<2x32xf32> to vector<2x32xbf16>
    %c320 = arith.constant 320 : index
    %c0_31 = arith.constant 0 : index
    %65 = vector.load %arg2[%c320, %c0_31] : memref<512x512xbf16, #tpu.memory_space<vmem>>, vector<32x512xbf16>
    %cst_32 = arith.constant dense<0.000000e+00> : vector<2x512xf32>
    %66 = tpu.matmul %64, %65, %cst_32 {dimension_numbers = #tpu.dot_dimension_numbers<[1], [0], [0], [1], [0, 0, 1, 1], [], []>} : vector<2x32xbf16>, vector<32x512xbf16>, vector<2x512xf32> -> vector<2x512xf32>
    %67 = arith.addf %62, %66 : vector<2x512xf32>
    %68 = vector.extract_strided_slice %11 {offsets = [22, 0], sizes = [2, 32], strides = [1, 1]} : vector<32x32xf32> to vector<2x32xf32>
    %69 = arith.truncf %68 : vector<2x32xf32> to vector<2x32xbf16>
    %c352 = arith.constant 352 : index
    %c0_33 = arith.constant 0 : index
    %70 = vector.load %arg2[%c352, %c0_33] : memref<512x512xbf16, #tpu.memory_space<vmem>>, vector<32x512xbf16>
    %cst_34 = arith.constant dense<0.000000e+00> : vector<2x512xf32>
    %71 = tpu.matmul %69, %70, %cst_34 {dimension_numbers = #tpu.dot_dimension_numbers<[1], [0], [0], [1], [0, 0, 1, 1], [], []>} : vector<2x32xbf16>, vector<32x512xbf16>, vector<2x512xf32> -> vector<2x512xf32>
    %72 = arith.addf %67, %71 : vector<2x512xf32>
    %73 = vector.extract_strided_slice %11 {offsets = [24, 0], sizes = [2, 32], strides = [1, 1]} : vector<32x32xf32> to vector<2x32xf32>
    %74 = arith.truncf %73 : vector<2x32xf32> to vector<2x32xbf16>
    %c384 = arith.constant 384 : index
    %c0_35 = arith.constant 0 : index
    %75 = vector.load %arg2[%c384, %c0_35] : memref<512x512xbf16, #tpu.memory_space<vmem>>, vector<32x512xbf16>
    %cst_36 = arith.constant dense<0.000000e+00> : vector<2x512xf32>
    %76 = tpu.matmul %74, %75, %cst_36 {dimension_numbers = #tpu.dot_dimension_numbers<[1], [0], [0], [1], [0, 0, 1, 1], [], []>} : vector<2x32xbf16>, vector<32x512xbf16>, vector<2x512xf32> -> vector<2x512xf32>
    %77 = arith.addf %72, %76 : vector<2x512xf32>
    %78 = vector.extract_strided_slice %11 {offsets = [26, 0], sizes = [2, 32], strides = [1, 1]} : vector<32x32xf32> to vector<2x32xf32>
    %79 = arith.truncf %78 : vector<2x32xf32> to vector<2x32xbf16>
    %c416 = arith.constant 416 : index
    %c0_37 = arith.constant 0 : index
    %80 = vector.load %arg2[%c416, %c0_37] : memref<512x512xbf16, #tpu.memory_space<vmem>>, vector<32x512xbf16>
    %cst_38 = arith.constant dense<0.000000e+00> : vector<2x512xf32>
    %81 = tpu.matmul %79, %80, %cst_38 {dimension_numbers = #tpu.dot_dimension_numbers<[1], [0], [0], [1], [0, 0, 1, 1], [], []>} : vector<2x32xbf16>, vector<32x512xbf16>, vector<2x512xf32> -> vector<2x512xf32>
    %82 = arith.addf %77, %81 : vector<2x512xf32>
    %83 = vector.extract_strided_slice %11 {offsets = [28, 0], sizes = [2, 32], strides = [1, 1]} : vector<32x32xf32> to vector<2x32xf32>
    %84 = arith.truncf %83 : vector<2x32xf32> to vector<2x32xbf16>
    %c448 = arith.constant 448 : index
    %c0_39 = arith.constant 0 : index
    %85 = vector.load %arg2[%c448, %c0_39] : memref<512x512xbf16, #tpu.memory_space<vmem>>, vector<32x512xbf16>
    %cst_40 = arith.constant dense<0.000000e+00> : vector<2x512xf32>
    %86 = tpu.matmul %84, %85, %cst_40 {dimension_numbers = #tpu.dot_dimension_numbers<[1], [0], [0], [1], [0, 0, 1, 1], [], []>} : vector<2x32xbf16>, vector<32x512xbf16>, vector<2x512xf32> -> vector<2x512xf32>
    %87 = arith.addf %82, %86 : vector<2x512xf32>
    %88 = vector.extract_strided_slice %11 {offsets = [30, 0], sizes = [2, 32], strides = [1, 1]} : vector<32x32xf32> to vector<2x32xf32>
    %89 = arith.truncf %88 : vector<2x32xf32> to vector<2x32xbf16>
    %c480 = arith.constant 480 : index
    %c0_41 = arith.constant 0 : index
    %90 = vector.load %arg2[%c480, %c0_41] : memref<512x512xbf16, #tpu.memory_space<vmem>>, vector<32x512xbf16>
    %cst_42 = arith.constant dense<0.000000e+00> : vector<2x512xf32>
    %91 = tpu.matmul %89, %90, %cst_42 {dimension_numbers = #tpu.dot_dimension_numbers<[1], [0], [0], [1], [0, 0, 1, 1], [], []>} : vector<2x32xbf16>, vector<32x512xbf16>, vector<2x512xf32> -> vector<2x512xf32>
    %92 = arith.addf %87, %91 : vector<2x512xf32>
    %93 = vector.extract_strided_slice %2 {offsets = [0, 0], sizes = [1, 512], strides = [1, 1]} : vector<6x512xf32> to vector<1x512xf32>
    %94 = vector.extract_strided_slice %2 {offsets = [1, 0], sizes = [1, 512], strides = [1, 1]} : vector<6x512xf32> to vector<1x512xf32>
    %cst_43 = arith.constant dense<0.000000e+00> : vector<512xf32>
    %95 = vector.multi_reduction <add>, %92, %cst_43 [0] : vector<2x512xf32> to vector<512xf32>
    %96 = vector.shape_cast %95 : vector<512xf32> to vector<1x512xf32>
    %97 = arith.mulf %92, %92 : vector<2x512xf32>
    %cst_44 = arith.constant dense<0.000000e+00> : vector<512xf32>
    %98 = vector.multi_reduction <add>, %97, %cst_44 [0] : vector<2x512xf32> to vector<512xf32>
    %99 = vector.shape_cast %98 : vector<512xf32> to vector<1x512xf32>
    %100 = tpu.concatenate %96, %99 in 0 : vector<1x512xf32>, vector<1x512xf32> -> vector<2x512xf32>
    %cst_45 = arith.constant 3.906250e-03 : f32
    %101 = vector.broadcast %cst_45 : f32 to vector<2x512xf32>
    %102 = arith.mulf %100, %101 : vector<2x512xf32>
    %cst_46 = arith.constant dense<0.000000e+00> : vector<2x4xf32>
    %103 = tpu.matmul %102, %0, %cst_46 {dimension_numbers = #tpu.dot_dimension_numbers<[1], [0], [0], [1], [0, 0, 1, 1], [], []>} : vector<2x512xf32>, vector<512x4xf32>, vector<2x4xf32> -> vector<2x4xf32>
    %cst_47 = arith.constant dense<0.000000e+00> : vector<2x512xf32>
    %104 = tpu.matmul %103, %1, %cst_47 {dimension_numbers = #tpu.dot_dimension_numbers<[1], [0], [0], [1], [0, 0, 1, 1], [], []>} : vector<2x4xf32>, vector<4x512xf32>, vector<2x512xf32> -> vector<2x512xf32>
    %105 = vector.extract_strided_slice %104 {offsets = [0, 0], sizes = [1, 512], strides = [1, 1]} : vector<2x512xf32> to vector<1x512xf32>
    %106 = vector.extract_strided_slice %104 {offsets = [1, 0], sizes = [1, 512], strides = [1, 1]} : vector<2x512xf32> to vector<1x512xf32>
    %107 = arith.mulf %105, %105 : vector<1x512xf32>
    %108 = arith.subf %106, %107 : vector<1x512xf32>
    %cst_48 = arith.constant 0.000000e+00 : f32
    %109 = vector.broadcast %cst_48 : f32 to vector<1x512xf32>
    %110 = arith.maximumf %108, %109 : vector<1x512xf32>
    %cst_49 = arith.constant 9.99999974E-6 : f32
    %111 = vector.broadcast %cst_49 : f32 to vector<1x512xf32>
    %112 = arith.addf %110, %111 : vector<1x512xf32>
    %113 = math.rsqrt %112 : vector<1x512xf32>
    %114 = arith.mulf %93, %113 : vector<1x512xf32>
    %115 = arith.mulf %105, %114 : vector<1x512xf32>
    %116 = arith.subf %94, %115 : vector<1x512xf32>
    %117 = vector.broadcast %114 : vector<1x512xf32> to vector<2x512xf32>
    %118 = arith.mulf %92, %117 : vector<2x512xf32>
    %119 = vector.broadcast %116 : vector<1x512xf32> to vector<2x512xf32>
    %120 = arith.addf %118, %119 : vector<2x512xf32>
    %cst_50 = arith.constant 0.000000e+00 : f32
    %121 = vector.broadcast %cst_50 : f32 to vector<2x512xf32>
    %122 = arith.maximumf %120, %121 : vector<2x512xf32>
    %123 = arith.truncf %122 : vector<2x512xf32> to vector<2x512xbf16>
    %c0_51 = arith.constant 0 : index
    %c0_52 = arith.constant 0 : index
    %124 = vector.load %arg3[%c0_51, %c0_52] : memref<512x512xbf16, #tpu.memory_space<vmem>>, vector<512x512xbf16>
    %cst_53 = arith.constant dense<0.000000e+00> : vector<2x512xf32>
    %125 = tpu.matmul %123, %124, %cst_53 {dimension_numbers = #tpu.dot_dimension_numbers<[1], [0], [0], [1], [0, 0, 1, 1], [], []>} : vector<2x512xbf16>, vector<512x512xbf16>, vector<2x512xf32> -> vector<2x512xf32>
    %126 = vector.extract_strided_slice %2 {offsets = [2, 0], sizes = [1, 512], strides = [1, 1]} : vector<6x512xf32> to vector<1x512xf32>
    %127 = vector.extract_strided_slice %2 {offsets = [3, 0], sizes = [1, 512], strides = [1, 1]} : vector<6x512xf32> to vector<1x512xf32>
    %cst_54 = arith.constant dense<0.000000e+00> : vector<512xf32>
    %128 = vector.multi_reduction <add>, %125, %cst_54 [0] : vector<2x512xf32> to vector<512xf32>
    %129 = vector.shape_cast %128 : vector<512xf32> to vector<1x512xf32>
    %130 = arith.mulf %125, %125 : vector<2x512xf32>
    %cst_55 = arith.constant dense<0.000000e+00> : vector<512xf32>
    %131 = vector.multi_reduction <add>, %130, %cst_55 [0] : vector<2x512xf32> to vector<512xf32>
    %132 = vector.shape_cast %131 : vector<512xf32> to vector<1x512xf32>
    %133 = tpu.concatenate %129, %132 in 0 : vector<1x512xf32>, vector<1x512xf32> -> vector<2x512xf32>
    %cst_56 = arith.constant 3.906250e-03 : f32
    %134 = vector.broadcast %cst_56 : f32 to vector<2x512xf32>
    %135 = arith.mulf %133, %134 : vector<2x512xf32>
    %cst_57 = arith.constant dense<0.000000e+00> : vector<2x4xf32>
    %136 = tpu.matmul %135, %0, %cst_57 {dimension_numbers = #tpu.dot_dimension_numbers<[1], [0], [0], [1], [0, 0, 1, 1], [], []>} : vector<2x512xf32>, vector<512x4xf32>, vector<2x4xf32> -> vector<2x4xf32>
    %cst_58 = arith.constant dense<0.000000e+00> : vector<2x512xf32>
    %137 = tpu.matmul %136, %1, %cst_58 {dimension_numbers = #tpu.dot_dimension_numbers<[1], [0], [0], [1], [0, 0, 1, 1], [], []>} : vector<2x4xf32>, vector<4x512xf32>, vector<2x512xf32> -> vector<2x512xf32>
    %138 = vector.extract_strided_slice %137 {offsets = [0, 0], sizes = [1, 512], strides = [1, 1]} : vector<2x512xf32> to vector<1x512xf32>
    %139 = vector.extract_strided_slice %137 {offsets = [1, 0], sizes = [1, 512], strides = [1, 1]} : vector<2x512xf32> to vector<1x512xf32>
    %140 = arith.mulf %138, %138 : vector<1x512xf32>
    %141 = arith.subf %139, %140 : vector<1x512xf32>
    %cst_59 = arith.constant 0.000000e+00 : f32
    %142 = vector.broadcast %cst_59 : f32 to vector<1x512xf32>
    %143 = arith.maximumf %141, %142 : vector<1x512xf32>
    %cst_60 = arith.constant 9.99999974E-6 : f32
    %144 = vector.broadcast %cst_60 : f32 to vector<1x512xf32>
    %145 = arith.addf %143, %144 : vector<1x512xf32>
    %146 = math.rsqrt %145 : vector<1x512xf32>
    %147 = arith.mulf %126, %146 : vector<1x512xf32>
    %148 = arith.mulf %138, %147 : vector<1x512xf32>
    %149 = arith.subf %127, %148 : vector<1x512xf32>
    %150 = vector.broadcast %147 : vector<1x512xf32> to vector<2x512xf32>
    %151 = arith.mulf %125, %150 : vector<2x512xf32>
    %152 = vector.broadcast %149 : vector<1x512xf32> to vector<2x512xf32>
    %153 = arith.addf %151, %152 : vector<2x512xf32>
    %cst_61 = arith.constant 0.000000e+00 : f32
    %154 = vector.broadcast %cst_61 : f32 to vector<2x512xf32>
    %155 = arith.maximumf %153, %154 : vector<2x512xf32>
    %156 = arith.truncf %155 : vector<2x512xf32> to vector<2x512xbf16>
    %c0_62 = arith.constant 0 : index
    %c0_63 = arith.constant 0 : index
    %157 = vector.load %arg4[%c0_62, %c0_63] : memref<512x512xbf16, #tpu.memory_space<vmem>>, vector<512x512xbf16>
    %cst_64 = arith.constant dense<0.000000e+00> : vector<2x512xf32>
    %158 = tpu.matmul %156, %157, %cst_64 {dimension_numbers = #tpu.dot_dimension_numbers<[1], [0], [0], [1], [0, 0, 1, 1], [], []>} : vector<2x512xbf16>, vector<512x512xbf16>, vector<2x512xf32> -> vector<2x512xf32>
    %159 = vector.extract_strided_slice %2 {offsets = [4, 0], sizes = [1, 512], strides = [1, 1]} : vector<6x512xf32> to vector<1x512xf32>
    %160 = vector.extract_strided_slice %2 {offsets = [5, 0], sizes = [1, 512], strides = [1, 1]} : vector<6x512xf32> to vector<1x512xf32>
    %cst_65 = arith.constant dense<0.000000e+00> : vector<512xf32>
    %161 = vector.multi_reduction <add>, %158, %cst_65 [0] : vector<2x512xf32> to vector<512xf32>
    %162 = vector.shape_cast %161 : vector<512xf32> to vector<1x512xf32>
    %163 = arith.mulf %158, %158 : vector<2x512xf32>
    %cst_66 = arith.constant dense<0.000000e+00> : vector<512xf32>
    %164 = vector.multi_reduction <add>, %163, %cst_66 [0] : vector<2x512xf32> to vector<512xf32>
    %165 = vector.shape_cast %164 : vector<512xf32> to vector<1x512xf32>
    %166 = tpu.concatenate %162, %165 in 0 : vector<1x512xf32>, vector<1x512xf32> -> vector<2x512xf32>
    %cst_67 = arith.constant 3.906250e-03 : f32
    %167 = vector.broadcast %cst_67 : f32 to vector<2x512xf32>
    %168 = arith.mulf %166, %167 : vector<2x512xf32>
    %cst_68 = arith.constant dense<0.000000e+00> : vector<2x4xf32>
    %169 = tpu.matmul %168, %0, %cst_68 {dimension_numbers = #tpu.dot_dimension_numbers<[1], [0], [0], [1], [0, 0, 1, 1], [], []>} : vector<2x512xf32>, vector<512x4xf32>, vector<2x4xf32> -> vector<2x4xf32>
    %cst_69 = arith.constant dense<0.000000e+00> : vector<2x512xf32>
    %170 = tpu.matmul %169, %1, %cst_69 {dimension_numbers = #tpu.dot_dimension_numbers<[1], [0], [0], [1], [0, 0, 1, 1], [], []>} : vector<2x4xf32>, vector<4x512xf32>, vector<2x512xf32> -> vector<2x512xf32>
    %171 = vector.extract_strided_slice %170 {offsets = [0, 0], sizes = [1, 512], strides = [1, 1]} : vector<2x512xf32> to vector<1x512xf32>
    %172 = vector.extract_strided_slice %170 {offsets = [1, 0], sizes = [1, 512], strides = [1, 1]} : vector<2x512xf32> to vector<1x512xf32>
    %173 = arith.mulf %171, %171 : vector<1x512xf32>
    %174 = arith.subf %172, %173 : vector<1x512xf32>
    %cst_70 = arith.constant 0.000000e+00 : f32
    %175 = vector.broadcast %cst_70 : f32 to vector<1x512xf32>
    %176 = arith.maximumf %174, %175 : vector<1x512xf32>
    %cst_71 = arith.constant 9.99999974E-6 : f32
    %177 = vector.broadcast %cst_71 : f32 to vector<1x512xf32>
    %178 = arith.addf %176, %177 : vector<1x512xf32>
    %179 = math.rsqrt %178 : vector<1x512xf32>
    %180 = arith.mulf %159, %179 : vector<1x512xf32>
    %181 = arith.mulf %171, %180 : vector<1x512xf32>
    %182 = arith.subf %160, %181 : vector<1x512xf32>
    %183 = vector.broadcast %180 : vector<1x512xf32> to vector<2x512xf32>
    %184 = arith.mulf %158, %183 : vector<2x512xf32>
    %185 = vector.broadcast %182 : vector<1x512xf32> to vector<2x512xf32>
    %186 = arith.addf %184, %185 : vector<2x512xf32>
    %cst_72 = arith.constant 0.000000e+00 : f32
    %187 = vector.broadcast %cst_72 : f32 to vector<2x512xf32>
    %188 = arith.maximumf %186, %187 : vector<2x512xf32>
    %189 = arith.addf %188, %122 : vector<2x512xf32>
    %190 = arith.truncf %189 : vector<2x512xf32> to vector<2x512xbf16>
    %c0_73 = arith.constant 0 : index
    %c0_74 = arith.constant 0 : index
    %191 = vector.load %arg5[%c0_73, %c0_74] : memref<512x8xbf16, #tpu.memory_space<vmem>>, vector<512x8xbf16>
    %cst_75 = arith.constant dense<0.000000e+00> : vector<2x8xf32>
    %192 = tpu.matmul %190, %191, %cst_75 {dimension_numbers = #tpu.dot_dimension_numbers<[1], [0], [0], [1], [0, 0, 1, 1], [], []>} : vector<2x512xbf16>, vector<512x8xbf16>, vector<2x8xf32> -> vector<2x8xf32>
    %193 = vector.shape_cast %192 : vector<2x8xf32> to vector<1x2x8xf32>
    %cst_76 = arith.constant dense<0.000000e+00> : vector<1xf32>
    %194 = vector.multi_reduction <add>, %193, %cst_76 [1, 2] : vector<1x2x8xf32> to vector<1xf32>
    %195 = vector.shape_cast %194 : vector<1xf32> to vector<1x1x1xf32>
    %196 = vector.extract %195[0, 0, 0] : f32 from vector<1x1x1xf32>
    %197 = vector.broadcast %196 : f32 to vector<1x1xf32>
    %198 = arith.mulf %192, %192 : vector<2x8xf32>
    %199 = vector.shape_cast %198 : vector<2x8xf32> to vector<1x2x8xf32>
    %cst_77 = arith.constant dense<0.000000e+00> : vector<1xf32>
    %200 = vector.multi_reduction <add>, %199, %cst_77 [1, 2] : vector<1x2x8xf32> to vector<1xf32>
    %201 = vector.shape_cast %200 : vector<1xf32> to vector<1x1x1xf32>
    %202 = vector.extract %201[0, 0, 0] : f32 from vector<1x1x1xf32>
    %203 = vector.broadcast %202 : f32 to vector<1x1xf32>
    %cst_78 = arith.constant 1.600000e+01 : f32
    %204 = vector.broadcast %cst_78 : f32 to vector<1x1xf32>
    %205 = arith.divf %197, %204 : vector<1x1xf32>
    %cst_79 = arith.constant 1.600000e+01 : f32
    %206 = vector.broadcast %cst_79 : f32 to vector<1x1xf32>
    %207 = arith.divf %203, %206 : vector<1x1xf32>
    %208 = arith.mulf %205, %205 : vector<1x1xf32>
    %209 = arith.subf %207, %208 : vector<1x1xf32>
    %cst_80 = arith.constant 0.000000e+00 : f32
    %210 = vector.broadcast %cst_80 : f32 to vector<1x1xf32>
    %211 = arith.maximumf %209, %210 : vector<1x1xf32>
    %c0_81 = arith.constant 0 : index
    %212 = memref.load %arg10[%c0_81] : memref<3xf32, #tpu.memory_space<smem>>
    %cst_82 = arith.constant 9.99999974E-6 : f32
    %213 = vector.broadcast %cst_82 : f32 to vector<1x1xf32>
    %214 = arith.addf %211, %213 : vector<1x1xf32>
    %215 = math.rsqrt %214 : vector<1x1xf32>
    %216 = vector.broadcast %212 : f32 to vector<1x1xf32>
    %217 = arith.mulf %216, %215 : vector<1x1xf32>
    %c1 = arith.constant 1 : index
    %218 = memref.load %arg10[%c1] : memref<3xf32, #tpu.memory_space<smem>>
    %219 = arith.mulf %205, %217 : vector<1x1xf32>
    %220 = vector.broadcast %218 : f32 to vector<1x1xf32>
    %221 = arith.subf %220, %219 : vector<1x1xf32>
    %222 = vector.broadcast %217 : vector<1x1xf32> to vector<2x8xf32>
    %223 = arith.mulf %192, %222 : vector<2x8xf32>
    %224 = vector.broadcast %221 : vector<1x1xf32> to vector<2x8xf32>
    %225 = arith.addf %223, %224 : vector<2x8xf32>
    %cst_83 = arith.constant 0.000000e+00 : f32
    %226 = vector.broadcast %cst_83 : f32 to vector<2x8xf32>
    %227 = arith.maximumf %225, %226 : vector<2x8xf32>
    %c0_84 = arith.constant 0 : index
    %c0_85 = arith.constant 0 : index
    %228 = vector.load %arg9[%c0_84, %c0_85] : memref<1x8xf32, #tpu.memory_space<vmem>>, vector<1x8xf32>
    %229 = vector.broadcast %228 : vector<1x8xf32> to vector<2x8xf32>
    %230 = arith.mulf %227, %229 : vector<2x8xf32>
    %cst_86 = arith.constant dense<0.000000e+00> : vector<2xf32>
    %231 = vector.multi_reduction <add>, %230, %cst_86 [1] : vector<2x8xf32> to vector<2xf32>
    %232 = vector.shape_cast %231 : vector<2xf32> to vector<2x1xf32>
    %c2 = arith.constant 2 : index
    %233 = memref.load %arg10[%c2] : memref<3xf32, #tpu.memory_space<smem>>
    %234 = vector.broadcast %233 : f32 to vector<2x1xf32>
    %235 = arith.addf %232, %234 : vector<2x1xf32>
    %cst_87 = arith.constant 0.000000e+00 : f32
    %236 = vector.broadcast %cst_87 : f32 to vector<2x1xf32>
    %237 = arith.subf %236, %235 : vector<2x1xf32>
    %238 = math.exp %237 : vector<2x1xf32>
    %cst_88 = arith.constant 1.000000e+00 : f32
    %239 = vector.broadcast %cst_88 : f32 to vector<2x1xf32>
    %240 = arith.addf %239, %238 : vector<2x1xf32>
    %cst_89 = arith.constant 1.000000e+00 : f32
    %241 = vector.broadcast %cst_89 : f32 to vector<2x1xf32>
    %242 = arith.divf %241, %240 : vector<2x1xf32>
    %c0_90 = arith.constant 0 : index
    %c0_91 = arith.constant 0 : index
    %243 = vector.load %arg11[%c0_90, %c0_91] : memref<2x1xf32, #tpu.memory_space<vmem>>, vector<2x1xf32>
    tpu.vector_store %arg11[%c0_90, %c0_91], %242 {strides = array<i32>} : memref<2x1xf32, #tpu.memory_space<vmem>>, vector<2x1xf32>,
    return
  }
}

</mosaic_0001>

<llo_original>
// kernel: res_cnn_forward.1
$region0: #{res_cnn_forward.1}
  #allocation0 [shape = 'u32[]', space=smem, size = 0x4, offset = 0x4, fixed_abs, tag = 'smem constant byte address 0x4 - core index']
  #allocation1 [shape = 'u32[144,128]{1,0:T(1,128)}', space=vmem, size = 0x12000, scoped, tag = 'internal scratch']
  %s0 = inlined_call_operand.vmem [shape: s32[32,1], index: 0, kind: input, shape index: {}]
  %s1 = inlined_call_operand.vmem [shape: bf16[128,32], index: 1, kind: input, shape index: {}]
  %s2 = inlined_call_operand.hbm [shape: bf16[512,512], index: 2, kind: input, shape index: {}]
  %s3 = inlined_call_operand.hbm [shape: bf16[512,512], index: 3, kind: input, shape index: {}]
  %s4 = inlined_call_operand.hbm [shape: bf16[512,512], index: 4, kind: input, shape index: {}]
  %s5 = inlined_call_operand.vmem [shape: bf16[512,8], index: 5, kind: input, shape index: {}]
  %s6 = inlined_call_operand.vmem [shape: f32[512,4], index: 6, kind: input, shape index: {}]
  %s7 = inlined_call_operand.vmem [shape: f32[4,512], index: 7, kind: input, shape index: {}]
  %s8 = inlined_call_operand.vmem [shape: f32[6,512], index: 8, kind: input, shape index: {}]
  %s9 = inlined_call_operand.vmem [shape: f32[1,8], index: 9, kind: input, shape index: {}]
  %s10 = inlined_call_operand.vmem [shape: f32[3], index: 10, kind: input, shape index: {}]
  %s11 = inlined_call_operand.vmem [shape: f32[2,1], index: 11, kind: output, shape index: {}]
  %s12 = sld [smem:[#allocation0]]
  $region70: #{res_cnn_forward.1} parent=0
    _
  %s14 = ssub.s32 1, %s12
  %s15 = scalar_select 0, %s14, %s12
  $region1: #{res_cnn_forward.1} parent=0
    #allocation2 [shape = 'u8[524288]{0}', space=vmem, size = 0x80000, scoped, tag = 'input window, operand 2, single buffered']
    #allocation3 [shape = 's32[1]{0}', space=sflag, size = 0x4, scoped, tag = 'scoped memory for res_cnn_forward.1']
    #allocation4 [shape = 's32[1]{0}', space=sflag, size = 0x4, scoped, tag = 'scoped memory for res_cnn_forward.1']
    #allocation5 [shape = 'u8[524288]{0}', space=vmem, size = 0x80000, scoped, tag = 'input window, operand 3, single buffered']
    #allocation6 [shape = 's32[1]{0}', space=sflag, size = 0x4, scoped, tag = 'scoped memory for res_cnn_forward.1']
    #allocation7 [shape = 'u8[524288]{0}', space=vmem, size = 0x80000, scoped, tag = 'input window, operand 4, single buffered']
    #allocation8 [shape = 'u8[512]{0}', space=smem, size = 0x200, scoped, tag = 'input window, operand 10, single buffered']
    %16 = vsyncpa [#allocation3], 0
    %17 = vsyncpa [#allocation6], 0
    %18 = vsyncpa [#allocation4], 0
    // Predicated region
    $region2: #{res_cnn_forward.1} parent=1 // pred_check
      _
    $region3: #{res_cnn_forward.1} parent=1 // pred_check_branch
      %20 = sbr.rel (0) target = $region5
    $region4: #{res_cnn_forward.1} parent=1 // pred_region
      _
    $region5: #{res_cnn_forward.1} parent=1 // pred_fallthru
      _
    // Predicated region
    $region6: #{res_cnn_forward.1} parent=1 // pred_check
      _
    $region7: #{res_cnn_forward.1} parent=1 // pred_check_branch
      %22 = sbr.rel (0) target = $region9
    $region8: #{res_cnn_forward.1} parent=1 // pred_region
      _
    $region9: #{res_cnn_forward.1} parent=1 // pred_fallthru
      _
    // Predicated region
    $region10: #{res_cnn_forward.1} parent=1 // pred_check
      _
    $region11: #{res_cnn_forward.1} parent=1 // pred_check_branch
      %24 = sbr.rel (0) target = $region13
    $region12: #{res_cnn_forward.1} parent=1 // pred_region
      %s26 = ssub.s32 16384, 16384
      %27 = vsyncadd [#allocation3], %s26
      %s28 = sshll.u32 [#allocation2], 4
      %s29 = int_to_ptr.vmem [resolvable:$true] %s28
      %34 = dma.hbm_to_vmem [thread:$0]  %s2, 16384, %s29, [#allocation3], 256, 256, 16
    $region13: #{res_cnn_forward.1} parent=1 // pred_fallthru
      _
    // Predicated region
    $region14: #{res_cnn_forward.1} parent=1 // pred_check
      _
    $region15: #{res_cnn_forward.1} parent=1 // pred_check_branch
      %36 = sbr.rel (0) target = $region17
    $region16: #{res_cnn_forward.1} parent=1 // pred_region
      %s38 = ssub.s32 16384, 16384
      %39 = vsyncadd [#allocation6], %s38
      %s40 = sshll.u32 [#allocation5], 4
      %s41 = int_to_ptr.vmem [resolvable:$true] %s40
      %46 = dma.hbm_to_vmem [thread:$0]  %s3, 16384, %s41, [#allocation6], 256, 256, 16
    $region17: #{res_cnn_forward.1} parent=1 // pred_fallthru
      _
    // Predicated region
    $region18: #{res_cnn_forward.1} parent=1 // pred_check
      _
    $region19: #{res_cnn_forward.1} parent=1 // pred_check_branch
      %48 = sbr.rel (0) target = $region21
    $region20: #{res_cnn_forward.1} parent=1 // pred_region
      %s50 = ssub.s32 16384, 16384
      %51 = vsyncadd [#allocation6], %s50
      %s52 = sshll.u32 [#allocation7], 4
      %s53 = int_to_ptr.vmem [resolvable:$true] %s52
      %58 = dma.hbm_to_vmem [thread:$0]  %s4, 16384, %s53, [#allocation6], 256, 256, 16
    $region21: #{res_cnn_forward.1} parent=1 // pred_fallthru
      _
    // Predicated region
    $region22: #{res_cnn_forward.1} parent=1 // pred_check
      _
    $region23: #{res_cnn_forward.1} parent=1 // pred_check_branch
      %60 = sbr.rel (0) target = $region25
    $region24: #{res_cnn_forward.1} parent=1 // pred_region
      _
    $region25: #{res_cnn_forward.1} parent=1 // pred_fallthru
      _
    // Predicated region
    $region26: #{res_cnn_forward.1} parent=1 // pred_check
      _
    $region27: #{res_cnn_forward.1} parent=1 // pred_check_branch
      %62 = sbr.rel (0) target = $region29
    $region28: #{res_cnn_forward.1} parent=1 // pred_region
      _
    $region29: #{res_cnn_forward.1} parent=1 // pred_fallthru
      _
    // Predicated region
    $region30: #{res_cnn_forward.1} parent=1 // pred_check
      _
    $region31: #{res_cnn_forward.1} parent=1 // pred_check_branch
      %64 = sbr.rel (0) target = $region33
    $region32: #{res_cnn_forward.1} parent=1 // pred_region
      _
    $region33: #{res_cnn_forward.1} parent=1 // pred_fallthru
      _
    // Predicated region
    $region34: #{res_cnn_forward.1} parent=1 // pred_check
      _
    $region35: #{res_cnn_forward.1} parent=1 // pred_check_branch
      %66 = sbr.rel (0) target = $region37
    $region36: #{res_cnn_forward.1} parent=1 // pred_region
      _
    $region37: #{res_cnn_forward.1} parent=1 // pred_fallthru
      _
    // Predicated region
    $region38: #{res_cnn_forward.1} parent=1 // pred_check
      _
    $region39: #{res_cnn_forward.1} parent=1 // pred_check_branch
      %68 = sbr.rel (0) target = $region41
    $region40: #{res_cnn_forward.1} parent=1 // pred_region
      _
    $region41: #{res_cnn_forward.1} parent=1 // pred_fallthru
      _
    // Predicated region
    $region42: #{res_cnn_forward.1} parent=1 // pred_check
      _
    $region43: #{res_cnn_forward.1} parent=1 // pred_check_branch
      %70 = sbr.rel (0) target = $region45
    $region44: #{res_cnn_forward.1} parent=1 // pred_region
      %s72 = ssub.s32 16, 16
      %73 = vsyncadd [#allocation4], %s72
      %s75 = sshll.u32 %s10, 4
      %s76 = int_to_ptr.vmem [resolvable:$true] %s75
      %78 = dma.vmem_to_smem %s76, 16, [#allocation8], [#allocation4]
    $region45: #{res_cnn_forward.1} parent=1 // pred_fallthru
      _
    // Predicated region
    $region46: #{res_cnn_forward.1} parent=1 // pred_check
      _
    $region47: #{res_cnn_forward.1} parent=1 // pred_check_branch
      %80 = sbr.rel (0) target = $region49
    $region48: #{res_cnn_forward.1} parent=1 // pred_region
      %81 = dma.done [#allocation3], 16384
    $region49: #{res_cnn_forward.1} parent=1 // pred_fallthru
      _
    // Predicated region
    $region50: #{res_cnn_forward.1} parent=1 // pred_check
      _
    $region51: #{res_cnn_forward.1} parent=1 // pred_check_branch
      %83 = sbr.rel (0) target = $region53
    $region52: #{res_cnn_forward.1} parent=1 // pred_region
      %84 = dma.done [#allocation6], 16384
    $region53: #{res_cnn_forward.1} parent=1 // pred_fallthru
      _
    // Predicated region
    $region54: #{res_cnn_forward.1} parent=1 // pred_check
      _
    $region55: #{res_cnn_forward.1} parent=1 // pred_check_branch
      %86 = sbr.rel (0) target = $region57
    $region56: #{res_cnn_forward.1} parent=1 // pred_region
      %87 = dma.done [#allocation6], 16384
    $region57: #{res_cnn_forward.1} parent=1 // pred_fallthru
      _
    // Predicated region
    $region58: #{res_cnn_forward.1} parent=1 // pred_check
      _
    $region59: #{res_cnn_forward.1} parent=1 // pred_check_branch
      %89 = sbr.rel (0) target = $region61
    $region60: #{res_cnn_forward.1} parent=1 // pred_region
      %90 = dma.done [#allocation4], 16
    $region61: #{res_cnn_forward.1} parent=1 // pred_fallthru
      _
    %91 = sfence
    %v93 = vld [vmem:[%s6] sm:$0xff]
    %v94 = vld [vmem:[%s6 + $0x8] sm:$0xff]
    %v95 = vld [vmem:[%s6 + $0x10] sm:$0xff]
    %v96 = vld [vmem:[%s6 + $0x18] sm:$0xff]
    %v97 = vld [vmem:[%s6 + $0x20] sm:$0xff]
    %v98 = vld [vmem:[%s6 + $0x28] sm:$0xff]
    %v99 = vld [vmem:[%s6 + $0x30] sm:$0xff]
    %v100 = vld [vmem:[%s6 + $0x38] sm:$0xff]
    %v101 = vld [vmem:[%s6 + $0x40] sm:$0xff]
    %v102 = vld [vmem:[%s6 + $0x48] sm:$0xff]
    %v103 = vld [vmem:[%s6 + $0x50] sm:$0xff]
    %v104 = vld [vmem:[%s6 + $0x58] sm:$0xff]
    %v105 = vld [vmem:[%s6 + $0x60] sm:$0xff]
    %v106 = vld [vmem:[%s6 + $0x68] sm:$0xff]
    %v107 = vld [vmem:[%s6 + $0x70] sm:$0xff]
    %v108 = vld [vmem:[%s6 + $0x78] sm:$0xff]
    %v109 = vld [vmem:[%s6 + $0x80] sm:$0xff]
    %v110 = vld [vmem:[%s6 + $0x88] sm:$0xff]
    %v111 = vld [vmem:[%s6 + $0x90] sm:$0xff]
    %v112 = vld [vmem:[%s6 + $0x98] sm:$0xff]
    %v113 = vld [vmem:[%s6 + $0xa0] sm:$0xff]
    %v114 = vld [vmem:[%s6 + $0xa8] sm:$0xff]
    %v115 = vld [vmem:[%s6 + $0xb0] sm:$0xff]
    %v116 = vld [vmem:[%s6 + $0xb8] sm:$0xff]
    %v117 = vld [vmem:[%s6 + $0xc0] sm:$0xff]
    %v118 = vld [vmem:[%s6 + $0xc8] sm:$0xff]
    %v119 = vld [vmem:[%s6 + $0xd0] sm:$0xff]
    %v120 = vld [vmem:[%s6 + $0xd8] sm:$0xff]
    %v121 = vld [vmem:[%s6 + $0xe0] sm:$0xff]
    %v122 = vld [vmem:[%s6 + $0xe8] sm:$0xff]
    %v123 = vld [vmem:[%s6 + $0xf0] sm:$0xff]
    %v124 = vld [vmem:[%s6 + $0xf8] sm:$0xff]
    %v125 = vld [vmem:[%s6 + $0x100] sm:$0xff]
    %v126 = vld [vmem:[%s6 + $0x108] sm:$0xff]
    %v127 = vld [vmem:[%s6 + $0x110] sm:$0xff]
    %v128 = vld [vmem:[%s6 + $0x118] sm:$0xff]
    %v129 = vld [vmem:[%s6 + $0x120] sm:$0xff]
    %v130 = vld [vmem:[%s6 + $0x128] sm:$0xff]
    %v131 = vld [vmem:[%s6 + $0x130] sm:$0xff]
    %v132 = vld [vmem:[%s6 + $0x138] sm:$0xff]
    %v133 = vld [vmem:[%s6 + $0x140] sm:$0xff]
    %v134 = vld [vmem:[%s6 + $0x148] sm:$0xff]
    %v135 = vld [vmem:[%s6 + $0x150] sm:$0xff]
    %v136 = vld [vmem:[%s6 + $0x158] sm:$0xff]
    %v137 = vld [vmem:[%s6 + $0x160] sm:$0xff]
    %v138 = vld [vmem:[%s6 + $0x168] sm:$0xff]
    %v139 = vld [vmem:[%s6 + $0x170] sm:$0xff]
    %v140 = vld [vmem:[%s6 + $0x178] sm:$0xff]
    %v141 = vld [vmem:[%s6 + $0x180] sm:$0xff]
    %v142 = vld [vmem:[%s6 + $0x188] sm:$0xff]
    %v143 = vld [vmem:[%s6 + $0x190] sm:$0xff]
    %v144 = vld [vmem:[%s6 + $0x198] sm:$0xff]
    %v145 = vld [vmem:[%s6 + $0x1a0] sm:$0xff]
    %v146 = vld [vmem:[%s6 + $0x1a8] sm:$0xff]
    %v147 = vld [vmem:[%s6 + $0x1b0] sm:$0xff]
    %v148 = vld [vmem:[%s6 + $0x1b8] sm:$0xff]
    %v149 = vld [vmem:[%s6 + $0x1c0] sm:$0xff]
    %v150 = vld [vmem:[%s6 + $0x1c8] sm:$0xff]
    %v151 = vld [vmem:[%s6 + $0x1d0] sm:$0xff]
    %v152 = vld [vmem:[%s6 + $0x1d8] sm:$0xff]
    %v153 = vld [vmem:[%s6 + $0x1e0] sm:$0xff]
    %v154 = vld [vmem:[%s6 + $0x1e8] sm:$0xff]
    %v155 = vld [vmem:[%s6 + $0x1f0] sm:$0xff]
    %v156 = vld [vmem:[%s6 + $0x1f8] sm:$0xff]
    %v157 = vld [vmem:[%s7] sm:$0xff]
    %v158 = vld [vmem:[%s7 + $0x8] sm:$0xff]
    %v159 = vld [vmem:[%s8] sm:$0x3f]
    %v160 = vld [vmem:[%s8 + $0x8] sm:$0x3f]
    %v161 = vld [vmem:[%s8 + $0x10] sm:$0x3f]
    %v162 = vld [vmem:[%s8 + $0x18] sm:$0x3f]
    %v163 = vld [vmem:[%s0] sm:$0xff]
    %v164 = vld [vmem:[%s0 + $0x8] sm:$0xff]
    %v165 = vld [vmem:[%s0 + $0x10] sm:$0xff]
    %v166 = vld [vmem:[%s0 + $0x18] sm:$0xff]
    %v167 = vlaneseq
    %v168 = vand.u32 %v167, 127
    %169 = vset.pattern.permute.xlu0 0
    %170 = vperm.xlu0 %169, %v163
    %v171 = vpop.permute.xlu0 %170
    %172 = vset.pattern.permute.xlu0 0
    %173 = vperm.xlu0 %172, %v164
    %v174 = vpop.permute.xlu0 %173
    %175 = vset.pattern.permute.xlu0 0
    %176 = vperm.xlu0 %175, %v165
    %v177 = vpop.permute.xlu0 %176
    %178 = vset.pattern.permute.xlu0 0
    %179 = vperm.xlu0 %178, %v166
    %v180 = vpop.permute.xlu0 %179
    %vm181 = vcmp.eq.s32.totalorder %v168, %v171
    %vm182 = vcmp.eq.s32.totalorder %v168, %v174
    %vm183 = vcmp.eq.s32.totalorder %v168, %v177
    %vm184 = vcmp.eq.s32.totalorder %v168, %v180
    %v185 = vsel %vm181, 1, 0
    %v186 = vsel %vm182, 1, 0
    %v187 = vsel %vm183, 1, 0
    %v188 = vsel %vm184, 1, 0
    %v189 = vcvt.s32.f32 %v185
    %v190 = vcvt.s32.f32 %v186
    %v191 = vcvt.s32.f32 %v187
    %v192 = vcvt.s32.f32 %v188
    %v193 = vpack.c.bf16 %v190, %v189
    %v194 = vpack.c.bf16 %v192, %v191
    %v195 = vld [vmem:[%s1] sm:$0xf]
    %v196 = vld [vmem:[%s1 + $0x4] sm:$0xf]
    %v197 = vld [vmem:[%s1 + $0x8] sm:$0xf]
    %v198 = vld [vmem:[%s1 + $0xc] sm:$0xf]
    %v199 = vld [vmem:[%s1 + $0x10] sm:$0xf]
    %v200 = vld [vmem:[%s1 + $0x14] sm:$0xf]
    %v201 = vld [vmem:[%s1 + $0x18] sm:$0xf]
    %v202 = vld [vmem:[%s1 + $0x1c] sm:$0xf]
    %v203 = vld [vmem:[%s1 + $0x20] sm:$0xf]
    %v204 = vld [vmem:[%s1 + $0x24] sm:$0xf]
    %v205 = vld [vmem:[%s1 + $0x28] sm:$0xf]
    %v206 = vld [vmem:[%s1 + $0x2c] sm:$0xf]
    %v207 = vld [vmem:[%s1 + $0x30] sm:$0xf]
    %v208 = vld [vmem:[%s1 + $0x34] sm:$0xf]
    %v209 = vld [vmem:[%s1 + $0x38] sm:$0xf]
    %v210 = vld [vmem:[%s1 + $0x3c] sm:$0xf]
    %v227 = vunpack.c.l.b16 %v195
    %v228 = vunpack.c.l.b16 %v196
    %v229 = vunpack.c.l.b16 %v197
    %v230 = vunpack.c.l.b16 %v198
    %v231 = vunpack.c.l.b16 %v199
    %v232 = vunpack.c.l.b16 %v200
    %v233 = vunpack.c.l.b16 %v201
    %v234 = vunpack.c.l.b16 %v202
    %v235 = vunpack.c.l.b16 %v203
    %v236 = vunpack.c.l.b16 %v204
    %v237 = vunpack.c.l.b16 %v205
    %v238 = vunpack.c.l.b16 %v206
    %v239 = vunpack.c.l.b16 %v207
    %v240 = vunpack.c.l.b16 %v208
    %v241 = vunpack.c.l.b16 %v209
    %v242 = vunpack.c.l.b16 %v210
    %v243 = vpack.c.b16 %v228, %v227
    %v244 = vpack.c.b16 %v230, %v229
    %v245 = vpack.c.b16 %v232, %v231
    %v246 = vpack.c.b16 %v234, %v233
    %v247 = vpack.c.b16 %v236, %v235
    %v248 = vpack.c.b16 %v238, %v237
    %v249 = vpack.c.b16 %v240, %v239
    %v250 = vpack.c.b16 %v242, %v241
    %259 = vmatprep.subr.bf16.mxu0 0
    %260 = vmatpush1.bf16.msra.mxu0 %v243
    %261 = vmatprep.subr.bf16.mxu0 0
    %262 = vmatpush1.bf16.msra.mxu0 %v244
    %263 = vmatprep.subr.bf16.mxu0 0
    %264 = vmatpush1.bf16.msra.mxu0 %v245
    %265 = vmatprep.subr.bf16.mxu0 0
    %266 = vmatpush1.bf16.msra.mxu0 %v246
    %267 = vmatprep.subr.bf16.mxu0 0
    %268 = vmatpush1.bf16.msra.mxu0 %v247
    %269 = vmatprep.subr.bf16.mxu0 0
    %270 = vmatpush1.bf16.msra.mxu0 %v248
    %271 = vmatprep.subr.bf16.mxu0 0
    %272 = vmatpush1.bf16.msra.mxu0 %v249
    %273 = vmatprep.subr.bf16.mxu0 0
    %274 = vmatpush1.bf16.msra.mxu0 %v250
    %275 = vmatprep.subr.bf16.mxu0 0
    %276 = vmatpush1.bf16.msra.mxu0 0
    %277 = vmatprep.subr.bf16.mxu0 0
    %278 = vmatpush1.bf16.msra.mxu0 0
    %279 = vmatprep.subr.bf16.mxu0 0
    %280 = vmatpush1.bf16.msra.mxu0 0
    %281 = vmatprep.subr.bf16.mxu0 0
    %282 = vmatpush1.bf16.msra.mxu0 0
    %283 = vmatprep.subr.bf16.mxu0 0
    %284 = vmatpush1.bf16.msra.mxu0 0
    %285 = vmatprep.subr.bf16.mxu0 0
    %286 = vmatpush1.bf16.msra.mxu0 0
    %287 = vmatprep.subr.bf16.mxu0 0
    %288 = vmatpush1.bf16.msra.mxu0 0
    %289 = vmatprep.subr.bf16.mxu0 0
    %290 = vmatpush1.bf16.msra.mxu0 0
    %291 = vmatprep.mubr.bf16.mxu0 0
    %292 = vmatmul.mubr.bf16.gmra.mrb[0].mxu0 %v193
    %v293 = vpop.f32.mrb[0].mxu0
    %v294 = vadd.f32 0.0, %v293
    %v295 = vpop.f32.mrb[0].mxu0
    %v296 = vpop.f32.mrb[0].mxu0
    %v297 = vadd.f32 0.0, %v296
    %v298 = vpop.f32.mrb[0].mxu0
    %299 = vmatprep.mubr.bf16.mxu0 0
    %300 = vmatmul.mubr.bf16.gmra.mrb[0].mxu0 %v194
    %v301 = vpop.f32.mrb[0].mxu0
    %v302 = vadd.f32 0.0, %v301
    %v303 = vpop.f32.mrb[0].mxu0
    %v304 = vpop.f32.mrb[0].mxu0
    %v305 = vadd.f32 0.0, %v304
    %v306 = vpop.f32.mrb[0].mxu0
    %307 = vdwg.mxu0
    %v308 = vpack.c.bf16 %v294, %v294
    %v309 = vld [vmem:[#allocation2] sm:$0xff]
    %v310 = vld [vmem:[#allocation2 + $0x8] sm:$0xff]
    %v311 = vld [vmem:[#allocation2 + $0x10] sm:$0xff]
    %v312 = vld [vmem:[#allocation2 + $0x18] sm:$0xff]
    %v313 = vld [vmem:[#allocation2 + $0x20] sm:$0xff]
    %v314 = vld [vmem:[#allocation2 + $0x28] sm:$0xff]
    %v315 = vld [vmem:[#allocation2 + $0x30] sm:$0xff]
    %v316 = vld [vmem:[#allocation2 + $0x38] sm:$0xff]
    %v317 = vld [vmem:[#allocation2 + $0x40] sm:$0xff]
    %v318 = vld [vmem:[#allocation2 + $0x48] sm:$0xff]
    %v319 = vld [vmem:[#allocation2 + $0x50] sm:$0xff]
    %v320 = vld [vmem:[#allocation2 + $0x58] sm:$0xff]
    %v321 = vld [vmem:[#allocation2 + $0x60] sm:$0xff]
    %v322 = vld [vmem:[#allocation2 + $0x68] sm:$0xff]
    %v323 = vld [vmem:[#allocation2 + $0x70] sm:$0xff]
    %v324 = vld [vmem:[#allocation2 + $0x78] sm:$0xff]
    %v326 = vrot.slane %v308, 1
    %v335 = vunpack.c.l.b16 %v317
    %v336 = vunpack.c.h.b16 %v317
    %v337 = vunpack.c.l.b16 %v318
    %v338 = vunpack.c.h.b16 %v318
    %v339 = vunpack.c.l.b16 %v319
    %v340 = vunpack.c.h.b16 %v319
    %v341 = vunpack.c.l.b16 %v320
    %v342 = vunpack.c.h.b16 %v320
    %v343 = vunpack.c.l.b16 %v321
    %v344 = vunpack.c.h.b16 %v321
    %v345 = vunpack.c.l.b16 %v322
    %v346 = vunpack.c.h.b16 %v322
    %v347 = vunpack.c.l.b16 %v323
    %v348 = vunpack.c.h.b16 %v323
    %v349 = vunpack.c.l.b16 %v324
    %v350 = vunpack.c.h.b16 %v324
    %v351 = vpack.c.b16 %v339, %v335
    %v352 = vpack.c.b16 %v340, %v336
    %v353 = vpack.c.b16 %v341, %v337
    %v354 = vpack.c.b16 %v342, %v338
    %v355 = vpack.c.b16 %v347, %v343
    %v356 = vpack.c.b16 %v348, %v344
    %v357 = vpack.c.b16 %v349, %v345
    %v358 = vpack.c.b16 %v350, %v346
    %vm367 = vcmask 261120
    %v369 = vsel %vm367, %v326, 0
    %371 = vmatprep.subr.bf16.mxu0 %v352
    %372 = vmatpush1.bf16.msra.mxu0 %v351
    %373 = vmatprep.subr.bf16.mxu0 %v356
    %374 = vmatpush1.bf16.msra.mxu0 %v355
    %375 = vmatprep.subr.bf16.mxu0 0
    %376 = vmatpush1.bf16.msra.mxu0 0
    %377 = vmatprep.subr.bf16.mxu0 0
    %378 = vmatpush1.bf16.msra.mxu0 0
    %379 = vmatprep.subr.bf16.mxu0 0
    %380 = vmatpush1.bf16.msra.mxu0 0
    %381 = vmatprep.subr.bf16.mxu0 0
    %382 = vmatpush1.bf16.msra.mxu0 0
    %383 = vmatprep.subr.bf16.mxu0 0
    %384 = vmatpush1.bf16.msra.mxu0 0
    %385 = vmatprep.subr.bf16.mxu0 0
    %386 = vmatpush1.bf16.msra.mxu0 0
    %387 = vmatprep.subr.bf16.mxu0 0
    %388 = vmatpush1.bf16.msra.mxu0 0
    %389 = vmatprep.subr.bf16.mxu0 0
    %390 = vmatpush1.bf16.msra.mxu0 0
    %391 = vmatprep.subr.bf16.mxu0 0
    %392 = vmatpush1.bf16.msra.mxu0 0
    %393 = vmatprep.subr.bf16.mxu0 0
    %394 = vmatpush1.bf16.msra.mxu0 0
    %395 = vmatprep.subr.bf16.mxu0 0
    %396 = vmatpush1.bf16.msra.mxu0 0
    %397 = vmatprep.subr.bf16.mxu0 0
    %398 = vmatpush1.bf16.msra.mxu0 0
    %399 = vmatprep.subr.bf16.mxu0 0
    %400 = vmatpush1.bf16.msra.mxu0 0
    %401 = vmatprep.subr.bf16.mxu0 0
    %402 = vmatpush1.bf16.msra.mxu0 0
    %403 = vmatprep.mubr.bf16.mxu0 0
    %404 = vmatmul.mubr.bf16.gmra.mrb[0].mxu0 %v369
    %v405 = vpop.f32.mrb[0].mxu0
    %v406 = vadd.f32 0.0, %v405
    %v407 = vpop.f32.mrb[0].mxu0
    %v408 = vadd.f32 0.0, %v407
    %v409 = vpop.f32.mrb[0].mxu0
    %v410 = vpop.f32.mrb[0].mxu0
    %411 = vdwg.mxu0
    %412 = vmatprep.subr.bf16.mxu0 %v354
    %413 = vmatpush1.bf16.msra.mxu0 %v353
    %414 = vmatprep.subr.bf16.mxu0 %v358
    %415 = vmatpush1.bf16.msra.mxu0 %v357
    %416 = vmatprep.subr.bf16.mxu0 0
    %417 = vmatpush1.bf16.msra.mxu0 0
    %418 = vmatprep.subr.bf16.mxu0 0
    %419 = vmatpush1.bf16.msra.mxu0 0
    %420 = vmatprep.subr.bf16.mxu0 0
    %421 = vmatpush1.bf16.msra.mxu0 0
    %422 = vmatprep.subr.bf16.mxu0 0
    %423 = vmatpush1.bf16.msra.mxu0 0
    %424 = vmatprep.subr.bf16.mxu0 0
    %425 = vmatpush1.bf16.msra.mxu0 0
    %426 = vmatprep.subr.bf16.mxu0 0
    %427 = vmatpush1.bf16.msra.mxu0 0
    %428 = vmatprep.subr.bf16.mxu0 0
    %429 = vmatpush1.bf16.msra.mxu0 0
    %430 = vmatprep.subr.bf16.mxu0 0
    %431 = vmatpush1.bf16.msra.mxu0 0
    %432 = vmatprep.subr.bf16.mxu0 0
    %433 = vmatpush1.bf16.msra.mxu0 0
    %434 = vmatprep.subr.bf16.mxu0 0
    %435 = vmatpush1.bf16.msra.mxu0 0
    %436 = vmatprep.subr.bf16.mxu0 0
    %437 = vmatpush1.bf16.msra.mxu0 0
    %438 = vmatprep.subr.bf16.mxu0 0
    %439 = vmatpush1.bf16.msra.mxu0 0
    %440 = vmatprep.subr.bf16.mxu0 0
    %441 = vmatpush1.bf16.msra.mxu0 0
    %442 = vmatprep.subr.bf16.mxu0 0
    %443 = vmatpush1.bf16.msra.mxu0 0
    %444 = vmatprep.mubr.bf16.mxu0 0
    %445 = vmatmul.mubr.bf16.gmra.mrb[0].mxu0 %v369
    %v446 = vpop.f32.mrb[0].mxu0
    %v447 = vadd.f32 0.0, %v446
    %v448 = vpop.f32.mrb[0].mxu0
    %v449 = vadd.f32 0.0, %v448
    %v450 = vpop.f32.mrb[0].mxu0
    %v451 = vpop.f32.mrb[0].mxu0
    %452 = vdwg.mxu0
    %v461 = vunpack.c.l.b16 %v309
    %v462 = vunpack.c.h.b16 %v309
    %v463 = vunpack.c.l.b16 %v310
    %v464 = vunpack.c.h.b16 %v310
    %v465 = vunpack.c.l.b16 %v311
    %v466 = vunpack.c.h.b16 %v311
    %v467 = vunpack.c.l.b16 %v312
    %v468 = vunpack.c.h.b16 %v312
    %v469 = vunpack.c.l.b16 %v313
    %v470 = vunpack.c.h.b16 %v313
    %v471 = vunpack.c.l.b16 %v314
    %v472 = vunpack.c.h.b16 %v314
    %v473 = vunpack.c.l.b16 %v315
    %v474 = vunpack.c.h.b16 %v315
    %v475 = vunpack.c.l.b16 %v316
    %v476 = vunpack.c.h.b16 %v316
    %v477 = vpack.c.b16 %v465, %v461
    %v478 = vpack.c.b16 %v466, %v462
    %v479 = vpack.c.b16 %v467, %v463
    %v480 = vpack.c.b16 %v468, %v464
    %v481 = vpack.c.b16 %v473, %v469
    %v482 = vpack.c.b16 %v474, %v470
    %v483 = vpack.c.b16 %v475, %v471
    %v484 = vpack.c.b16 %v476, %v472
    %v494 = vsel %vm367, %v308, 0
    %496 = vmatprep.subr.bf16.mxu0 %v478
    %497 = vmatpush1.bf16.msra.mxu0 %v477
    %498 = vmatprep.subr.bf16.mxu0 %v482
    %499 = vmatpush1.bf16.msra.mxu0 %v481
    %500 = vmatprep.subr.bf16.mxu0 0
    %501 = vmatpush1.bf16.msra.mxu0 0
    %502 = vmatprep.subr.bf16.mxu0 0
    %503 = vmatpush1.bf16.msra.mxu0 0
    %504 = vmatprep.subr.bf16.mxu0 0
    %505 = vmatpush1.bf16.msra.mxu0 0
    %506 = vmatprep.subr.bf16.mxu0 0
    %507 = vmatpush1.bf16.msra.mxu0 0
    %508 = vmatprep.subr.bf16.mxu0 0
    %509 = vmatpush1.bf16.msra.mxu0 0
    %510 = vmatprep.subr.bf16.mxu0 0
    %511 = vmatpush1.bf16.msra.mxu0 0
    %512 = vmatprep.subr.bf16.mxu0 0
    %513 = vmatpush1.bf16.msra.mxu0 0
    %514 = vmatprep.subr.bf16.mxu0 0
    %515 = vmatpush1.bf16.msra.mxu0 0
    %516 = vmatprep.subr.bf16.mxu0 0
    %517 = vmatpush1.bf16.msra.mxu0 0
    %518 = vmatprep.subr.bf16.mxu0 0
    %519 = vmatpush1.bf16.msra.mxu0 0
    %520 = vmatprep.subr.bf16.mxu0 0
    %521 = vmatpush1.bf16.msra.mxu0 0
    %522 = vmatprep.subr.bf16.mxu0 0
    %523 = vmatpush1.bf16.msra.mxu0 0
    %524 = vmatprep.subr.bf16.mxu0 0
    %525 = vmatpush1.bf16.msra.mxu0 0
    %526 = vmatprep.subr.bf16.mxu0 0
    %527 = vmatpush1.bf16.msra.mxu0 0
    %528 = vmatprep.mubr.bf16.mxu0 0
    %529 = vmatmul.mubr.bf16.gmra.mrb[0].mxu0 %v494
    %v530 = vpop.f32.mrb[0].mxu0
    %v531 = vadd.f32 %v406, %v530
    %v532 = vpop.f32.mrb[0].mxu0
    %v533 = vadd.f32 %v408, %v532
    %v534 = vpop.f32.mrb[0].mxu0
    %v535 = vpop.f32.mrb[0].mxu0
    %536 = vdwg.mxu0
    %537 = vmatprep.subr.bf16.mxu0 %v480
    %538 = vmatpush1.bf16.msra.mxu0 %v479
    %539 = vmatprep.subr.bf16.mxu0 %v484
    %540 = vmatpush1.bf16.msra.mxu0 %v483
    %541 = vmatprep.subr.bf16.mxu0 0
    %542 = vmatpush1.bf16.msra.mxu0 0
    %543 = vmatprep.subr.bf16.mxu0 0
    %544 = vmatpush1.bf16.msra.mxu0 0
    %545 = vmatprep.subr.bf16.mxu0 0
    %546 = vmatpush1.bf16.msra.mxu0 0
    %547 = vmatprep.subr.bf16.mxu0 0
    %548 = vmatpush1.bf16.msra.mxu0 0
    %549 = vmatprep.subr.bf16.mxu0 0
    %550 = vmatpush1.bf16.msra.mxu0 0
    %551 = vmatprep.subr.bf16.mxu0 0
    %552 = vmatpush1.bf16.msra.mxu0 0
    %553 = vmatprep.subr.bf16.mxu0 0
    %554 = vmatpush1.bf16.msra.mxu0 0
    %555 = vmatprep.subr.bf16.mxu0 0
    %556 = vmatpush1.bf16.msra.mxu0 0
    %557 = vmatprep.subr.bf16.mxu0 0
    %558 = vmatpush1.bf16.msra.mxu0 0
    %559 = vmatprep.subr.bf16.mxu0 0
    %560 = vmatpush1.bf16.msra.mxu0 0
    %561 = vmatprep.subr.bf16.mxu0 0
    %562 = vmatpush1.bf16.msra.mxu0 0
    %563 = vmatprep.subr.bf16.mxu0 0
    %564 = vmatpush1.bf16.msra.mxu0 0
    %565 = vmatprep.subr.bf16.mxu0 0
    %566 = vmatpush1.bf16.msra.mxu0 0
    %567 = vmatprep.subr.bf16.mxu0 0
    %568 = vmatpush1.bf16.msra.mxu0 0
    %569 = vmatprep.mubr.bf16.mxu0 0
    %570 = vmatmul.mubr.bf16.gmra.mrb[0].mxu0 %v494
    %v571 = vpop.f32.mrb[0].mxu0
    %v572 = vadd.f32 %v447, %v571
    %v573 = vpop.f32.mrb[0].mxu0
    %v574 = vadd.f32 %v449, %v573
    %v575 = vpop.f32.mrb[0].mxu0
    %v576 = vpop.f32.mrb[0].mxu0
    %577 = vdwg.mxu0
    %v578 = vld [vmem:[#allocation2 + $0x80] sm:$0xff]
    %v579 = vld [vmem:[#allocation2 + $0x88] sm:$0xff]
    %v580 = vld [vmem:[#allocation2 + $0x90] sm:$0xff]
    %v581 = vld [vmem:[#allocation2 + $0x98] sm:$0xff]
    %v582 = vld [vmem:[#allocation2 + $0xa0] sm:$0xff]
    %v583 = vld [vmem:[#allocation2 + $0xa8] sm:$0xff]
    %v584 = vld [vmem:[#allocation2 + $0xb0] sm:$0xff]
    %v585 = vld [vmem:[#allocation2 + $0xb8] sm:$0xff]
    %v586 = vrot.slane %v308, 2
    %v595 = vunpack.c.l.b16 %v578
    %v596 = vunpack.c.h.b16 %v578
    %v597 = vunpack.c.l.b16 %v579
    %v598 = vunpack.c.h.b16 %v579
    %v599 = vunpack.c.l.b16 %v580
    %v600 = vunpack.c.h.b16 %v580
    %v601 = vunpack.c.l.b16 %v581
    %v602 = vunpack.c.h.b16 %v581
    %v603 = vunpack.c.l.b16 %v582
    %v604 = vunpack.c.h.b16 %v582
    %v605 = vunpack.c.l.b16 %v583
    %v606 = vunpack.c.h.b16 %v583
    %v607 = vunpack.c.l.b16 %v584
    %v608 = vunpack.c.h.b16 %v584
    %v609 = vunpack.c.l.b16 %v585
    %v610 = vunpack.c.h.b16 %v585
    %v611 = vpack.c.b16 %v599, %v595
    %v612 = vpack.c.b16 %v600, %v596
    %v613 = vpack.c.b16 %v601, %v597
    %v614 = vpack.c.b16 %v602, %v598
    %v615 = vpack.c.b16 %v607, %v603
    %v616 = vpack.c.b16 %v608, %v604
    %v617 = vpack.c.b16 %v609, %v605
    %v618 = vpack.c.b16 %v610, %v606
    %v628 = vsel %vm367, %v586, 0
    %630 = vmatprep.subr.bf16.mxu0 %v612
    %631 = vmatpush1.bf16.msra.mxu0 %v611
    %632 = vmatprep.subr.bf16.mxu0 %v616
    %633 = vmatpush1.bf16.msra.mxu0 %v615
    %634 = vmatprep.subr.bf16.mxu0 0
    %635 = vmatpush1.bf16.msra.mxu0 0
    %636 = vmatprep.subr.bf16.mxu0 0
    %637 = vmatpush1.bf16.msra.mxu0 0
    %638 = vmatprep.subr.bf16.mxu0 0
    %639 = vmatpush1.bf16.msra.mxu0 0
    %640 = vmatprep.subr.bf16.mxu0 0
    %641 = vmatpush1.bf16.msra.mxu0 0
    %642 = vmatprep.subr.bf16.mxu0 0
    %643 = vmatpush1.bf16.msra.mxu0 0
    %644 = vmatprep.subr.bf16.mxu0 0
    %645 = vmatpush1.bf16.msra.mxu0 0
    %646 = vmatprep.subr.bf16.mxu0 0
    %647 = vmatpush1.bf16.msra.mxu0 0
    %648 = vmatprep.subr.bf16.mxu0 0
    %649 = vmatpush1.bf16.msra.mxu0 0
    %650 = vmatprep.subr.bf16.mxu0 0
    %651 = vmatpush1.bf16.msra.mxu0 0
    %652 = vmatprep.subr.bf16.mxu0 0
    %653 = vmatpush1.bf16.msra.mxu0 0
    %654 = vmatprep.subr.bf16.mxu0 0
    %655 = vmatpush1.bf16.msra.mxu0 0
    %656 = vmatprep.subr.bf16.mxu0 0
    %657 = vmatpush1.bf16.msra.mxu0 0
    %658 = vmatprep.subr.bf16.mxu0 0
    %659 = vmatpush1.bf16.msra.mxu0 0
    %660 = vmatprep.subr.bf16.mxu0 0
    %661 = vmatpush1.bf16.msra.mxu0 0
    %662 = vmatprep.mubr.bf16.mxu0 0
    %663 = vmatmul.mubr.bf16.gmra.mrb[0].mxu0 %v628
    %v664 = vpop.f32.mrb[0].mxu0
    %v665 = vadd.f32 0.0, %v664
    %v666 = vpop.f32.mrb[0].mxu0
    %v667 = vadd.f32 0.0, %v666
    %v668 = vpop.f32.mrb[0].mxu0
    %v669 = vpop.f32.mrb[0].mxu0
    %670 = vdwg.mxu0
    %671 = vmatprep.subr.bf16.mxu0 %v614
    %672 = vmatpush1.bf16.msra.mxu0 %v613
    %673 = vmatprep.subr.bf16.mxu0 %v618
    %674 = vmatpush1.bf16.msra.mxu0 %v617
    %675 = vmatprep.subr.bf16.mxu0 0
    %676 = vmatpush1.bf16.msra.mxu0 0
    %677 = vmatprep.subr.bf16.mxu0 0
    %678 = vmatpush1.bf16.msra.mxu0 0
    %679 = vmatprep.subr.bf16.mxu0 0
    %680 = vmatpush1.bf16.msra.mxu0 0
    %681 = vmatprep.subr.bf16.mxu0 0
    %682 = vmatpush1.bf16.msra.mxu0 0
    %683 = vmatprep.subr.bf16.mxu0 0
    %684 = vmatpush1.bf16.msra.mxu0 0
    %685 = vmatprep.subr.bf16.mxu0 0
    %686 = vmatpush1.bf16.msra.mxu0 0
    %687 = vmatprep.subr.bf16.mxu0 0
    %688 = vmatpush1.bf16.msra.mxu0 0
    %689 = vmatprep.subr.bf16.mxu0 0
    %690 = vmatpush1.bf16.msra.mxu0 0
    %691 = vmatprep.subr.bf16.mxu0 0
    %692 = vmatpush1.bf16.msra.mxu0 0
    %693 = vmatprep.subr.bf16.mxu0 0
    %694 = vmatpush1.bf16.msra.mxu0 0
    %695 = vmatprep.subr.bf16.mxu0 0
    %696 = vmatpush1.bf16.msra.mxu0 0
    %697 = vmatprep.subr.bf16.mxu0 0
    %698 = vmatpush1.bf16.msra.mxu0 0
    %699 = vmatprep.subr.bf16.mxu0 0
    %700 = vmatpush1.bf16.msra.mxu0 0
    %701 = vmatprep.subr.bf16.mxu0 0
    %702 = vmatpush1.bf16.msra.mxu0 0
    %703 = vmatprep.mubr.bf16.mxu0 0
    %704 = vmatmul.mubr.bf16.gmra.mrb[0].mxu0 %v628
    %v705 = vpop.f32.mrb[0].mxu0
    %v706 = vadd.f32 0.0, %v705
    %v707 = vpop.f32.mrb[0].mxu0
    %v708 = vadd.f32 0.0, %v707
    %v709 = vpop.f32.mrb[0].mxu0
    %v710 = vpop.f32.mrb[0].mxu0
    %711 = vdwg.mxu0
    %v712 = vadd.f32 %v531, %v665
    %v713 = vadd.f32 %v533, %v667
    %v714 = vadd.f32 %v572, %v706
    %v715 = vadd.f32 %v574, %v708
    %v716 = vld [vmem:[#allocation2 + $0xc0] sm:$0xff]
    %v717 = vld [vmem:[#allocation2 + $0xc8] sm:$0xff]
    %v718 = vld [vmem:[#allocation2 + $0xd0] sm:$0xff]
    %v719 = vld [vmem:[#allocation2 + $0xd8] sm:$0xff]
    %v720 = vld [vmem:[#allocation2 + $0xe0] sm:$0xff]
    %v721 = vld [vmem:[#allocation2 + $0xe8] sm:$0xff]
    %v722 = vld [vmem:[#allocation2 + $0xf0] sm:$0xff]
    %v723 = vld [vmem:[#allocation2 + $0xf8] sm:$0xff]
    %v724 = vrot.slane %v308, 3
    %v733 = vunpack.c.l.b16 %v716
    %v734 = vunpack.c.h.b16 %v716
    %v735 = vunpack.c.l.b16 %v717
    %v736 = vunpack.c.h.b16 %v717
    %v737 = vunpack.c.l.b16 %v718
    %v738 = vunpack.c.h.b16 %v718
    %v739 = vunpack.c.l.b16 %v719
    %v740 = vunpack.c.h.b16 %v719
    %v741 = vunpack.c.l.b16 %v720
    %v742 = vunpack.c.h.b16 %v720
    %v743 = vunpack.c.l.b16 %v721
    %v744 = vunpack.c.h.b16 %v721
    %v745 = vunpack.c.l.b16 %v722
    %v746 = vunpack.c.h.b16 %v722
    %v747 = vunpack.c.l.b16 %v723
    %v748 = vunpack.c.h.b16 %v723
    %v749 = vpack.c.b16 %v737, %v733
    %v750 = vpack.c.b16 %v738, %v734
    %v751 = vpack.c.b16 %v739, %v735
    %v752 = vpack.c.b16 %v740, %v736
    %v753 = vpack.c.b16 %v745, %v741
    %v754 = vpack.c.b16 %v746, %v742
    %v755 = vpack.c.b16 %v747, %v743
    %v756 = vpack.c.b16 %v748, %v744
    %v766 = vsel %vm367, %v724, 0
    %768 = vmatprep.subr.bf16.mxu0 %v750
    %769 = vmatpush1.bf16.msra.mxu0 %v749
    %770 = vmatprep.subr.bf16.mxu0 %v754
    %771 = vmatpush1.bf16.msra.mxu0 %v753
    %772 = vmatprep.subr.bf16.mxu0 0
    %773 = vmatpush1.bf16.msra.mxu0 0
    %774 = vmatprep.subr.bf16.mxu0 0
    %775 = vmatpush1.bf16.msra.mxu0 0
    %776 = vmatprep.subr.bf16.mxu0 0
    %777 = vmatpush1.bf16.msra.mxu0 0
    %778 = vmatprep.subr.bf16.mxu0 0
    %779 = vmatpush1.bf16.msra.mxu0 0
    %780 = vmatprep.subr.bf16.mxu0 0
    %781 = vmatpush1.bf16.msra.mxu0 0
    %782 = vmatprep.subr.bf16.mxu0 0
    %783 = vmatpush1.bf16.msra.mxu0 0
    %784 = vmatprep.subr.bf16.mxu0 0
    %785 = vmatpush1.bf16.msra.mxu0 0
    %786 = vmatprep.subr.bf16.mxu0 0
    %787 = vmatpush1.bf16.msra.mxu0 0
    %788 = vmatprep.subr.bf16.mxu0 0
    %789 = vmatpush1.bf16.msra.mxu0 0
    %790 = vmatprep.subr.bf16.mxu0 0
    %791 = vmatpush1.bf16.msra.mxu0 0
    %792 = vmatprep.subr.bf16.mxu0 0
    %793 = vmatpush1.bf16.msra.mxu0 0
    %794 = vmatprep.subr.bf16.mxu0 0
    %795 = vmatpush1.bf16.msra.mxu0 0
    %796 = vmatprep.subr.bf16.mxu0 0
    %797 = vmatpush1.bf16.msra.mxu0 0
    %798 = vmatprep.subr.bf16.mxu0 0
    %799 = vmatpush1.bf16.msra.mxu0 0
    %800 = vmatprep.mubr.bf16.mxu0 0
    %801 = vmatmul.mubr.bf16.gmra.mrb[0].mxu0 %v766
    %v802 = vpop.f32.mrb[0].mxu0
    %v803 = vadd.f32 0.0, %v802
    %v804 = vpop.f32.mrb[0].mxu0
    %v805 = vadd.f32 0.0, %v804
    %v806 = vpop.f32.mrb[0].mxu0
    %v807 = vpop.f32.mrb[0].mxu0
    %808 = vdwg.mxu0
    %809 = vmatprep.subr.bf16.mxu0 %v752
    %810 = vmatpush1.bf16.msra.mxu0 %v751
    %811 = vmatprep.subr.bf16.mxu0 %v756
    %812 = vmatpush1.bf16.msra.mxu0 %v755
    %813 = vmatprep.subr.bf16.mxu0 0
    %814 = vmatpush1.bf16.msra.mxu0 0
    %815 = vmatprep.subr.bf16.mxu0 0
    %816 = vmatpush1.bf16.msra.mxu0 0
    %817 = vmatprep.subr.bf16.mxu0 0
    %818 = vmatpush1.bf16.msra.mxu0 0
    %819 = vmatprep.subr.bf16.mxu0 0
    %820 = vmatpush1.bf16.msra.mxu0 0
    %821 = vmatprep.subr.bf16.mxu0 0
    %822 = vmatpush1.bf16.msra.mxu0 0
    %823 = vmatprep.subr.bf16.mxu0 0
    %824 = vmatpush1.bf16.msra.mxu0 0
    %825 = vmatprep.subr.bf16.mxu0 0
    %826 = vmatpush1.bf16.msra.mxu0 0
    %827 = vmatprep.subr.bf16.mxu0 0
    %828 = vmatpush1.bf16.msra.mxu0 0
    %829 = vmatprep.subr.bf16.mxu0 0
    %830 = vmatpush1.bf16.msra.mxu0 0
    %831 = vmatprep.subr.bf16.mxu0 0
    %832 = vmatpush1.bf16.msra.mxu0 0
    %833 = vmatprep.subr.bf16.mxu0 0
    %834 = vmatpush1.bf16.msra.mxu0 0
    %835 = vmatprep.subr.bf16.mxu0 0
    %836 = vmatpush1.bf16.msra.mxu0 0
    %837 = vmatprep.subr.bf16.mxu0 0
    %838 = vmatpush1.bf16.msra.mxu0 0
    %839 = vmatprep.subr.bf16.mxu0 0
    %840 = vmatpush1.bf16.msra.mxu0 0
    %841 = vmatprep.mubr.bf16.mxu0 0
    %842 = vmatmul.mubr.bf16.gmra.mrb[0].mxu0 %v766
    %v843 = vpop.f32.mrb[0].mxu0
    %v844 = vadd.f32 0.0, %v843
    %v845 = vpop.f32.mrb[0].mxu0
    %v846 = vadd.f32 0.0, %v845
    %v847 = vpop.f32.mrb[0].mxu0
    %v848 = vpop.f32.mrb[0].mxu0
    %849 = vdwg.mxu0
    %v850 = vadd.f32 %v712, %v803
    %v851 = vadd.f32 %v713, %v805
    %v852 = vadd.f32 %v714, %v844
    %v853 = vadd.f32 %v715, %v846
    %v854 = vpack.c.bf16 %v297, %v297
    %v855 = vld [vmem:[#allocation2 + $0x100] sm:$0xff]
    %v856 = vld [vmem:[#allocation2 + $0x108] sm:$0xff]
    %v857 = vld [vmem:[#allocation2 + $0x110] sm:$0xff]
    %v858 = vld [vmem:[#allocation2 + $0x118] sm:$0xff]
    %v859 = vld [vmem:[#allocation2 + $0x120] sm:$0xff]
    %v860 = vld [vmem:[#allocation2 + $0x128] sm:$0xff]
    %v861 = vld [vmem:[#allocation2 + $0x130] sm:$0xff]
    %v862 = vld [vmem:[#allocation2 + $0x138] sm:$0xff]
    %v871 = vunpack.c.l.b16 %v855
    %v872 = vunpack.c.h.b16 %v855
    %v873 = vunpack.c.l.b16 %v856
    %v874 = vunpack.c.h.b16 %v856
    %v875 = vunpack.c.l.b16 %v857
    %v876 = vunpack.c.h.b16 %v857
    %v877 = vunpack.c.l.b16 %v858
    %v878 = vunpack.c.h.b16 %v858
    %v879 = vunpack.c.l.b16 %v859
    %v880 = vunpack.c.h.b16 %v859
    %v881 = vunpack.c.l.b16 %v860
    %v882 = vunpack.c.h.b16 %v860
    %v883 = vunpack.c.l.b16 %v861
    %v884 = vunpack.c.h.b16 %v861
    %v885 = vunpack.c.l.b16 %v862
    %v886 = vunpack.c.h.b16 %v862
    %v887 = vpack.c.b16 %v875, %v871
    %v888 = vpack.c.b16 %v876, %v872
    %v889 = vpack.c.b16 %v877, %v873
    %v890 = vpack.c.b16 %v878, %v874
    %v891 = vpack.c.b16 %v883, %v879
    %v892 = vpack.c.b16 %v884, %v880
    %v893 = vpack.c.b16 %v885, %v881
    %v894 = vpack.c.b16 %v886, %v882
    %v904 = vsel %vm367, %v854, 0
    %906 = vmatprep.subr.bf16.mxu0 %v888
    %907 = vmatpush1.bf16.msra.mxu0 %v887
    %908 = vmatprep.subr.bf16.mxu0 %v892
    %909 = vmatpush1.bf16.msra.mxu0 %v891
    %910 = vmatprep.subr.bf16.mxu0 0
    %911 = vmatpush1.bf16.msra.mxu0 0
    %912 = vmatprep.subr.bf16.mxu0 0
    %913 = vmatpush1.bf16.msra.mxu0 0
    %914 = vmatprep.subr.bf16.mxu0 0
    %915 = vmatpush1.bf16.msra.mxu0 0
    %916 = vmatprep.subr.bf16.mxu0 0
    %917 = vmatpush1.bf16.msra.mxu0 0
    %918 = vmatprep.subr.bf16.mxu0 0
    %919 = vmatpush1.bf16.msra.mxu0 0
    %920 = vmatprep.subr.bf16.mxu0 0
    %921 = vmatpush1.bf16.msra.mxu0 0
    %922 = vmatprep.subr.bf16.mxu0 0
    %923 = vmatpush1.bf16.msra.mxu0 0
    %924 = vmatprep.subr.bf16.mxu0 0
    %925 = vmatpush1.bf16.msra.mxu0 0
    %926 = vmatprep.subr.bf16.mxu0 0
    %927 = vmatpush1.bf16.msra.mxu0 0
    %928 = vmatprep.subr.bf16.mxu0 0
    %929 = vmatpush1.bf16.msra.mxu0 0
    %930 = vmatprep.subr.bf16.mxu0 0
    %931 = vmatpush1.bf16.msra.mxu0 0
    %932 = vmatprep.subr.bf16.mxu0 0
    %933 = vmatpush1.bf16.msra.mxu0 0
    %934 = vmatprep.subr.bf16.mxu0 0
    %935 = vmatpush1.bf16.msra.mxu0 0
    %936 = vmatprep.subr.bf16.mxu0 0
    %937 = vmatpush1.bf16.msra.mxu0 0
    %938 = vmatprep.mubr.bf16.mxu0 0
    %939 = vmatmul.mubr.bf16.gmra.mrb[0].mxu0 %v904
    %v940 = vpop.f32.mrb[0].mxu0
    %v941 = vadd.f32 0.0, %v940
    %v942 = vpop.f32.mrb[0].mxu0
    %v943 = vadd.f32 0.0, %v942
    %v944 = vpop.f32.mrb[0].mxu0
    %v945 = vpop.f32.mrb[0].mxu0
    %946 = vdwg.mxu0
    %947 = vmatprep.subr.bf16.mxu0 %v890
    %948 = vmatpush1.bf16.msra.mxu0 %v889
    %949 = vmatprep.subr.bf16.mxu0 %v894
    %950 = vmatpush1.bf16.msra.mxu0 %v893
    %951 = vmatprep.subr.bf16.mxu0 0
    %952 = vmatpush1.bf16.msra.mxu0 0
    %953 = vmatprep.subr.bf16.mxu0 0
    %954 = vmatpush1.bf16.msra.mxu0 0
    %955 = vmatprep.subr.bf16.mxu0 0
    %956 = vmatpush1.bf16.msra.mxu0 0
    %957 = vmatprep.subr.bf16.mxu0 0
    %958 = vmatpush1.bf16.msra.mxu0 0
    %959 = vmatprep.subr.bf16.mxu0 0
    %960 = vmatpush1.bf16.msra.mxu0 0
    %961 = vmatprep.subr.bf16.mxu0 0
    %962 = vmatpush1.bf16.msra.mxu0 0
    %963 = vmatprep.subr.bf16.mxu0 0
    %964 = vmatpush1.bf16.msra.mxu0 0
    %965 = vmatprep.subr.bf16.mxu0 0
    %966 = vmatpush1.bf16.msra.mxu0 0
    %967 = vmatprep.subr.bf16.mxu0 0
    %968 = vmatpush1.bf16.msra.mxu0 0
    %969 = vmatprep.subr.bf16.mxu0 0
    %970 = vmatpush1.bf16.msra.mxu0 0
    %971 = vmatprep.subr.bf16.mxu0 0
    %972 = vmatpush1.bf16.msra.mxu0 0
    %973 = vmatprep.subr.bf16.mxu0 0
    %974 = vmatpush1.bf16.msra.mxu0 0
    %975 = vmatprep.subr.bf16.mxu0 0
    %976 = vmatpush1.bf16.msra.mxu0 0
    %977 = vmatprep.subr.bf16.mxu0 0
    %978 = vmatpush1.bf16.msra.mxu0 0
    %979 = vmatprep.mubr.bf16.mxu0 0
    %980 = vmatmul.mubr.bf16.gmra.mrb[0].mxu0 %v904
    %v981 = vpop.f32.mrb[0].mxu0
    %v982 = vadd.f32 0.0, %v981
    %v983 = vpop.f32.mrb[0].mxu0
    %v984 = vadd.f32 0.0, %v983
    %v985 = vpop.f32.mrb[0].mxu0
    %v986 = vpop.f32.mrb[0].mxu0
    %987 = vdwg.mxu0
    %v988 = vadd.f32 %v850, %v941
    %v989 = vadd.f32 %v851, %v943
    %v990 = vadd.f32 %v852, %v982
    %v991 = vadd.f32 %v853, %v984
    %v992 = vld [vmem:[#allocation2 + $0x140] sm:$0xff]
    %v993 = vld [vmem:[#allocation2 + $0x148] sm:$0xff]
    %v994 = vld [vmem:[#allocation2 + $0x150] sm:$0xff]
    %v995 = vld [vmem:[#allocation2 + $0x158] sm:$0xff]
    %v996 = vld [vmem:[#allocation2 + $0x160] sm:$0xff]
    %v997 = vld [vmem:[#allocation2 + $0x168] sm:$0xff]
    %v998 = vld [vmem:[#allocation2 + $0x170] sm:$0xff]
    %v999 = vld [vmem:[#allocation2 + $0x178] sm:$0xff]
    %v1001 = vrot.slane %v854, 1
    %v1010 = vunpack.c.l.b16 %v992
    %v1011 = vunpack.c.h.b16 %v992
    %v1012 = vunpack.c.l.b16 %v993
    %v1013 = vunpack.c.h.b16 %v993
    %v1014 = vunpack.c.l.b16 %v994
    %v1015 = vunpack.c.h.b16 %v994
    %v1016 = vunpack.c.l.b16 %v995
    %v1017 = vunpack.c.h.b16 %v995
    %v1018 = vunpack.c.l.b16 %v996
    %v1019 = vunpack.c.h.b16 %v996
    %v1020 = vunpack.c.l.b16 %v997
    %v1021 = vunpack.c.h.b16 %v997
    %v1022 = vunpack.c.l.b16 %v998
    %v1023 = vunpack.c.h.b16 %v998
    %v1024 = vunpack.c.l.b16 %v999
    %v1025 = vunpack.c.h.b16 %v999
    %v1026 = vpack.c.b16 %v1014, %v1010
    %v1027 = vpack.c.b16 %v1015, %v1011
    %v1028 = vpack.c.b16 %v1016, %v1012
    %v1029 = vpack.c.b16 %v1017, %v1013
    %v1030 = vpack.c.b16 %v1022, %v1018
    %v1031 = vpack.c.b16 %v1023, %v1019
    %v1032 = vpack.c.b16 %v1024, %v1020
    %v1033 = vpack.c.b16 %v1025, %v1021
    %v1043 = vsel %vm367, %v1001, 0
    %1045 = vmatprep.subr.bf16.mxu0 %v1027
    %1046 = vmatpush1.bf16.msra.mxu0 %v1026
    %1047 = vmatprep.subr.bf16.mxu0 %v1031
    %1048 = vmatpush1.bf16.msra.mxu0 %v1030
    %1049 = vmatprep.subr.bf16.mxu0 0
    %1050 = vmatpush1.bf16.msra.mxu0 0
    %1051 = vmatprep.subr.bf16.mxu0 0
    %1052 = vmatpush1.bf16.msra.mxu0 0
    %1053 = vmatprep.subr.bf16.mxu0 0
    %1054 = vmatpush1.bf16.msra.mxu0 0
    %1055 = vmatprep.subr.bf16.mxu0 0
    %1056 = vmatpush1.bf16.msra.mxu0 0
    %1057 = vmatprep.subr.bf16.mxu0 0
    %1058 = vmatpush1.bf16.msra.mxu0 0
    %1059 = vmatprep.subr.bf16.mxu0 0
    %1060 = vmatpush1.bf16.msra.mxu0 0
    %1061 = vmatprep.subr.bf16.mxu0 0
    %1062 = vmatpush1.bf16.msra.mxu0 0
    %1063 = vmatprep.subr.bf16.mxu0 0
    %1064 = vmatpush1.bf16.msra.mxu0 0
    %1065 = vmatprep.subr.bf16.mxu0 0
    %1066 = vmatpush1.bf16.msra.mxu0 0
    %1067 = vmatprep.subr.bf16.mxu0 0
    %1068 = vmatpush1.bf16.msra.mxu0 0
    %1069 = vmatprep.subr.bf16.mxu0 0
    %1070 = vmatpush1.bf16.msra.mxu0 0
    %1071 = vmatprep.subr.bf16.mxu0 0
    %1072 = vmatpush1.bf16.msra.mxu0 0
    %1073 = vmatprep.subr.bf16.mxu0 0
    %1074 = vmatpush1.bf16.msra.mxu0 0
    %1075 = vmatprep.subr.bf16.mxu0 0
    %1076 = vmatpush1.bf16.msra.mxu0 0
    %1077 = vmatprep.mubr.bf16.mxu0 0
    %1078 = vmatmul.mubr.bf16.gmra.mrb[0].mxu0 %v1043
    %v1079 = vpop.f32.mrb[0].mxu0
    %v1080 = vadd.f32 0.0, %v1079
    %v1081 = vpop.f32.mrb[0].mxu0
    %v1082 = vadd.f32 0.0, %v1081
    %v1083 = vpop.f32.mrb[0].mxu0
    %v1084 = vpop.f32.mrb[0].mxu0
    %1085 = vdwg.mxu0
    %1086 = vmatprep.subr.bf16.mxu0 %v1029
    %1087 = vmatpush1.bf16.msra.mxu0 %v1028
    %1088 = vmatprep.subr.bf16.mxu0 %v1033
    %1089 = vmatpush1.bf16.msra.mxu0 %v1032
    %1090 = vmatprep.subr.bf16.mxu0 0
    %1091 = vmatpush1.bf16.msra.mxu0 0
    %1092 = vmatprep.subr.bf16.mxu0 0
    %1093 = vmatpush1.bf16.msra.mxu0 0
    %1094 = vmatprep.subr.bf16.mxu0 0
    %1095 = vmatpush1.bf16.msra.mxu0 0
    %1096 = vmatprep.subr.bf16.mxu0 0
    %1097 = vmatpush1.bf16.msra.mxu0 0
    %1098 = vmatprep.subr.bf16.mxu0 0
    %1099 = vmatpush1.bf16.msra.mxu0 0
    %1100 = vmatprep.subr.bf16.mxu0 0
    %1101 = vmatpush1.bf16.msra.mxu0 0
    %1102 = vmatprep.subr.bf16.mxu0 0
    %1103 = vmatpush1.bf16.msra.mxu0 0
    %1104 = vmatprep.subr.bf16.mxu0 0
    %1105 = vmatpush1.bf16.msra.mxu0 0
    %1106 = vmatprep.subr.bf16.mxu0 0
    %1107 = vmatpush1.bf16.msra.mxu0 0
    %1108 = vmatprep.subr.bf16.mxu0 0
    %1109 = vmatpush1.bf16.msra.mxu0 0
    %1110 = vmatprep.subr.bf16.mxu0 0
    %1111 = vmatpush1.bf16.msra.mxu0 0
    %1112 = vmatprep.subr.bf16.mxu0 0
    %1113 = vmatpush1.bf16.msra.mxu0 0
    %1114 = vmatprep.subr.bf16.mxu0 0
    %1115 = vmatpush1.bf16.msra.mxu0 0
    %1116 = vmatprep.subr.bf16.mxu0 0
    %1117 = vmatpush1.bf16.msra.mxu0 0
    %1118 = vmatprep.mubr.bf16.mxu0 0
    %1119 = vmatmul.mubr.bf16.gmra.mrb[0].mxu0 %v1043
    %v1120 = vpop.f32.mrb[0].mxu0
    %v1121 = vadd.f32 0.0, %v1120
    %v1122 = vpop.f32.mrb[0].mxu0
    %v1123 = vadd.f32 0.0, %v1122
    %v1124 = vpop.f32.mrb[0].mxu0
    %v1125 = vpop.f32.mrb[0].mxu0
    %1126 = vdwg.mxu0
    %v1127 = vadd.f32 %v988, %v1080
    %v1128 = vadd.f32 %v989, %v1082
    %v1129 = vadd.f32 %v990, %v1121
    %v1130 = vadd.f32 %v991, %v1123
    %v1131 = vld [vmem:[#allocation2 + $0x180] sm:$0xff]
    %v1132 = vld [vmem:[#allocation2 + $0x188] sm:$0xff]
    %v1133 = vld [vmem:[#allocation2 + $0x190] sm:$0xff]
    %v1134 = vld [vmem:[#allocation2 + $0x198] sm:$0xff]
    %v1135 = vld [vmem:[#allocation2 + $0x1a0] sm:$0xff]
    %v1136 = vld [vmem:[#allocation2 + $0x1a8] sm:$0xff]
    %v1137 = vld [vmem:[#allocation2 + $0x1b0] sm:$0xff]
    %v1138 = vld [vmem:[#allocation2 + $0x1b8] sm:$0xff]
    %v1139 = vrot.slane %v854, 2
    %v1148 = vunpack.c.l.b16 %v1131
    %v1149 = vunpack.c.h.b16 %v1131
    %v1150 = vunpack.c.l.b16 %v1132
    %v1151 = vunpack.c.h.b16 %v1132
    %v1152 = vunpack.c.l.b16 %v1133
    %v1153 = vunpack.c.h.b16 %v1133
    %v1154 = vunpack.c.l.b16 %v1134
    %v1155 = vunpack.c.h.b16 %v1134
    %v1156 = vunpack.c.l.b16 %v1135
    %v1157 = vunpack.c.h.b16 %v1135
    %v1158 = vunpack.c.l.b16 %v1136
    %v1159 = vunpack.c.h.b16 %v1136
    %v1160 = vunpack.c.l.b16 %v1137
    %v1161 = vunpack.c.h.b16 %v1137
    %v1162 = vunpack.c.l.b16 %v1138
    %v1163 = vunpack.c.h.b16 %v1138
    %v1164 = vpack.c.b16 %v1152, %v1148
    %v1165 = vpack.c.b16 %v1153, %v1149
    %v1166 = vpack.c.b16 %v1154, %v1150
    %v1167 = vpack.c.b16 %v1155, %v1151
    %v1168 = vpack.c.b16 %v1160, %v1156
    %v1169 = vpack.c.b16 %v1161, %v1157
    %v1170 = vpack.c.b16 %v1162, %v1158
    %v1171 = vpack.c.b16 %v1163, %v1159
    %v1181 = vsel %vm367, %v1139, 0
    %1183 = vmatprep.subr.bf16.mxu0 %v1165
    %1184 = vmatpush1.bf16.msra.mxu0 %v1164
    %1185 = vmatprep.subr.bf16.mxu0 %v1169
    %1186 = vmatpush1.bf16.msra.mxu0 %v1168
    %1187 = vmatprep.subr.bf16.mxu0 0
    %1188 = vmatpush1.bf16.msra.mxu0 0
    %1189 = vmatprep.subr.bf16.mxu0 0
    %1190 = vmatpush1.bf16.msra.mxu0 0
    %1191 = vmatprep.subr.bf16.mxu0 0
    %1192 = vmatpush1.bf16.msra.mxu0 0
    %1193 = vmatprep.subr.bf16.mxu0 0
    %1194 = vmatpush1.bf16.msra.mxu0 0
    %1195 = vmatprep.subr.bf16.mxu0 0
    %1196 = vmatpush1.bf16.msra.mxu0 0
    %1197 = vmatprep.subr.bf16.mxu0 0
    %1198 = vmatpush1.bf16.msra.mxu0 0
    %1199 = vmatprep.subr.bf16.mxu0 0
    %1200 = vmatpush1.bf16.msra.mxu0 0
    %1201 = vmatprep.subr.bf16.mxu0 0
    %1202 = vmatpush1.bf16.msra.mxu0 0
    %1203 = vmatprep.subr.bf16.mxu0 0
    %1204 = vmatpush1.bf16.msra.mxu0 0
    %1205 = vmatprep.subr.bf16.mxu0 0
    %1206 = vmatpush1.bf16.msra.mxu0 0
    %1207 = vmatprep.subr.bf16.mxu0 0
    %1208 = vmatpush1.bf16.msra.mxu0 0
    %1209 = vmatprep.subr.bf16.mxu0 0
    %1210 = vmatpush1.bf16.msra.mxu0 0
    %1211 = vmatprep.subr.bf16.mxu0 0
    %1212 = vmatpush1.bf16.msra.mxu0 0
    %1213 = vmatprep.subr.bf16.mxu0 0
    %1214 = vmatpush1.bf16.msra.mxu0 0
    %1215 = vmatprep.mubr.bf16.mxu0 0
    %1216 = vmatmul.mubr.bf16.gmra.mrb[0].mxu0 %v1181
    %v1217 = vpop.f32.mrb[0].mxu0
    %v1218 = vadd.f32 0.0, %v1217
    %v1219 = vpop.f32.mrb[0].mxu0
    %v1220 = vadd.f32 0.0, %v1219
    %v1221 = vpop.f32.mrb[0].mxu0
    %v1222 = vpop.f32.mrb[0].mxu0
    %1223 = vdwg.mxu0
    %1224 = vmatprep.subr.bf16.mxu0 %v1167
    %1225 = vmatpush1.bf16.msra.mxu0 %v1166
    %1226 = vmatprep.subr.bf16.mxu0 %v1171
    %1227 = vmatpush1.bf16.msra.mxu0 %v1170
    %1228 = vmatprep.subr.bf16.mxu0 0
    %1229 = vmatpush1.bf16.msra.mxu0 0
    %1230 = vmatprep.subr.bf16.mxu0 0
    %1231 = vmatpush1.bf16.msra.mxu0 0
    %1232 = vmatprep.subr.bf16.mxu0 0
    %1233 = vmatpush1.bf16.msra.mxu0 0
    %1234 = vmatprep.subr.bf16.mxu0 0
    %1235 = vmatpush1.bf16.msra.mxu0 0
    %1236 = vmatprep.subr.bf16.mxu0 0
    %1237 = vmatpush1.bf16.msra.mxu0 0
    %1238 = vmatprep.subr.bf16.mxu0 0
    %1239 = vmatpush1.bf16.msra.mxu0 0
    %1240 = vmatprep.subr.bf16.mxu0 0
    %1241 = vmatpush1.bf16.msra.mxu0 0
    %1242 = vmatprep.subr.bf16.mxu0 0
    %1243 = vmatpush1.bf16.msra.mxu0 0
    %1244 = vmatprep.subr.bf16.mxu0 0
    %1245 = vmatpush1.bf16.msra.mxu0 0
    %1246 = vmatprep.subr.bf16.mxu0 0
    %1247 = vmatpush1.bf16.msra.mxu0 0
    %1248 = vmatprep.subr.bf16.mxu0 0
    %1249 = vmatpush1.bf16.msra.mxu0 0
    %1250 = vmatprep.subr.bf16.mxu0 0
    %1251 = vmatpush1.bf16.msra.mxu0 0
    %1252 = vmatprep.subr.bf16.mxu0 0
    %1253 = vmatpush1.bf16.msra.mxu0 0
    %1254 = vmatprep.subr.bf16.mxu0 0
    %1255 = vmatpush1.bf16.msra.mxu0 0
    %1256 = vmatprep.mubr.bf16.mxu0 0
    %1257 = vmatmul.mubr.bf16.gmra.mrb[0].mxu0 %v1181
    %v1258 = vpop.f32.mrb[0].mxu0
    %v1259 = vadd.f32 0.0, %v1258
    %v1260 = vpop.f32.mrb[0].mxu0
    %v1261 = vadd.f32 0.0, %v1260
    %v1262 = vpop.f32.mrb[0].mxu0
    %v1263 = vpop.f32.mrb[0].mxu0
    %1264 = vdwg.mxu0
    %v1265 = vadd.f32 %v1127, %v1218
    %v1266 = vadd.f32 %v1128, %v1220
    %v1267 = vadd.f32 %v1129, %v1259
    %v1268 = vadd.f32 %v1130, %v1261
    %v1269 = vld [vmem:[#allocation2 + $0x1c0] sm:$0xff]
    %v1270 = vld [vmem:[#allocation2 + $0x1c8] sm:$0xff]
    %v1271 = vld [vmem:[#allocation2 + $0x1d0] sm:$0xff]
    %v1272 = vld [vmem:[#allocation2 + $0x1d8] sm:$0xff]
    %v1273 = vld [vmem:[#allocation2 + $0x1e0] sm:$0xff]
    %v1274 = vld [vmem:[#allocation2 + $0x1e8] sm:$0xff]
    %v1275 = vld [vmem:[#allocation2 + $0x1f0] sm:$0xff]
    %v1276 = vld [vmem:[#allocation2 + $0x1f8] sm:$0xff]
    %v1277 = vrot.slane %v854, 3
    %v1286 = vunpack.c.l.b16 %v1269
    %v1287 = vunpack.c.h.b16 %v1269
    %v1288 = vunpack.c.l.b16 %v1270
    %v1289 = vunpack.c.h.b16 %v1270
    %v1290 = vunpack.c.l.b16 %v1271
    %v1291 = vunpack.c.h.b16 %v1271
    %v1292 = vunpack.c.l.b16 %v1272
    %v1293 = vunpack.c.h.b16 %v1272
    %v1294 = vunpack.c.l.b16 %v1273
    %v1295 = vunpack.c.h.b16 %v1273
    %v1296 = vunpack.c.l.b16 %v1274
    %v1297 = vunpack.c.h.b16 %v1274
    %v1298 = vunpack.c.l.b16 %v1275
    %v1299 = vunpack.c.h.b16 %v1275
    %v1300 = vunpack.c.l.b16 %v1276
    %v1301 = vunpack.c.h.b16 %v1276
    %v1302 = vpack.c.b16 %v1290, %v1286
    %v1303 = vpack.c.b16 %v1291, %v1287
    %v1304 = vpack.c.b16 %v1292, %v1288
    %v1305 = vpack.c.b16 %v1293, %v1289
    %v1306 = vpack.c.b16 %v1298, %v1294
    %v1307 = vpack.c.b16 %v1299, %v1295
    %v1308 = vpack.c.b16 %v1300, %v1296
    %v1309 = vpack.c.b16 %v1301, %v1297
    %v1319 = vsel %vm367, %v1277, 0
    %1321 = vmatprep.subr.bf16.mxu0 %v1303
    %1322 = vmatpush1.bf16.msra.mxu0 %v1302
    %1323 = vmatprep.subr.bf16.mxu0 %v1307
    %1324 = vmatpush1.bf16.msra.mxu0 %v1306
    %1325 = vmatprep.subr.bf16.mxu0 0
    %1326 = vmatpush1.bf16.msra.mxu0 0
    %1327 = vmatprep.subr.bf16.mxu0 0
    %1328 = vmatpush1.bf16.msra.mxu0 0
    %1329 = vmatprep.subr.bf16.mxu0 0
    %1330 = vmatpush1.bf16.msra.mxu0 0
    %1331 = vmatprep.subr.bf16.mxu0 0
    %1332 = vmatpush1.bf16.msra.mxu0 0
    %1333 = vmatprep.subr.bf16.mxu0 0
    %1334 = vmatpush1.bf16.msra.mxu0 0
    %1335 = vmatprep.subr.bf16.mxu0 0
    %1336 = vmatpush1.bf16.msra.mxu0 0
    %1337 = vmatprep.subr.bf16.mxu0 0
    %1338 = vmatpush1.bf16.msra.mxu0 0
    %1339 = vmatprep.subr.bf16.mxu0 0
    %1340 = vmatpush1.bf16.msra.mxu0 0
    %1341 = vmatprep.subr.bf16.mxu0 0
    %1342 = vmatpush1.bf16.msra.mxu0 0
    %1343 = vmatprep.subr.bf16.mxu0 0
    %1344 = vmatpush1.bf16.msra.mxu0 0
    %1345 = vmatprep.subr.bf16.mxu0 0
    %1346 = vmatpush1.bf16.msra.mxu0 0
    %1347 = vmatprep.subr.bf16.mxu0 0
    %1348 = vmatpush1.bf16.msra.mxu0 0
    %1349 = vmatprep.subr.bf16.mxu0 0
    %1350 = vmatpush1.bf16.msra.mxu0 0
    %1351 = vmatprep.subr.bf16.mxu0 0
    %1352 = vmatpush1.bf16.msra.mxu0 0
    %1353 = vmatprep.mubr.bf16.mxu0 0
    %1354 = vmatmul.mubr.bf16.gmra.mrb[0].mxu0 %v1319
    %v1355 = vpop.f32.mrb[0].mxu0
    %v1356 = vadd.f32 0.0, %v1355
    %v1357 = vpop.f32.mrb[0].mxu0
    %v1358 = vadd.f32 0.0, %v1357
    %v1359 = vpop.f32.mrb[0].mxu0
    %v1360 = vpop.f32.mrb[0].mxu0
    %1361 = vdwg.mxu0
    %1362 = vmatprep.subr.bf16.mxu0 %v1305
    %1363 = vmatpush1.bf16.msra.mxu0 %v1304
    %1364 = vmatprep.subr.bf16.mxu0 %v1309
    %1365 = vmatpush1.bf16.msra.mxu0 %v1308
    %1366 = vmatprep.subr.bf16.mxu0 0
    %1367 = vmatpush1.bf16.msra.mxu0 0
    %1368 = vmatprep.subr.bf16.mxu0 0
    %1369 = vmatpush1.bf16.msra.mxu0 0
    %1370 = vmatprep.subr.bf16.mxu0 0
    %1371 = vmatpush1.bf16.msra.mxu0 0
    %1372 = vmatprep.subr.bf16.mxu0 0
    %1373 = vmatpush1.bf16.msra.mxu0 0
    %1374 = vmatprep.subr.bf16.mxu0 0
    %1375 = vmatpush1.bf16.msra.mxu0 0
    %1376 = vmatprep.subr.bf16.mxu0 0
    %1377 = vmatpush1.bf16.msra.mxu0 0
    %1378 = vmatprep.subr.bf16.mxu0 0
    %1379 = vmatpush1.bf16.msra.mxu0 0
    %1380 = vmatprep.subr.bf16.mxu0 0
    %1381 = vmatpush1.bf16.msra.mxu0 0
    %1382 = vmatprep.subr.bf16.mxu0 0
    %1383 = vmatpush1.bf16.msra.mxu0 0
    %1384 = vmatprep.subr.bf16.mxu0 0
    %1385 = vmatpush1.bf16.msra.mxu0 0
    %1386 = vmatprep.subr.bf16.mxu0 0
    %1387 = vmatpush1.bf16.msra.mxu0 0
    %1388 = vmatprep.subr.bf16.mxu0 0
    %1389 = vmatpush1.bf16.msra.mxu0 0
    %1390 = vmatprep.subr.bf16.mxu0 0
    %1391 = vmatpush1.bf16.msra.mxu0 0
    %1392 = vmatprep.subr.bf16.mxu0 0
    %1393 = vmatpush1.bf16.msra.mxu0 0
    %1394 = vmatprep.mubr.bf16.mxu0 0
    %1395 = vmatmul.mubr.bf16.gmra.mrb[0].mxu0 %v1319
    %v1396 = vpop.f32.mrb[0].mxu0
    %v1397 = vadd.f32 0.0, %v1396
    %v1398 = vpop.f32.mrb[0].mxu0
    %v1399 = vadd.f32 0.0, %v1398
    %v1400 = vpop.f32.mrb[0].mxu0
    %v1401 = vpop.f32.mrb[0].mxu0
    %1402 = vdwg.mxu0
    %v1403 = vadd.f32 %v1265, %v1356
    %v1404 = vadd.f32 %v1266, %v1358
    %v1405 = vadd.f32 %v1267, %v1397
    %v1406 = vadd.f32 %v1268, %v1399
    %v1407 = vpack.c.bf16 %v302, %v302
    %v1408 = vld [vmem:[#allocation2 + $0x200] sm:$0xff]
    %v1409 = vld [vmem:[#allocation2 + $0x208] sm:$0xff]
    %v1410 = vld [vmem:[#allocation2 + $0x210] sm:$0xff]
    %v1411 = vld [vmem:[#allocation2 + $0x218] sm:$0xff]
    %v1412 = vld [vmem:[#allocation2 + $0x220] sm:$0xff]
    %v1413 = vld [vmem:[#allocation2 + $0x228] sm:$0xff]
    %v1414 = vld [vmem:[#allocation2 + $0x230] sm:$0xff]
    %v1415 = vld [vmem:[#allocation2 + $0x238] sm:$0xff]
    %v1424 = vunpack.c.l.b16 %v1408
    %v1425 = vunpack.c.h.b16 %v1408
    %v1426 = vunpack.c.l.b16 %v1409
    %v1427 = vunpack.c.h.b16 %v1409
    %v1428 = vunpack.c.l.b16 %v1410
    %v1429 = vunpack.c.h.b16 %v1410
    %v1430 = vunpack.c.l.b16 %v1411
    %v1431 = vunpack.c.h.b16 %v1411
    %v1432 = vunpack.c.l.b16 %v1412
    %v1433 = vunpack.c.h.b16 %v1412
    %v1434 = vunpack.c.l.b16 %v1413
    %v1435 = vunpack.c.h.b16 %v1413
    %v1436 = vunpack.c.l.b16 %v1414
    %v1437 = vunpack.c.h.b16 %v1414
    %v1438 = vunpack.c.l.b16 %v1415
    %v1439 = vunpack.c.h.b16 %v1415
    %v1440 = vpack.c.b16 %v1428, %v1424
    %v1441 = vpack.c.b16 %v1429, %v1425
    %v1442 = vpack.c.b16 %v1430, %v1426
    %v1443 = vpack.c.b16 %v1431, %v1427
    %v1444 = vpack.c.b16 %v1436, %v1432
    %v1445 = vpack.c.b16 %v1437, %v1433
    %v1446 = vpack.c.b16 %v1438, %v1434
    %v1447 = vpack.c.b16 %v1439, %v1435
    %v1457 = vsel %vm367, %v1407, 0
    %1459 = vmatprep.subr.bf16.mxu0 %v1441
    %1460 = vmatpush1.bf16.msra.mxu0 %v1440
    %1461 = vmatprep.subr.bf16.mxu0 %v1445
    %1462 = vmatpush1.bf16.msra.mxu0 %v1444
    %1463 = vmatprep.subr.bf16.mxu0 0
    %1464 = vmatpush1.bf16.msra.mxu0 0
    %1465 = vmatprep.subr.bf16.mxu0 0
    %1466 = vmatpush1.bf16.msra.mxu0 0
    %1467 = vmatprep.subr.bf16.mxu0 0
    %1468 = vmatpush1.bf16.msra.mxu0 0
    %1469 = vmatprep.subr.bf16.mxu0 0
    %1470 = vmatpush1.bf16.msra.mxu0 0
    %1471 = vmatprep.subr.bf16.mxu0 0
    %1472 = vmatpush1.bf16.msra.mxu0 0
    %1473 = vmatprep.subr.bf16.mxu0 0
    %1474 = vmatpush1.bf16.msra.mxu0 0
    %1475 = vmatprep.subr.bf16.mxu0 0
    %1476 = vmatpush1.bf16.msra.mxu0 0
    %1477 = vmatprep.subr.bf16.mxu0 0
    %1478 = vmatpush1.bf16.msra.mxu0 0
    %1479 = vmatprep.subr.bf16.mxu0 0
    %1480 = vmatpush1.bf16.msra.mxu0 0
    %1481 = vmatprep.subr.bf16.mxu0 0
    %1482 = vmatpush1.bf16.msra.mxu0 0
    %1483 = vmatprep.subr.bf16.mxu0 0
    %1484 = vmatpush1.bf16.msra.mxu0 0
    %1485 = vmatprep.subr.bf16.mxu0 0
    %1486 = vmatpush1.bf16.msra.mxu0 0
    %1487 = vmatprep.subr.bf16.mxu0 0
    %1488 = vmatpush1.bf16.msra.mxu0 0
    %1489 = vmatprep.subr.bf16.mxu0 0
    %1490 = vmatpush1.bf16.msra.mxu0 0
    %1491 = vmatprep.mubr.bf16.mxu0 0
    %1492 = vmatmul.mubr.bf16.gmra.mrb[0].mxu0 %v1457
    %v1493 = vpop.f32.mrb[0].mxu0
    %v1494 = vadd.f32 0.0, %v1493
    %v1495 = vpop.f32.mrb[0].mxu0
    %v1496 = vadd.f32 0.0, %v1495
    %v1497 = vpop.f32.mrb[0].mxu0
    %v1498 = vpop.f32.mrb[0].mxu0
    %1499 = vdwg.mxu0
    %1500 = vmatprep.subr.bf16.mxu0 %v1443
    %1501 = vmatpush1.bf16.msra.mxu0 %v1442
    %1502 = vmatprep.subr.bf16.mxu0 %v1447
    %1503 = vmatpush1.bf16.msra.mxu0 %v1446
    %1504 = vmatprep.subr.bf16.mxu0 0
    %1505 = vmatpush1.bf16.msra.mxu0 0
    %1506 = vmatprep.subr.bf16.mxu0 0
    %1507 = vmatpush1.bf16.msra.mxu0 0
    %1508 = vmatprep.subr.bf16.mxu0 0
    %1509 = vmatpush1.bf16.msra.mxu0 0
    %1510 = vmatprep.subr.bf16.mxu0 0
    %1511 = vmatpush1.bf16.msra.mxu0 0
    %1512 = vmatprep.subr.bf16.mxu0 0
    %1513 = vmatpush1.bf16.msra.mxu0 0
    %1514 = vmatprep.subr.bf16.mxu0 0
    %1515 = vmatpush1.bf16.msra.mxu0 0
    %1516 = vmatprep.subr.bf16.mxu0 0
    %1517 = vmatpush1.bf16.msra.mxu0 0
    %1518 = vmatprep.subr.bf16.mxu0 0
    %1519 = vmatpush1.bf16.msra.mxu0 0
    %1520 = vmatprep.subr.bf16.mxu0 0
    %1521 = vmatpush1.bf16.msra.mxu0 0
    %1522 = vmatprep.subr.bf16.mxu0 0
    %1523 = vmatpush1.bf16.msra.mxu0 0
    %1524 = vmatprep.subr.bf16.mxu0 0
    %1525 = vmatpush1.bf16.msra.mxu0 0
    %1526 = vmatprep.subr.bf16.mxu0 0
    %1527 = vmatpush1.bf16.msra.mxu0 0
    %1528 = vmatprep.subr.bf16.mxu0 0
    %1529 = vmatpush1.bf16.msra.mxu0 0
    %1530 = vmatprep.subr.bf16.mxu0 0
    %1531 = vmatpush1.bf16.msra.mxu0 0
    %1532 = vmatprep.mubr.bf16.mxu0 0
    %1533 = vmatmul.mubr.bf16.gmra.mrb[0].mxu0 %v1457
    %v1534 = vpop.f32.mrb[0].mxu0
    %v1535 = vadd.f32 0.0, %v1534
    %v1536 = vpop.f32.mrb[0].mxu0
    %v1537 = vadd.f32 0.0, %v1536
    %v1538 = vpop.f32.mrb[0].mxu0
    %v1539 = vpop.f32.mrb[0].mxu0
    %1540 = vdwg.mxu0
    %v1541 = vadd.f32 %v1403, %v1494
    %v1542 = vadd.f32 %v1404, %v1496
    %v1543 = vadd.f32 %v1405, %v1535
    %v1544 = vadd.f32 %v1406, %v1537
    %v1545 = vld [vmem:[#allocation2 + $0x240] sm:$0xff]
    %v1546 = vld [vmem:[#allocation2 + $0x248] sm:$0xff]
    %v1547 = vld [vmem:[#allocation2 + $0x250] sm:$0xff]
    %v1548 = vld [vmem:[#allocation2 + $0x258] sm:$0xff]
    %v1549 = vld [vmem:[#allocation2 + $0x260] sm:$0xff]
    %v1550 = vld [vmem:[#allocation2 + $0x268] sm:$0xff]
    %v1551 = vld [vmem:[#allocation2 + $0x270] sm:$0xff]
    %v1552 = vld [vmem:[#allocation2 + $0x278] sm:$0xff]
    %v1554 = vrot.slane %v1407, 1
    %v1563 = vunpack.c.l.b16 %v1545
    %v1564 = vunpack.c.h.b16 %v1545
    %v1565 = vunpack.c.l.b16 %v1546
    %v1566 = vunpack.c.h.b16 %v1546
    %v1567 = vunpack.c.l.b16 %v1547
    %v1568 = vunpack.c.h.b16 %v1547
    %v1569 = vunpack.c.l.b16 %v1548
    %v1570 = vunpack.c.h.b16 %v1548
    %v1571 = vunpack.c.l.b16 %v1549
    %v1572 = vunpack.c.h.b16 %v1549
    %v1573 = vunpack.c.l.b16 %v1550
    %v1574 = vunpack.c.h.b16 %v1550
    %v1575 = vunpack.c.l.b16 %v1551
    %v1576 = vunpack.c.h.b16 %v1551
    %v1577 = vunpack.c.l.b16 %v1552
    %v1578 = vunpack.c.h.b16 %v1552
    %v1579 = vpack.c.b16 %v1567, %v1563
    %v1580 = vpack.c.b16 %v1568, %v1564
    %v1581 = vpack.c.b16 %v1569, %v1565
    %v1582 = vpack.c.b16 %v1570, %v1566
    %v1583 = vpack.c.b16 %v1575, %v1571
    %v1584 = vpack.c.b16 %v1576, %v1572
    %v1585 = vpack.c.b16 %v1577, %v1573
    %v1586 = vpack.c.b16 %v1578, %v1574
    %v1596 = vsel %vm367, %v1554, 0
    %1598 = vmatprep.subr.bf16.mxu0 %v1580
    %1599 = vmatpush1.bf16.msra.mxu0 %v1579
    %1600 = vmatprep.subr.bf16.mxu0 %v1584
    %1601 = vmatpush1.bf16.msra.mxu0 %v1583
    %1602 = vmatprep.subr.bf16.mxu0 0
    %1603 = vmatpush1.bf16.msra.mxu0 0
    %1604 = vmatprep.subr.bf16.mxu0 0
    %1605 = vmatpush1.bf16.msra.mxu0 0
    %1606 = vmatprep.subr.bf16.mxu0 0
    %1607 = vmatpush1.bf16.msra.mxu0 0
    %1608 = vmatprep.subr.bf16.mxu0 0
    %1609 = vmatpush1.bf16.msra.mxu0 0
    %1610 = vmatprep.subr.bf16.mxu0 0
    %1611 = vmatpush1.bf16.msra.mxu0 0
    %1612 = vmatprep.subr.bf16.mxu0 0
    %1613 = vmatpush1.bf16.msra.mxu0 0
    %1614 = vmatprep.subr.bf16.mxu0 0
    %1615 = vmatpush1.bf16.msra.mxu0 0
    %1616 = vmatprep.subr.bf16.mxu0 0
    %1617 = vmatpush1.bf16.msra.mxu0 0
    %1618 = vmatprep.subr.bf16.mxu0 0
    %1619 = vmatpush1.bf16.msra.mxu0 0
    %1620 = vmatprep.subr.bf16.mxu0 0
    %1621 = vmatpush1.bf16.msra.mxu0 0
    %1622 = vmatprep.subr.bf16.mxu0 0
    %1623 = vmatpush1.bf16.msra.mxu0 0
    %1624 = vmatprep.subr.bf16.mxu0 0
    %1625 = vmatpush1.bf16.msra.mxu0 0
    %1626 = vmatprep.subr.bf16.mxu0 0
    %1627 = vmatpush1.bf16.msra.mxu0 0
    %1628 = vmatprep.subr.bf16.mxu0 0
    %1629 = vmatpush1.bf16.msra.mxu0 0
    %1630 = vmatprep.mubr.bf16.mxu0 0
    %1631 = vmatmul.mubr.bf16.gmra.mrb[0].mxu0 %v1596
    %v1632 = vpop.f32.mrb[0].mxu0
    %v1633 = vadd.f32 0.0, %v1632
    %v1634 = vpop.f32.mrb[0].mxu0
    %v1635 = vadd.f32 0.0, %v1634
    %v1636 = vpop.f32.mrb[0].mxu0
    %v1637 = vpop.f32.mrb[0].mxu0
    %1638 = vdwg.mxu0
    %1639 = vmatprep.subr.bf16.mxu0 %v1582
    %1640 = vmatpush1.bf16.msra.mxu0 %v1581
    %1641 = vmatprep.subr.bf16.mxu0 %v1586
    %1642 = vmatpush1.bf16.msra.mxu0 %v1585
    %1643 = vmatprep.subr.bf16.mxu0 0
    %1644 = vmatpush1.bf16.msra.mxu0 0
    %1645 = vmatprep.subr.bf16.mxu0 0
    %1646 = vmatpush1.bf16.msra.mxu0 0
    %1647 = vmatprep.subr.bf16.mxu0 0
    %1648 = vmatpush1.bf16.msra.mxu0 0
    %1649 = vmatprep.subr.bf16.mxu0 0
    %1650 = vmatpush1.bf16.msra.mxu0 0
    %1651 = vmatprep.subr.bf16.mxu0 0
    %1652 = vmatpush1.bf16.msra.mxu0 0
    %1653 = vmatprep.subr.bf16.mxu0 0
    %1654 = vmatpush1.bf16.msra.mxu0 0
    %1655 = vmatprep.subr.bf16.mxu0 0
    %1656 = vmatpush1.bf16.msra.mxu0 0
    %1657 = vmatprep.subr.bf16.mxu0 0
    %1658 = vmatpush1.bf16.msra.mxu0 0
    %1659 = vmatprep.subr.bf16.mxu0 0
    %1660 = vmatpush1.bf16.msra.mxu0 0
    %1661 = vmatprep.subr.bf16.mxu0 0
    %1662 = vmatpush1.bf16.msra.mxu0 0
    %1663 = vmatprep.subr.bf16.mxu0 0
    %1664 = vmatpush1.bf16.msra.mxu0 0
    %1665 = vmatprep.subr.bf16.mxu0 0
    %1666 = vmatpush1.bf16.msra.mxu0 0
    %1667 = vmatprep.subr.bf16.mxu0 0
    %1668 = vmatpush1.bf16.msra.mxu0 0
    %1669 = vmatprep.subr.bf16.mxu0 0
    %1670 = vmatpush1.bf16.msra.mxu0 0
    %1671 = vmatprep.mubr.bf16.mxu0 0
    %1672 = vmatmul.mubr.bf16.gmra.mrb[0].mxu0 %v1596
    %v1673 = vpop.f32.mrb[0].mxu0
    %v1674 = vadd.f32 0.0, %v1673
    %v1675 = vpop.f32.mrb[0].mxu0
    %v1676 = vadd.f32 0.0, %v1675
    %v1677 = vpop.f32.mrb[0].mxu0
    %v1678 = vpop.f32.mrb[0].mxu0
    %1679 = vdwg.mxu0
    %v1680 = vadd.f32 %v1541, %v1633
    %v1681 = vadd.f32 %v1542, %v1635
    %v1682 = vadd.f32 %v1543, %v1674
    %v1683 = vadd.f32 %v1544, %v1676
    %v1684 = vld [vmem:[#allocation2 + $0x280] sm:$0xff]
    %v1685 = vld [vmem:[#allocation2 + $0x288] sm:$0xff]
    %v1686 = vld [vmem:[#allocation2 + $0x290] sm:$0xff]
    %v1687 = vld [vmem:[#allocation2 + $0x298] sm:$0xff]
    %v1688 = vld [vmem:[#allocation2 + $0x2a0] sm:$0xff]
    %v1689 = vld [vmem:[#allocation2 + $0x2a8] sm:$0xff]
    %v1690 = vld [vmem:[#allocation2 + $0x2b0] sm:$0xff]
    %v1691 = vld [vmem:[#allocation2 + $0x2b8] sm:$0xff]
    %v1692 = vrot.slane %v1407, 2
    %v1701 = vunpack.c.l.b16 %v1684
    %v1702 = vunpack.c.h.b16 %v1684
    %v1703 = vunpack.c.l.b16 %v1685
    %v1704 = vunpack.c.h.b16 %v1685
    %v1705 = vunpack.c.l.b16 %v1686
    %v1706 = vunpack.c.h.b16 %v1686
    %v1707 = vunpack.c.l.b16 %v1687
    %v1708 = vunpack.c.h.b16 %v1687
    %v1709 = vunpack.c.l.b16 %v1688
    %v1710 = vunpack.c.h.b16 %v1688
    %v1711 = vunpack.c.l.b16 %v1689
    %v1712 = vunpack.c.h.b16 %v1689
    %v1713 = vunpack.c.l.b16 %v1690
    %v1714 = vunpack.c.h.b16 %v1690
    %v1715 = vunpack.c.l.b16 %v1691
    %v1716 = vunpack.c.h.b16 %v1691
    %v1717 = vpack.c.b16 %v1705, %v1701
    %v1718 = vpack.c.b16 %v1706, %v1702
    %v1719 = vpack.c.b16 %v1707, %v1703
    %v1720 = vpack.c.b16 %v1708, %v1704
    %v1721 = vpack.c.b16 %v1713, %v1709
    %v1722 = vpack.c.b16 %v1714, %v1710
    %v1723 = vpack.c.b16 %v1715, %v1711
    %v1724 = vpack.c.b16 %v1716, %v1712
    %v1734 = vsel %vm367, %v1692, 0
    %1736 = vmatprep.subr.bf16.mxu0 %v1718
    %1737 = vmatpush1.bf16.msra.mxu0 %v1717
    %1738 = vmatprep.subr.bf16.mxu0 %v1722
    %1739 = vmatpush1.bf16.msra.mxu0 %v1721
    %1740 = vmatprep.subr.bf16.mxu0 0
    %1741 = vmatpush1.bf16.msra.mxu0 0
    %1742 = vmatprep.subr.bf16.mxu0 0
    %1743 = vmatpush1.bf16.msra.mxu0 0
    %1744 = vmatprep.subr.bf16.mxu0 0
    %1745 = vmatpush1.bf16.msra.mxu0 0
    %1746 = vmatprep.subr.bf16.mxu0 0
    %1747 = vmatpush1.bf16.msra.mxu0 0
    %1748 = vmatprep.subr.bf16.mxu0 0
    %1749 = vmatpush1.bf16.msra.mxu0 0
    %1750 = vmatprep.subr.bf16.mxu0 0
    %1751 = vmatpush1.bf16.msra.mxu0 0
    %1752 = vmatprep.subr.bf16.mxu0 0
    %1753 = vmatpush1.bf16.msra.mxu0 0
    %1754 = vmatprep.subr.bf16.mxu0 0
    %1755 = vmatpush1.bf16.msra.mxu0 0
    %1756 = vmatprep.subr.bf16.mxu0 0
    %1757 = vmatpush1.bf16.msra.mxu0 0
    %1758 = vmatprep.subr.bf16.mxu0 0
    %1759 = vmatpush1.bf16.msra.mxu0 0
    %1760 = vmatprep.subr.bf16.mxu0 0
    %1761 = vmatpush1.bf16.msra.mxu0 0
    %1762 = vmatprep.subr.bf16.mxu0 0
    %1763 = vmatpush1.bf16.msra.mxu0 0
    %1764 = vmatprep.subr.bf16.mxu0 0
    %1765 = vmatpush1.bf16.msra.mxu0 0
    %1766 = vmatprep.subr.bf16.mxu0 0
    %1767 = vmatpush1.bf16.msra.mxu0 0
    %1768 = vmatprep.mubr.bf16.mxu0 0
    %1769 = vmatmul.mubr.bf16.gmra.mrb[0].mxu0 %v1734
    %v1770 = vpop.f32.mrb[0].mxu0
    %v1771 = vadd.f32 0.0, %v1770
    %v1772 = vpop.f32.mrb[0].mxu0
    %v1773 = vadd.f32 0.0, %v1772
    %v1774 = vpop.f32.mrb[0].mxu0
    %v1775 = vpop.f32.mrb[0].mxu0
    %1776 = vdwg.mxu0
    %1777 = vmatprep.subr.bf16.mxu0 %v1720
    %1778 = vmatpush1.bf16.msra.mxu0 %v1719
    %1779 = vmatprep.subr.bf16.mxu0 %v1724
    %1780 = vmatpush1.bf16.msra.mxu0 %v1723
    %1781 = vmatprep.subr.bf16.mxu0 0
    %1782 = vmatpush1.bf16.msra.mxu0 0
    %1783 = vmatprep.subr.bf16.mxu0 0
    %1784 = vmatpush1.bf16.msra.mxu0 0
    %1785 = vmatprep.subr.bf16.mxu0 0
    %1786 = vmatpush1.bf16.msra.mxu0 0
    %1787 = vmatprep.subr.bf16.mxu0 0
    %1788 = vmatpush1.bf16.msra.mxu0 0
    %1789 = vmatprep.subr.bf16.mxu0 0
    %1790 = vmatpush1.bf16.msra.mxu0 0
    %1791 = vmatprep.subr.bf16.mxu0 0
    %1792 = vmatpush1.bf16.msra.mxu0 0
    %1793 = vmatprep.subr.bf16.mxu0 0
    %1794 = vmatpush1.bf16.msra.mxu0 0
    %1795 = vmatprep.subr.bf16.mxu0 0
    %1796 = vmatpush1.bf16.msra.mxu0 0
    %1797 = vmatprep.subr.bf16.mxu0 0
    %1798 = vmatpush1.bf16.msra.mxu0 0
    %1799 = vmatprep.subr.bf16.mxu0 0
    %1800 = vmatpush1.bf16.msra.mxu0 0
    %1801 = vmatprep.subr.bf16.mxu0 0
    %1802 = vmatpush1.bf16.msra.mxu0 0
    %1803 = vmatprep.subr.bf16.mxu0 0
    %1804 = vmatpush1.bf16.msra.mxu0 0
    %1805 = vmatprep.subr.bf16.mxu0 0
    %1806 = vmatpush1.bf16.msra.mxu0 0
    %1807 = vmatprep.subr.bf16.mxu0 0
    %1808 = vmatpush1.bf16.msra.mxu0 0
    %1809 = vmatprep.mubr.bf16.mxu0 0
    %1810 = vmatmul.mubr.bf16.gmra.mrb[0].mxu0 %v1734
    %v1811 = vpop.f32.mrb[0].mxu0
    %v1812 = vadd.f32 0.0, %v1811
    %v1813 = vpop.f32.mrb[0].mxu0
    %v1814 = vadd.f32 0.0, %v1813
    %v1815 = vpop.f32.mrb[0].mxu0
    %v1816 = vpop.f32.mrb[0].mxu0
    %1817 = vdwg.mxu0
    %v1818 = vadd.f32 %v1680, %v1771
    %v1819 = vadd.f32 %v1681, %v1773
    %v1820 = vadd.f32 %v1682, %v1812
    %v1821 = vadd.f32 %v1683, %v1814
    %v1822 = vld [vmem:[#allocation2 + $0x2c0] sm:$0xff]
    %v1823 = vld [vmem:[#allocation2 + $0x2c8] sm:$0xff]
    %v1824 = vld [vmem:[#allocation2 + $0x2d0] sm:$0xff]
    %v1825 = vld [vmem:[#allocation2 + $0x2d8] sm:$0xff]
    %v1826 = vld [vmem:[#allocation2 + $0x2e0] sm:$0xff]
    %v1827 = vld [vmem:[#allocation2 + $0x2e8] sm:$0xff]
    %v1828 = vld [vmem:[#allocation2 + $0x2f0] sm:$0xff]
    %v1829 = vld [vmem:[#allocation2 + $0x2f8] sm:$0xff]
    %v1830 = vrot.slane %v1407, 3
    %v1839 = vunpack.c.l.b16 %v1822
    %v1840 = vunpack.c.h.b16 %v1822
    %v1841 = vunpack.c.l.b16 %v1823
    %v1842 = vunpack.c.h.b16 %v1823
    %v1843 = vunpack.c.l.b16 %v1824
    %v1844 = vunpack.c.h.b16 %v1824
    %v1845 = vunpack.c.l.b16 %v1825
    %v1846 = vunpack.c.h.b16 %v1825
    %v1847 = vunpack.c.l.b16 %v1826
    %v1848 = vunpack.c.h.b16 %v1826
    %v1849 = vunpack.c.l.b16 %v1827
    %v1850 = vunpack.c.h.b16 %v1827
    %v1851 = vunpack.c.l.b16 %v1828
    %v1852 = vunpack.c.h.b16 %v1828
    %v1853 = vunpack.c.l.b16 %v1829
    %v1854 = vunpack.c.h.b16 %v1829
    %v1855 = vpack.c.b16 %v1843, %v1839
    %v1856 = vpack.c.b16 %v1844, %v1840
    %v1857 = vpack.c.b16 %v1845, %v1841
    %v1858 = vpack.c.b16 %v1846, %v1842
    %v1859 = vpack.c.b16 %v1851, %v1847
    %v1860 = vpack.c.b16 %v1852, %v1848
    %v1861 = vpack.c.b16 %v1853, %v1849
    %v1862 = vpack.c.b16 %v1854, %v1850
    %v1872 = vsel %vm367, %v1830, 0
    %1874 = vmatprep.subr.bf16.mxu0 %v1856
    %1875 = vmatpush1.bf16.msra.mxu0 %v1855
    %1876 = vmatprep.subr.bf16.mxu0 %v1860
    %1877 = vmatpush1.bf16.msra.mxu0 %v1859
    %1878 = vmatprep.subr.bf16.mxu0 0
    %1879 = vmatpush1.bf16.msra.mxu0 0
    %1880 = vmatprep.subr.bf16.mxu0 0
    %1881 = vmatpush1.bf16.msra.mxu0 0
    %1882 = vmatprep.subr.bf16.mxu0 0
    %1883 = vmatpush1.bf16.msra.mxu0 0
    %1884 = vmatprep.subr.bf16.mxu0 0
    %1885 = vmatpush1.bf16.msra.mxu0 0
    %1886 = vmatprep.subr.bf16.mxu0 0
    %1887 = vmatpush1.bf16.msra.mxu0 0
    %1888 = vmatprep.subr.bf16.mxu0 0
    %1889 = vmatpush1.bf16.msra.mxu0 0
    %1890 = vmatprep.subr.bf16.mxu0 0
    %1891 = vmatpush1.bf16.msra.mxu0 0
    %1892 = vmatprep.subr.bf16.mxu0 0
    %1893 = vmatpush1.bf16.msra.mxu0 0
    %1894 = vmatprep.subr.bf16.mxu0 0
    %1895 = vmatpush1.bf16.msra.mxu0 0
    %1896 = vmatprep.subr.bf16.mxu0 0
    %1897 = vmatpush1.bf16.msra.mxu0 0
    %1898 = vmatprep.subr.bf16.mxu0 0
    %1899 = vmatpush1.bf16.msra.mxu0 0
    %1900 = vmatprep.subr.bf16.mxu0 0
    %1901 = vmatpush1.bf16.msra.mxu0 0
    %1902 = vmatprep.subr.bf16.mxu0 0
    %1903 = vmatpush1.bf16.msra.mxu0 0
    %1904 = vmatprep.subr.bf16.mxu0 0
    %1905 = vmatpush1.bf16.msra.mxu0 0
    %1906 = vmatprep.mubr.bf16.mxu0 0
    %1907 = vmatmul.mubr.bf16.gmra.mrb[0].mxu0 %v1872
    %v1908 = vpop.f32.mrb[0].mxu0
    %v1909 = vadd.f32 0.0, %v1908
    %v1910 = vpop.f32.mrb[0].mxu0
    %v1911 = vadd.f32 0.0, %v1910
    %v1912 = vpop.f32.mrb[0].mxu0
    %v1913 = vpop.f32.mrb[0].mxu0
    %1914 = vdwg.mxu0
    %1915 = vmatprep.subr.bf16.mxu0 %v1858
    %1916 = vmatpush1.bf16.msra.mxu0 %v1857
    %1917 = vmatprep.subr.bf16.mxu0 %v1862
    %1918 = vmatpush1.bf16.msra.mxu0 %v1861
    %1919 = vmatprep.subr.bf16.mxu0 0
    %1920 = vmatpush1.bf16.msra.mxu0 0
    %1921 = vmatprep.subr.bf16.mxu0 0
    %1922 = vmatpush1.bf16.msra.mxu0 0
    %1923 = vmatprep.subr.bf16.mxu0 0
    %1924 = vmatpush1.bf16.msra.mxu0 0
    %1925 = vmatprep.subr.bf16.mxu0 0
    %1926 = vmatpush1.bf16.msra.mxu0 0
    %1927 = vmatprep.subr.bf16.mxu0 0
    %1928 = vmatpush1.bf16.msra.mxu0 0
    %1929 = vmatprep.subr.bf16.mxu0 0
    %1930 = vmatpush1.bf16.msra.mxu0 0
    %1931 = vmatprep.subr.bf16.mxu0 0
    %1932 = vmatpush1.bf16.msra.mxu0 0
    %1933 = vmatprep.subr.bf16.mxu0 0
    %1934 = vmatpush1.bf16.msra.mxu0 0
    %1935 = vmatprep.subr.bf16.mxu0 0
    %1936 = vmatpush1.bf16.msra.mxu0 0
    %1937 = vmatprep.subr.bf16.mxu0 0
    %1938 = vmatpush1.bf16.msra.mxu0 0
    %1939 = vmatprep.subr.bf16.mxu0 0
    %1940 = vmatpush1.bf16.msra.mxu0 0
    %1941 = vmatprep.subr.bf16.mxu0 0
    %1942 = vmatpush1.bf16.msra.mxu0 0
    %1943 = vmatprep.subr.bf16.mxu0 0
    %1944 = vmatpush1.bf16.msra.mxu0 0
    %1945 = vmatprep.subr.bf16.mxu0 0
    %1946 = vmatpush1.bf16.msra.mxu0 0
    %1947 = vmatprep.mubr.bf16.mxu0 0
    %1948 = vmatmul.mubr.bf16.gmra.mrb[0].mxu0 %v1872
    %v1949 = vpop.f32.mrb[0].mxu0
    %v1950 = vadd.f32 0.0, %v1949
    %v1951 = vpop.f32.mrb[0].mxu0
    %v1952 = vadd.f32 0.0, %v1951
    %v1953 = vpop.f32.mrb[0].mxu0
    %v1954 = vpop.f32.mrb[0].mxu0
    %1955 = vdwg.mxu0
    %v1956 = vadd.f32 %v1818, %v1909
    %v1957 = vadd.f32 %v1819, %v1911
    %v1958 = vadd.f32 %v1820, %v1950
    %v1959 = vadd.f32 %v1821, %v1952
    %v1960 = vpack.c.bf16 %v305, %v305
    %v1961 = vld [vmem:[#allocation2 + $0x300] sm:$0xff]
    %v1962 = vld [vmem:[#allocation2 + $0x308] sm:$0xff]
    %v1963 = vld [vmem:[#allocation2 + $0x310] sm:$0xff]
    %v1964 = vld [vmem:[#allocation2 + $0x318] sm:$0xff]
    %v1965 = vld [vmem:[#allocation2 + $0x320] sm:$0xff]
    %v1966 = vld [vmem:[#allocation2 + $0x328] sm:$0xff]
    %v1967 = vld [vmem:[#allocation2 + $0x330] sm:$0xff]
    %v1968 = vld [vmem:[#allocation2 + $0x338] sm:$0xff]
    %v1977 = vunpack.c.l.b16 %v1961
    %v1978 = vunpack.c.h.b16 %v1961
    %v1979 = vunpack.c.l.b16 %v1962
    %v1980 = vunpack.c.h.b16 %v1962
    %v1981 = vunpack.c.l.b16 %v1963
    %v1982 = vunpack.c.h.b16 %v1963
    %v1983 = vunpack.c.l.b16 %v1964
    %v1984 = vunpack.c.h.b16 %v1964
    %v1985 = vunpack.c.l.b16 %v1965
    %v1986 = vunpack.c.h.b16 %v1965
    %v1987 = vunpack.c.l.b16 %v1966
    %v1988 = vunpack.c.h.b16 %v1966
    %v1989 = vunpack.c.l.b16 %v1967
    %v1990 = vunpack.c.h.b16 %v1967
    %v1991 = vunpack.c.l.b16 %v1968
    %v1992 = vunpack.c.h.b16 %v1968
    %v1993 = vpack.c.b16 %v1981, %v1977
    %v1994 = vpack.c.b16 %v1982, %v1978
    %v1995 = vpack.c.b16 %v1983, %v1979
    %v1996 = vpack.c.b16 %v1984, %v1980
    %v1997 = vpack.c.b16 %v1989, %v1985
    %v1998 = vpack.c.b16 %v1990, %v1986
    %v1999 = vpack.c.b16 %v1991, %v1987
    %v2000 = vpack.c.b16 %v1992, %v1988
    %v2010 = vsel %vm367, %v1960, 0
    %2012 = vmatprep.subr.bf16.mxu0 %v1994
    %2013 = vmatpush1.bf16.msra.mxu0 %v1993
    %2014 = vmatprep.subr.bf16.mxu0 %v1998
    %2015 = vmatpush1.bf16.msra.mxu0 %v1997
    %2016 = vmatprep.subr.bf16.mxu0 0
    %2017 = vmatpush1.bf16.msra.mxu0 0
    %2018 = vmatprep.subr.bf16.mxu0 0
    %2019 = vmatpush1.bf16.msra.mxu0 0
    %2020 = vmatprep.subr.bf16.mxu0 0
    %2021 = vmatpush1.bf16.msra.mxu0 0
    %2022 = vmatprep.subr.bf16.mxu0 0
    %2023 = vmatpush1.bf16.msra.mxu0 0
    %2024 = vmatprep.subr.bf16.mxu0 0
    %2025 = vmatpush1.bf16.msra.mxu0 0
    %2026 = vmatprep.subr.bf16.mxu0 0
    %2027 = vmatpush1.bf16.msra.mxu0 0
    %2028 = vmatprep.subr.bf16.mxu0 0
    %2029 = vmatpush1.bf16.msra.mxu0 0
    %2030 = vmatprep.subr.bf16.mxu0 0
    %2031 = vmatpush1.bf16.msra.mxu0 0
    %2032 = vmatprep.subr.bf16.mxu0 0
    %2033 = vmatpush1.bf16.msra.mxu0 0
    %2034 = vmatprep.subr.bf16.mxu0 0
    %2035 = vmatpush1.bf16.msra.mxu0 0
    %2036 = vmatprep.subr.bf16.mxu0 0
    %2037 = vmatpush1.bf16.msra.mxu0 0
    %2038 = vmatprep.subr.bf16.mxu0 0
    %2039 = vmatpush1.bf16.msra.mxu0 0
    %2040 = vmatprep.subr.bf16.mxu0 0
    %2041 = vmatpush1.bf16.msra.mxu0 0
    %2042 = vmatprep.subr.bf16.mxu0 0
    %2043 = vmatpush1.bf16.msra.mxu0 0
    %2044 = vmatprep.mubr.bf16.mxu0 0
    %2045 = vmatmul.mubr.bf16.gmra.mrb[0].mxu0 %v2010
    %v2046 = vpop.f32.mrb[0].mxu0
    %v2047 = vadd.f32 0.0, %v2046
    %v2048 = vpop.f32.mrb[0].mxu0
    %v2049 = vadd.f32 0.0, %v2048
    %v2050 = vpop.f32.mrb[0].mxu0
    %v2051 = vpop.f32.mrb[0].mxu0
    %2052 = vdwg.mxu0
    %2053 = vmatprep.subr.bf16.mxu0 %v1996
    %2054 = vmatpush1.bf16.msra.mxu0 %v1995
    %2055 = vmatprep.subr.bf16.mxu0 %v2000
    %2056 = vmatpush1.bf16.msra.mxu0 %v1999
    %2057 = vmatprep.subr.bf16.mxu0 0
    %2058 = vmatpush1.bf16.msra.mxu0 0
    %2059 = vmatprep.subr.bf16.mxu0 0
    %2060 = vmatpush1.bf16.msra.mxu0 0
    %2061 = vmatprep.subr.bf16.mxu0 0
    %2062 = vmatpush1.bf16.msra.mxu0 0
    %2063 = vmatprep.subr.bf16.mxu0 0
    %2064 = vmatpush1.bf16.msra.mxu0 0
    %2065 = vmatprep.subr.bf16.mxu0 0
    %2066 = vmatpush1.bf16.msra.mxu0 0
    %2067 = vmatprep.subr.bf16.mxu0 0
    %2068 = vmatpush1.bf16.msra.mxu0 0
    %2069 = vmatprep.subr.bf16.mxu0 0
    %2070 = vmatpush1.bf16.msra.mxu0 0
    %2071 = vmatprep.subr.bf16.mxu0 0
    %2072 = vmatpush1.bf16.msra.mxu0 0
    %2073 = vmatprep.subr.bf16.mxu0 0
    %2074 = vmatpush1.bf16.msra.mxu0 0
    %2075 = vmatprep.subr.bf16.mxu0 0
    %2076 = vmatpush1.bf16.msra.mxu0 0
    %2077 = vmatprep.subr.bf16.mxu0 0
    %2078 = vmatpush1.bf16.msra.mxu0 0
    %2079 = vmatprep.subr.bf16.mxu0 0
    %2080 = vmatpush1.bf16.msra.mxu0 0
    %2081 = vmatprep.subr.bf16.mxu0 0
    %2082 = vmatpush1.bf16.msra.mxu0 0
    %2083 = vmatprep.subr.bf16.mxu0 0
    %2084 = vmatpush1.bf16.msra.mxu0 0
    %2085 = vmatprep.mubr.bf16.mxu0 0
    %2086 = vmatmul.mubr.bf16.gmra.mrb[0].mxu0 %v2010
    %v2087 = vpop.f32.mrb[0].mxu0
    %v2088 = vadd.f32 0.0, %v2087
    %v2089 = vpop.f32.mrb[0].mxu0
    %v2090 = vadd.f32 0.0, %v2089
    %v2091 = vpop.f32.mrb[0].mxu0
    %v2092 = vpop.f32.mrb[0].mxu0
    %2093 = vdwg.mxu0
    %v2094 = vadd.f32 %v1956, %v2047
    %v2095 = vadd.f32 %v1957, %v2049
    %v2096 = vadd.f32 %v1958, %v2088
    %v2097 = vadd.f32 %v1959, %v2090
    %v2098 = vld [vmem:[#allocation2 + $0x340] sm:$0xff]
    %v2099 = vld [vmem:[#allocation2 + $0x348] sm:$0xff]
    %v2100 = vld [vmem:[#allocation2 + $0x350] sm:$0xff]
    %v2101 = vld [vmem:[#allocation2 + $0x358] sm:$0xff]
    %v2102 = vld [vmem:[#allocation2 + $0x360] sm:$0xff]
    %v2103 = vld [vmem:[#allocation2 + $0x368] sm:$0xff]
    %v2104 = vld [vmem:[#allocation2 + $0x370] sm:$0xff]
    %v2105 = vld [vmem:[#allocation2 + $0x378] sm:$0xff]
    %v2107 = vrot.slane %v1960, 1
    %v2116 = vunpack.c.l.b16 %v2098
    %v2117 = vunpack.c.h.b16 %v2098
    %v2118 = vunpack.c.l.b16 %v2099
    %v2119 = vunpack.c.h.b16 %v2099
    %v2120 = vunpack.c.l.b16 %v2100
    %v2121 = vunpack.c.h.b16 %v2100
    %v2122 = vunpack.c.l.b16 %v2101
    %v2123 = vunpack.c.h.b16 %v2101
    %v2124 = vunpack.c.l.b16 %v2102
    %v2125 = vunpack.c.h.b16 %v2102
    %v2126 = vunpack.c.l.b16 %v2103
    %v2127 = vunpack.c.h.b16 %v2103
    %v2128 = vunpack.c.l.b16 %v2104
    %v2129 = vunpack.c.h.b16 %v2104
    %v2130 = vunpack.c.l.b16 %v2105
    %v2131 = vunpack.c.h.b16 %v2105
    %v2132 = vpack.c.b16 %v2120, %v2116
    %v2133 = vpack.c.b16 %v2121, %v2117
    %v2134 = vpack.c.b16 %v2122, %v2118
    %v2135 = vpack.c.b16 %v2123, %v2119
    %v2136 = vpack.c.b16 %v2128, %v2124
    %v2137 = vpack.c.b16 %v2129, %v2125
    %v2138 = vpack.c.b16 %v2130, %v2126
    %v2139 = vpack.c.b16 %v2131, %v2127
    %v2149 = vsel %vm367, %v2107, 0
    %2151 = vmatprep.subr.bf16.mxu0 %v2133
    %2152 = vmatpush1.bf16.msra.mxu0 %v2132
    %2153 = vmatprep.subr.bf16.mxu0 %v2137
    %2154 = vmatpush1.bf16.msra.mxu0 %v2136
    %2155 = vmatprep.subr.bf16.mxu0 0
    %2156 = vmatpush1.bf16.msra.mxu0 0
    %2157 = vmatprep.subr.bf16.mxu0 0
    %2158 = vmatpush1.bf16.msra.mxu0 0
    %2159 = vmatprep.subr.bf16.mxu0 0
    %2160 = vmatpush1.bf16.msra.mxu0 0
    %2161 = vmatprep.subr.bf16.mxu0 0
    %2162 = vmatpush1.bf16.msra.mxu0 0
    %2163 = vmatprep.subr.bf16.mxu0 0
    %2164 = vmatpush1.bf16.msra.mxu0 0
    %2165 = vmatprep.subr.bf16.mxu0 0
    %2166 = vmatpush1.bf16.msra.mxu0 0
    %2167 = vmatprep.subr.bf16.mxu0 0
    %2168 = vmatpush1.bf16.msra.mxu0 0
    %2169 = vmatprep.subr.bf16.mxu0 0
    %2170 = vmatpush1.bf16.msra.mxu0 0
    %2171 = vmatprep.subr.bf16.mxu0 0
    %2172 = vmatpush1.bf16.msra.mxu0 0
    %2173 = vmatprep.subr.bf16.mxu0 0
    %2174 = vmatpush1.bf16.msra.mxu0 0
    %2175 = vmatprep.subr.bf16.mxu0 0
    %2176 = vmatpush1.bf16.msra.mxu0 0
    %2177 = vmatprep.subr.bf16.mxu0 0
    %2178 = vmatpush1.bf16.msra.mxu0 0
    %2179 = vmatprep.subr.bf16.mxu0 0
    %2180 = vmatpush1.bf16.msra.mxu0 0
    %2181 = vmatprep.subr.bf16.mxu0 0
    %2182 = vmatpush1.bf16.msra.mxu0 0
    %2183 = vmatprep.mubr.bf16.mxu0 0
    %2184 = vmatmul.mubr.bf16.gmra.mrb[0].mxu0 %v2149
    %v2185 = vpop.f32.mrb[0].mxu0
    %v2186 = vadd.f32 0.0, %v2185
    %v2187 = vpop.f32.mrb[0].mxu0
    %v2188 = vadd.f32 0.0, %v2187
    %v2189 = vpop.f32.mrb[0].mxu0
    %v2190 = vpop.f32.mrb[0].mxu0
    %2191 = vdwg.mxu0
    %2192 = vmatprep.subr.bf16.mxu0 %v2135
    %2193 = vmatpush1.bf16.msra.mxu0 %v2134
    %2194 = vmatprep.subr.bf16.mxu0 %v2139
    %2195 = vmatpush1.bf16.msra.mxu0 %v2138
    %2196 = vmatprep.subr.bf16.mxu0 0
    %2197 = vmatpush1.bf16.msra.mxu0 0
    %2198 = vmatprep.subr.bf16.mxu0 0
    %2199 = vmatpush1.bf16.msra.mxu0 0
    %2200 = vmatprep.subr.bf16.mxu0 0
    %2201 = vmatpush1.bf16.msra.mxu0 0
    %2202 = vmatprep.subr.bf16.mxu0 0
    %2203 = vmatpush1.bf16.msra.mxu0 0
    %2204 = vmatprep.subr.bf16.mxu0 0
    %2205 = vmatpush1.bf16.msra.mxu0 0
    %2206 = vmatprep.subr.bf16.mxu0 0
    %2207 = vmatpush1.bf16.msra.mxu0 0
    %2208 = vmatprep.subr.bf16.mxu0 0
    %2209 = vmatpush1.bf16.msra.mxu0 0
    %2210 = vmatprep.subr.bf16.mxu0 0
    %2211 = vmatpush1.bf16.msra.mxu0 0
    %2212 = vmatprep.subr.bf16.mxu0 0
    %2213 = vmatpush1.bf16.msra.mxu0 0
    %2214 = vmatprep.subr.bf16.mxu0 0
    %2215 = vmatpush1.bf16.msra.mxu0 0
    %2216 = vmatprep.subr.bf16.mxu0 0
    %2217 = vmatpush1.bf16.msra.mxu0 0
    %2218 = vmatprep.subr.bf16.mxu0 0
    %2219 = vmatpush1.bf16.msra.mxu0 0
    %2220 = vmatprep.subr.bf16.mxu0 0
    %2221 = vmatpush1.bf16.msra.mxu0 0
    %2222 = vmatprep.subr.bf16.mxu0 0
    %2223 = vmatpush1.bf16.msra.mxu0 0
    %2224 = vmatprep.mubr.bf16.mxu0 0
    %2225 = vmatmul.mubr.bf16.gmra.mrb[0].mxu0 %v2149
    %v2226 = vpop.f32.mrb[0].mxu0
    %v2227 = vadd.f32 0.0, %v2226
    %v2228 = vpop.f32.mrb[0].mxu0
    %v2229 = vadd.f32 0.0, %v2228
    %v2230 = vpop.f32.mrb[0].mxu0
    %v2231 = vpop.f32.mrb[0].mxu0
    %2232 = vdwg.mxu0
    %v2233 = vadd.f32 %v2094, %v2186
    %v2234 = vadd.f32 %v2095, %v2188
    %v2235 = vadd.f32 %v2096, %v2227
    %v2236 = vadd.f32 %v2097, %v2229
    %v2237 = vld [vmem:[#allocation2 + $0x380] sm:$0xff]
    %v2238 = vld [vmem:[#allocation2 + $0x388] sm:$0xff]
    %v2239 = vld [vmem:[#allocation2 + $0x390] sm:$0xff]
    %v2240 = vld [vmem:[#allocation2 + $0x398] sm:$0xff]
    %v2241 = vld [vmem:[#allocation2 + $0x3a0] sm:$0xff]
    %v2242 = vld [vmem:[#allocation2 + $0x3a8] sm:$0xff]
    %v2243 = vld [vmem:[#allocation2 + $0x3b0] sm:$0xff]
    %v2244 = vld [vmem:[#allocation2 + $0x3b8] sm:$0xff]
    %v2245 = vrot.slane %v1960, 2
    %v2254 = vunpack.c.l.b16 %v2237
    %v2255 = vunpack.c.h.b16 %v2237
    %v2256 = vunpack.c.l.b16 %v2238
    %v2257 = vunpack.c.h.b16 %v2238
    %v2258 = vunpack.c.l.b16 %v2239
    %v2259 = vunpack.c.h.b16 %v2239
    %v2260 = vunpack.c.l.b16 %v2240
    %v2261 = vunpack.c.h.b16 %v2240
    %v2262 = vunpack.c.l.b16 %v2241
    %v2263 = vunpack.c.h.b16 %v2241
    %v2264 = vunpack.c.l.b16 %v2242
    %v2265 = vunpack.c.h.b16 %v2242
    %v2266 = vunpack.c.l.b16 %v2243
    %v2267 = vunpack.c.h.b16 %v2243
    %v2268 = vunpack.c.l.b16 %v2244
    %v2269 = vunpack.c.h.b16 %v2244
    %v2270 = vpack.c.b16 %v2258, %v2254
    %v2271 = vpack.c.b16 %v2259, %v2255
    %v2272 = vpack.c.b16 %v2260, %v2256
    %v2273 = vpack.c.b16 %v2261, %v2257
    %v2274 = vpack.c.b16 %v2266, %v2262
    %v2275 = vpack.c.b16 %v2267, %v2263
    %v2276 = vpack.c.b16 %v2268, %v2264
    %v2277 = vpack.c.b16 %v2269, %v2265
    %v2287 = vsel %vm367, %v2245, 0
    %2289 = vmatprep.subr.bf16.mxu0 %v2271
    %2290 = vmatpush1.bf16.msra.mxu0 %v2270
    %2291 = vmatprep.subr.bf16.mxu0 %v2275
    %2292 = vmatpush1.bf16.msra.mxu0 %v2274
    %2293 = vmatprep.subr.bf16.mxu0 0
    %2294 = vmatpush1.bf16.msra.mxu0 0
    %2295 = vmatprep.subr.bf16.mxu0 0
    %2296 = vmatpush1.bf16.msra.mxu0 0
    %2297 = vmatprep.subr.bf16.mxu0 0
    %2298 = vmatpush1.bf16.msra.mxu0 0
    %2299 = vmatprep.subr.bf16.mxu0 0
    %2300 = vmatpush1.bf16.msra.mxu0 0
    %2301 = vmatprep.subr.bf16.mxu0 0
    %2302 = vmatpush1.bf16.msra.mxu0 0
    %2303 = vmatprep.subr.bf16.mxu0 0
    %2304 = vmatpush1.bf16.msra.mxu0 0
    %2305 = vmatprep.subr.bf16.mxu0 0
    %2306 = vmatpush1.bf16.msra.mxu0 0
    %2307 = vmatprep.subr.bf16.mxu0 0
    %2308 = vmatpush1.bf16.msra.mxu0 0
    %2309 = vmatprep.subr.bf16.mxu0 0
    %2310 = vmatpush1.bf16.msra.mxu0 0
    %2311 = vmatprep.subr.bf16.mxu0 0
    %2312 = vmatpush1.bf16.msra.mxu0 0
    %2313 = vmatprep.subr.bf16.mxu0 0
    %2314 = vmatpush1.bf16.msra.mxu0 0
    %2315 = vmatprep.subr.bf16.mxu0 0
    %2316 = vmatpush1.bf16.msra.mxu0 0
    %2317 = vmatprep.subr.bf16.mxu0 0
    %2318 = vmatpush1.bf16.msra.mxu0 0
    %2319 = vmatprep.subr.bf16.mxu0 0
    %2320 = vmatpush1.bf16.msra.mxu0 0
    %2321 = vmatprep.mubr.bf16.mxu0 0
    %2322 = vmatmul.mubr.bf16.gmra.mrb[0].mxu0 %v2287
    %v2323 = vpop.f32.mrb[0].mxu0
    %v2324 = vadd.f32 0.0, %v2323
    %v2325 = vpop.f32.mrb[0].mxu0
    %v2326 = vadd.f32 0.0, %v2325
    %v2327 = vpop.f32.mrb[0].mxu0
    %v2328 = vpop.f32.mrb[0].mxu0
    %2329 = vdwg.mxu0
    %2330 = vmatprep.subr.bf16.mxu0 %v2273
    %2331 = vmatpush1.bf16.msra.mxu0 %v2272
    %2332 = vmatprep.subr.bf16.mxu0 %v2277
    %2333 = vmatpush1.bf16.msra.mxu0 %v2276
    %2334 = vmatprep.subr.bf16.mxu0 0
    %2335 = vmatpush1.bf16.msra.mxu0 0
    %2336 = vmatprep.subr.bf16.mxu0 0
    %2337 = vmatpush1.bf16.msra.mxu0 0
    %2338 = vmatprep.subr.bf16.mxu0 0
    %2339 = vmatpush1.bf16.msra.mxu0 0
    %2340 = vmatprep.subr.bf16.mxu0 0
    %2341 = vmatpush1.bf16.msra.mxu0 0
    %2342 = vmatprep.subr.bf16.mxu0 0
    %2343 = vmatpush1.bf16.msra.mxu0 0
    %2344 = vmatprep.subr.bf16.mxu0 0
    %2345 = vmatpush1.bf16.msra.mxu0 0
    %2346 = vmatprep.subr.bf16.mxu0 0
    %2347 = vmatpush1.bf16.msra.mxu0 0
    %2348 = vmatprep.subr.bf16.mxu0 0
    %2349 = vmatpush1.bf16.msra.mxu0 0
    %2350 = vmatprep.subr.bf16.mxu0 0
    %2351 = vmatpush1.bf16.msra.mxu0 0
    %2352 = vmatprep.subr.bf16.mxu0 0
    %2353 = vmatpush1.bf16.msra.mxu0 0
    %2354 = vmatprep.subr.bf16.mxu0 0
    %2355 = vmatpush1.bf16.msra.mxu0 0
    %2356 = vmatprep.subr.bf16.mxu0 0
    %2357 = vmatpush1.bf16.msra.mxu0 0
    %2358 = vmatprep.subr.bf16.mxu0 0
    %2359 = vmatpush1.bf16.msra.mxu0 0
    %2360 = vmatprep.subr.bf16.mxu0 0
    %2361 = vmatpush1.bf16.msra.mxu0 0
    %2362 = vmatprep.mubr.bf16.mxu0 0
    %2363 = vmatmul.mubr.bf16.gmra.mrb[0].mxu0 %v2287
    %v2364 = vpop.f32.mrb[0].mxu0
    %v2365 = vadd.f32 0.0, %v2364
    %v2366 = vpop.f32.mrb[0].mxu0
    %v2367 = vadd.f32 0.0, %v2366
    %v2368 = vpop.f32.mrb[0].mxu0
    %v2369 = vpop.f32.mrb[0].mxu0
    %2370 = vdwg.mxu0
    %v2371 = vadd.f32 %v2233, %v2324
    %v2372 = vadd.f32 %v2234, %v2326
    %v2373 = vadd.f32 %v2235, %v2365
    %v2374 = vadd.f32 %v2236, %v2367
    %v2375 = vld [vmem:[#allocation2 + $0x3c0] sm:$0xff]
    %v2376 = vld [vmem:[#allocation2 + $0x3c8] sm:$0xff]
    %v2377 = vld [vmem:[#allocation2 + $0x3d0] sm:$0xff]
    %v2378 = vld [vmem:[#allocation2 + $0x3d8] sm:$0xff]
    %v2379 = vld [vmem:[#allocation2 + $0x3e0] sm:$0xff]
    %v2380 = vld [vmem:[#allocation2 + $0x3e8] sm:$0xff]
    %v2381 = vld [vmem:[#allocation2 + $0x3f0] sm:$0xff]
    %v2382 = vld [vmem:[#allocation2 + $0x3f8] sm:$0xff]
    %v2383 = vrot.slane %v1960, 3
    %v2392 = vunpack.c.l.b16 %v2375
    %v2393 = vunpack.c.h.b16 %v2375
    %v2394 = vunpack.c.l.b16 %v2376
    %v2395 = vunpack.c.h.b16 %v2376
    %v2396 = vunpack.c.l.b16 %v2377
    %v2397 = vunpack.c.h.b16 %v2377
    %v2398 = vunpack.c.l.b16 %v2378
    %v2399 = vunpack.c.h.b16 %v2378
    %v2400 = vunpack.c.l.b16 %v2379
    %v2401 = vunpack.c.h.b16 %v2379
    %v2402 = vunpack.c.l.b16 %v2380
    %v2403 = vunpack.c.h.b16 %v2380
    %v2404 = vunpack.c.l.b16 %v2381
    %v2405 = vunpack.c.h.b16 %v2381
    %v2406 = vunpack.c.l.b16 %v2382
    %v2407 = vunpack.c.h.b16 %v2382
    %v2408 = vpack.c.b16 %v2396, %v2392
    %v2409 = vpack.c.b16 %v2397, %v2393
    %v2410 = vpack.c.b16 %v2398, %v2394
    %v2411 = vpack.c.b16 %v2399, %v2395
    %v2412 = vpack.c.b16 %v2404, %v2400
    %v2413 = vpack.c.b16 %v2405, %v2401
    %v2414 = vpack.c.b16 %v2406, %v2402
    %v2415 = vpack.c.b16 %v2407, %v2403
    %v2425 = vsel %vm367, %v2383, 0
    %2427 = vmatprep.subr.bf16.mxu0 %v2409
    %2428 = vmatpush1.bf16.msra.mxu0 %v2408
    %2429 = vmatprep.subr.bf16.mxu0 %v2413
    %2430 = vmatpush1.bf16.msra.mxu0 %v2412
    %2431 = vmatprep.subr.bf16.mxu0 0
    %2432 = vmatpush1.bf16.msra.mxu0 0
    %2433 = vmatprep.subr.bf16.mxu0 0
    %2434 = vmatpush1.bf16.msra.mxu0 0
    %2435 = vmatprep.subr.bf16.mxu0 0
    %2436 = vmatpush1.bf16.msra.mxu0 0
    %2437 = vmatprep.subr.bf16.mxu0 0
    %2438 = vmatpush1.bf16.msra.mxu0 0
    %2439 = vmatprep.subr.bf16.mxu0 0
    %2440 = vmatpush1.bf16.msra.mxu0 0
    %2441 = vmatprep.subr.bf16.mxu0 0
    %2442 = vmatpush1.bf16.msra.mxu0 0
    %2443 = vmatprep.subr.bf16.mxu0 0
    %2444 = vmatpush1.bf16.msra.mxu0 0
    %2445 = vmatprep.subr.bf16.mxu0 0
    %2446 = vmatpush1.bf16.msra.mxu0 0
    %2447 = vmatprep.subr.bf16.mxu0 0
    %2448 = vmatpush1.bf16.msra.mxu0 0
    %2449 = vmatprep.subr.bf16.mxu0 0
    %2450 = vmatpush1.bf16.msra.mxu0 0
    %2451 = vmatprep.subr.bf16.mxu0 0
    %2452 = vmatpush1.bf16.msra.mxu0 0
    %2453 = vmatprep.subr.bf16.mxu0 0
    %2454 = vmatpush1.bf16.msra.mxu0 0
    %2455 = vmatprep.subr.bf16.mxu0 0
    %2456 = vmatpush1.bf16.msra.mxu0 0
    %2457 = vmatprep.subr.bf16.mxu0 0
    %2458 = vmatpush1.bf16.msra.mxu0 0
    %2459 = vmatprep.mubr.bf16.mxu0 0
    %2460 = vmatmul.mubr.bf16.gmra.mrb[0].mxu0 %v2425
    %v2461 = vpop.f32.mrb[0].mxu0
    %v2462 = vadd.f32 0.0, %v2461
    %v2463 = vpop.f32.mrb[0].mxu0
    %v2464 = vadd.f32 0.0, %v2463
    %v2465 = vpop.f32.mrb[0].mxu0
    %v2466 = vpop.f32.mrb[0].mxu0
    %2467 = vdwg.mxu0
    %2468 = vmatprep.subr.bf16.mxu0 %v2411
    %2469 = vmatpush1.bf16.msra.mxu0 %v2410
    %2470 = vmatprep.subr.bf16.mxu0 %v2415
    %2471 = vmatpush1.bf16.msra.mxu0 %v2414
    %2472 = vmatprep.subr.bf16.mxu0 0
    %2473 = vmatpush1.bf16.msra.mxu0 0
    %2474 = vmatprep.subr.bf16.mxu0 0
    %2475 = vmatpush1.bf16.msra.mxu0 0
    %2476 = vmatprep.subr.bf16.mxu0 0
    %2477 = vmatpush1.bf16.msra.mxu0 0
    %2478 = vmatprep.subr.bf16.mxu0 0
    %2479 = vmatpush1.bf16.msra.mxu0 0
    %2480 = vmatprep.subr.bf16.mxu0 0
    %2481 = vmatpush1.bf16.msra.mxu0 0
    %2482 = vmatprep.subr.bf16.mxu0 0
    %2483 = vmatpush1.bf16.msra.mxu0 0
    %2484 = vmatprep.subr.bf16.mxu0 0
    %2485 = vmatpush1.bf16.msra.mxu0 0
    %2486 = vmatprep.subr.bf16.mxu0 0
    %2487 = vmatpush1.bf16.msra.mxu0 0
    %2488 = vmatprep.subr.bf16.mxu0 0
    %2489 = vmatpush1.bf16.msra.mxu0 0
    %2490 = vmatprep.subr.bf16.mxu0 0
    %2491 = vmatpush1.bf16.msra.mxu0 0
    %2492 = vmatprep.subr.bf16.mxu0 0
    %2493 = vmatpush1.bf16.msra.mxu0 0
    %2494 = vmatprep.subr.bf16.mxu0 0
    %2495 = vmatpush1.bf16.msra.mxu0 0
    %2496 = vmatprep.subr.bf16.mxu0 0
    %2497 = vmatpush1.bf16.msra.mxu0 0
    %2498 = vmatprep.subr.bf16.mxu0 0
    %2499 = vmatpush1.bf16.msra.mxu0 0
    %2500 = vmatprep.mubr.bf16.mxu0 0
    %2501 = vmatmul.mubr.bf16.gmra.mrb[0].mxu0 %v2425
    %v2502 = vpop.f32.mrb[0].mxu0
    %v2503 = vadd.f32 0.0, %v2502
    %v2504 = vpop.f32.mrb[0].mxu0
    %v2505 = vadd.f32 0.0, %v2504
    %v2506 = vpop.f32.mrb[0].mxu0
    %v2507 = vpop.f32.mrb[0].mxu0
    %2508 = vdwg.mxu0
    %v2509 = vadd.f32 %v2371, %v2462
    %v2510 = vadd.f32 %v2372, %v2464
    %v2511 = vadd.f32 %v2373, %v2503
    %v2512 = vadd.f32 %v2374, %v2505
    %vm2513 = vcmask 1041408
    %v2514 = vsel %vm2513, %v2509, 0.0
    %v2515 = vrot.slane %v2514, 4
    %v2516 = vadd.f32 %v2514, %v2515
    %v2517 = vrot.slane %v2516, 2
    %v2518 = vadd.f32 %v2516, %v2517
    %v2519 = vrot.slane %v2518, 1
    %v2520 = vadd.f32 %v2518, %v2519
    %v2521 = vsel %vm2513, %v2510, 0.0
    %v2522 = vrot.slane %v2521, 4
    %v2523 = vadd.f32 %v2521, %v2522
    %v2524 = vrot.slane %v2523, 2
    %v2525 = vadd.f32 %v2523, %v2524
    %v2526 = vrot.slane %v2525, 1
    %v2527 = vadd.f32 %v2525, %v2526
    %v2528 = vsel %vm2513, %v2511, 0.0
    %v2529 = vrot.slane %v2528, 4
    %v2530 = vadd.f32 %v2528, %v2529
    %v2531 = vrot.slane %v2530, 2
    %v2532 = vadd.f32 %v2530, %v2531
    %v2533 = vrot.slane %v2532, 1
    %v2534 = vadd.f32 %v2532, %v2533
    %v2535 = vsel %vm2513, %v2512, 0.0
    %v2536 = vrot.slane %v2535, 4
    %v2537 = vadd.f32 %v2535, %v2536
    %v2538 = vrot.slane %v2537, 2
    %v2539 = vadd.f32 %v2537, %v2538
    %v2540 = vrot.slane %v2539, 1
    %v2541 = vadd.f32 %v2539, %v2540
    %v2542 = vmul.f32 %v2509, %v2509
    %v2543 = vmul.f32 %v2510, %v2510
    %v2544 = vmul.f32 %v2511, %v2511
    %v2545 = vmul.f32 %v2512, %v2512
    %v2546 = vsel %vm2513, %v2542, 0.0
    %v2547 = vrot.slane %v2546, 4
    %v2548 = vadd.f32 %v2546, %v2547
    %v2549 = vrot.slane %v2548, 2
    %v2550 = vadd.f32 %v2548, %v2549
    %v2551 = vrot.slane %v2550, 1
    %v2552 = vadd.f32 %v2550, %v2551
    %v2553 = vsel %vm2513, %v2543, 0.0
    %v2554 = vrot.slane %v2553, 4
    %v2555 = vadd.f32 %v2553, %v2554
    %v2556 = vrot.slane %v2555, 2
    %v2557 = vadd.f32 %v2555, %v2556
    %v2558 = vrot.slane %v2557, 1
    %v2559 = vadd.f32 %v2557, %v2558
    %v2560 = vsel %vm2513, %v2544, 0.0
    %v2561 = vrot.slane %v2560, 4
    %v2562 = vadd.f32 %v2560, %v2561
    %v2563 = vrot.slane %v2562, 2
    %v2564 = vadd.f32 %v2562, %v2563
    %v2565 = vrot.slane %v2564, 1
    %v2566 = vadd.f32 %v2564, %v2565
    %v2567 = vsel %vm2513, %v2545, 0.0
    %v2568 = vrot.slane %v2567, 4
    %v2569 = vadd.f32 %v2567, %v2568
    %v2570 = vrot.slane %v2569, 2
    %v2571 = vadd.f32 %v2569, %v2570
    %v2572 = vrot.slane %v2571, 1
    %v2573 = vadd.f32 %v2571, %v2572
    %vm2574 = vcmask 1040384
    %v2575 = vsel %vm2574, %v2520, %v2552
    %v2576 = vsel %vm2574, %v2527, %v2559
    %v2577 = vsel %vm2574, %v2534, %v2566
    %v2578 = vsel %vm2574, %v2541, %v2573
    %v2579 = vmul.f32 %v2575, 0.00390625
    %v2580 = vmul.f32 %v2576, 0.00390625
    %v2581 = vmul.f32 %v2577, 0.00390625
    %v2582 = vmul.f32 %v2578, 0.00390625
    %2583 = vmatprep.subr.mxu0 0.0
    %2584 = vmatpush1.msra.mxu0 %v93
    %2585 = vmatprep.subr.mxu0 0.0
    %2586 = vmatpush1.msra.mxu0 %v94
    %2587 = vmatprep.subr.mxu0 0.0
    %2588 = vmatpush1.msra.mxu0 %v95
    %2589 = vmatprep.subr.mxu0 0.0
    %2590 = vmatpush1.msra.mxu0 %v96
    %2591 = vmatprep.subr.mxu0 0.0
    %2592 = vmatpush1.msra.mxu0 %v97
    %2593 = vmatprep.subr.mxu0 0.0
    %2594 = vmatpush1.msra.mxu0 %v98
    %2595 = vmatprep.subr.mxu0 0.0
    %2596 = vmatpush1.msra.mxu0 %v99
    %2597 = vmatprep.subr.mxu0 0.0
    %2598 = vmatpush1.msra.mxu0 %v100
    %2599 = vmatprep.subr.mxu0 0.0
    %2600 = vmatpush1.msra.mxu0 %v101
    %2601 = vmatprep.subr.mxu0 0.0
    %2602 = vmatpush1.msra.mxu0 %v102
    %2603 = vmatprep.subr.mxu0 0.0
    %2604 = vmatpush1.msra.mxu0 %v103
    %2605 = vmatprep.subr.mxu0 0.0
    %2606 = vmatpush1.msra.mxu0 %v104
    %2607 = vmatprep.subr.mxu0 0.0
    %2608 = vmatpush1.msra.mxu0 %v105
    %2609 = vmatprep.subr.mxu0 0.0
    %2610 = vmatpush1.msra.mxu0 %v106
    %2611 = vmatprep.subr.mxu0 0.0
    %2612 = vmatpush1.msra.mxu0 %v107
    %2613 = vmatprep.subr.mxu0 0.0
    %2614 = vmatpush1.msra.mxu0 %v108
    %2615 = vmatprep.subr.mxu0 0.0
    %2616 = vmatpush1.msra.mxu0 %v109
    %2617 = vmatprep.subr.mxu0 0.0
    %2618 = vmatpush1.msra.mxu0 %v110
    %2619 = vmatprep.subr.mxu0 0.0
    %2620 = vmatpush1.msra.mxu0 %v111
    %2621 = vmatprep.subr.mxu0 0.0
    %2622 = vmatpush1.msra.mxu0 %v112
    %2623 = vmatprep.subr.mxu0 0.0
    %2624 = vmatpush1.msra.mxu0 %v113
    %2625 = vmatprep.subr.mxu0 0.0
    %2626 = vmatpush1.msra.mxu0 %v114
    %2627 = vmatprep.subr.mxu0 0.0
    %2628 = vmatpush1.msra.mxu0 %v115
    %2629 = vmatprep.subr.mxu0 0.0
    %2630 = vmatpush1.msra.mxu0 %v116
    %2631 = vmatprep.subr.mxu0 0.0
    %2632 = vmatpush1.msra.mxu0 %v117
    %2633 = vmatprep.subr.mxu0 0.0
    %2634 = vmatpush1.msra.mxu0 %v118
    %2635 = vmatprep.subr.mxu0 0.0
    %2636 = vmatpush1.msra.mxu0 %v119
    %2637 = vmatprep.subr.mxu0 0.0
    %2638 = vmatpush1.msra.mxu0 %v120
    %2639 = vmatprep.subr.mxu0 0.0
    %2640 = vmatpush1.msra.mxu0 %v121
    %2641 = vmatprep.subr.mxu0 0.0
    %2642 = vmatpush1.msra.mxu0 %v122
    %2643 = vmatprep.subr.mxu0 0.0
    %2644 = vmatpush1.msra.mxu0 %v123
    %2645 = vmatprep.subr.mxu0 0.0
    %2646 = vmatpush1.msra.mxu0 %v124
    %2647 = vmatprep.mubr.f32.mxu0 %v2580
    %2648 = vmatmul.mubr.f32.gmra.mrb[0].mxu0 %v2579
    %v2649 = vpop.f32.mrb[0].mxu0
    %v2650 = vadd.f32 0.0, %v2649
    %v2651 = vpop.f32.mrb[0].mxu0
    %2652 = vdwg.mxu0
    %2653 = vmatprep.subr.mxu0 0.0
    %2654 = vmatpush1.msra.mxu0 %v125
    %2655 = vmatprep.subr.mxu0 0.0
    %2656 = vmatpush1.msra.mxu0 %v126
    %2657 = vmatprep.subr.mxu0 0.0
    %2658 = vmatpush1.msra.mxu0 %v127
    %2659 = vmatprep.subr.mxu0 0.0
    %2660 = vmatpush1.msra.mxu0 %v128
    %2661 = vmatprep.subr.mxu0 0.0
    %2662 = vmatpush1.msra.mxu0 %v129
    %2663 = vmatprep.subr.mxu0 0.0
    %2664 = vmatpush1.msra.mxu0 %v130
    %2665 = vmatprep.subr.mxu0 0.0
    %2666 = vmatpush1.msra.mxu0 %v131
    %2667 = vmatprep.subr.mxu0 0.0
    %2668 = vmatpush1.msra.mxu0 %v132
    %2669 = vmatprep.subr.mxu0 0.0
    %2670 = vmatpush1.msra.mxu0 %v133
    %2671 = vmatprep.subr.mxu0 0.0
    %2672 = vmatpush1.msra.mxu0 %v134
    %2673 = vmatprep.subr.mxu0 0.0
    %2674 = vmatpush1.msra.mxu0 %v135
    %2675 = vmatprep.subr.mxu0 0.0
    %2676 = vmatpush1.msra.mxu0 %v136
    %2677 = vmatprep.subr.mxu0 0.0
    %2678 = vmatpush1.msra.mxu0 %v137
    %2679 = vmatprep.subr.mxu0 0.0
    %2680 = vmatpush1.msra.mxu0 %v138
    %2681 = vmatprep.subr.mxu0 0.0
    %2682 = vmatpush1.msra.mxu0 %v139
    %2683 = vmatprep.subr.mxu0 0.0
    %2684 = vmatpush1.msra.mxu0 %v140
    %2685 = vmatprep.subr.mxu0 0.0
    %2686 = vmatpush1.msra.mxu0 %v141
    %2687 = vmatprep.subr.mxu0 0.0
    %2688 = vmatpush1.msra.mxu0 %v142
    %2689 = vmatprep.subr.mxu0 0.0
    %2690 = vmatpush1.msra.mxu0 %v143
    %2691 = vmatprep.subr.mxu0 0.0
    %2692 = vmatpush1.msra.mxu0 %v144
    %2693 = vmatprep.subr.mxu0 0.0
    %2694 = vmatpush1.msra.mxu0 %v145
    %2695 = vmatprep.subr.mxu0 0.0
    %2696 = vmatpush1.msra.mxu0 %v146
    %2697 = vmatprep.subr.mxu0 0.0
    %2698 = vmatpush1.msra.mxu0 %v147
    %2699 = vmatprep.subr.mxu0 0.0
    %2700 = vmatpush1.msra.mxu0 %v148
    %2701 = vmatprep.subr.mxu0 0.0
    %2702 = vmatpush1.msra.mxu0 %v149
    %2703 = vmatprep.subr.mxu0 0.0
    %2704 = vmatpush1.msra.mxu0 %v150
    %2705 = vmatprep.subr.mxu0 0.0
    %2706 = vmatpush1.msra.mxu0 %v151
    %2707 = vmatprep.subr.mxu0 0.0
    %2708 = vmatpush1.msra.mxu0 %v152
    %2709 = vmatprep.subr.mxu0 0.0
    %2710 = vmatpush1.msra.mxu0 %v153
    %2711 = vmatprep.subr.mxu0 0.0
    %2712 = vmatpush1.msra.mxu0 %v154
    %2713 = vmatprep.subr.mxu0 0.0
    %2714 = vmatpush1.msra.mxu0 %v155
    %2715 = vmatprep.subr.mxu0 0.0
    %2716 = vmatpush1.msra.mxu0 %v156
    %2717 = vmatprep.mubr.f32.mxu0 %v2582
    %2718 = vmatmul.mubr.f32.gmra.mrb[0].mxu0 %v2581
    %v2719 = vpop.f32.mrb[0].mxu0
    %v2720 = vadd.f32 %v2650, %v2719
    %v2721 = vpop.f32.mrb[0].mxu0
    %2722 = vdwg.mxu0
    %v2725 = vcombine.high %v157, %v157
    %v2726 = vcombine.high %v158, %v158
    %vm2727 = vcmask 31744
    %v2729 = vsel %vm2727, %v2720, 0
    %vm2731 = vcmask 1043456
    %v2732 = vsel %vm2731, %v157, 0
    %v2734 = vsel %vm2731, %v2725, 0
    %v2736 = vsel %vm2731, %v158, 0
    %v2738 = vsel %vm2731, %v2726, 0
    %2740 = vmatprep.subr.mxu0 %v2734
    %2741 = vmatpush1.msra.mxu0 %v2732
    %2742 = vmatprep.subr.mxu0 0.0
    %2743 = vmatpush1.msra.mxu0 0.0
    %2744 = vmatprep.subr.mxu0 0.0
    %2745 = vmatpush1.msra.mxu0 0.0
    %2746 = vmatprep.subr.mxu0 0.0
    %2747 = vmatpush1.msra.mxu0 0.0
    %2748 = vmatprep.subr.mxu0 0.0
    %2749 = vmatpush1.msra.mxu0 0.0
    %2750 = vmatprep.subr.mxu0 0.0
    %2751 = vmatpush1.msra.mxu0 0.0
    %2752 = vmatprep.subr.mxu0 0.0
    %2753 = vmatpush1.msra.mxu0 0.0
    %2754 = vmatprep.subr.mxu0 0.0
    %2755 = vmatpush1.msra.mxu0 0.0
    %2756 = vmatprep.subr.mxu0 0.0
    %2757 = vmatpush1.msra.mxu0 0.0
    %2758 = vmatprep.subr.mxu0 0.0
    %2759 = vmatpush1.msra.mxu0 0.0
    %2760 = vmatprep.subr.mxu0 0.0
    %2761 = vmatpush1.msra.mxu0 0.0
    %2762 = vmatprep.subr.mxu0 0.0
    %2763 = vmatpush1.msra.mxu0 0.0
    %2764 = vmatprep.subr.mxu0 0.0
    %2765 = vmatpush1.msra.mxu0 0.0
    %2766 = vmatprep.subr.mxu0 0.0
    %2767 = vmatpush1.msra.mxu0 0.0
    %2768 = vmatprep.subr.mxu0 0.0
    %2769 = vmatpush1.msra.mxu0 0.0
    %2770 = vmatprep.subr.mxu0 0.0
    %2771 = vmatpush1.msra.mxu0 0.0
    %2772 = vmatprep.subr.mxu0 0.0
    %2773 = vmatpush1.msra.mxu0 0.0
    %2774 = vmatprep.subr.mxu0 0.0
    %2775 = vmatpush1.msra.mxu0 0.0
    %2776 = vmatprep.subr.mxu0 0.0
    %2777 = vmatpush1.msra.mxu0 0.0
    %2778 = vmatprep.subr.mxu0 0.0
    %2779 = vmatpush1.msra.mxu0 0.0
    %2780 = vmatprep.subr.mxu0 0.0
    %2781 = vmatpush1.msra.mxu0 0.0
    %2782 = vmatprep.subr.mxu0 0.0
    %2783 = vmatpush1.msra.mxu0 0.0
    %2784 = vmatprep.subr.mxu0 0.0
    %2785 = vmatpush1.msra.mxu0 0.0
    %2786 = vmatprep.subr.mxu0 0.0
    %2787 = vmatpush1.msra.mxu0 0.0
    %2788 = vmatprep.subr.mxu0 0.0
    %2789 = vmatpush1.msra.mxu0 0.0
    %2790 = vmatprep.subr.mxu0 0.0
    %2791 = vmatpush1.msra.mxu0 0.0
    %2792 = vmatprep.subr.mxu0 0.0
    %2793 = vmatpush1.msra.mxu0 0.0
    %2794 = vmatprep.subr.mxu0 0.0
    %2795 = vmatpush1.msra.mxu0 0.0
    %2796 = vmatprep.subr.mxu0 0.0
    %2797 = vmatpush1.msra.mxu0 0.0
    %2798 = vmatprep.subr.mxu0 0.0
    %2799 = vmatpush1.msra.mxu0 0.0
    %2800 = vmatprep.subr.mxu0 0.0
    %2801 = vmatpush1.msra.mxu0 0.0
    %2802 = vmatprep.subr.mxu0 0.0
    %2803 = vmatpush1.msra.mxu0 0.0
    %2804 = vmatprep.mubr.f32.mxu0 0.0
    %2805 = vmatmul.mubr.f32.gmra.mrb[0].mxu0 %v2729
    %v2806 = vpop.f32.mrb[0].mxu0
    %v2807 = vadd.f32 0.0, %v2806
    %v2808 = vpop.f32.mrb[0].mxu0
    %v2809 = vadd.f32 0.0, %v2808
    %2810 = vdwg.mxu0
    %2811 = vmatprep.subr.mxu0 %v2738
    %2812 = vmatpush1.msra.mxu0 %v2736
    %2813 = vmatprep.subr.mxu0 0.0
    %2814 = vmatpush1.msra.mxu0 0.0
    %2815 = vmatprep.subr.mxu0 0.0
    %2816 = vmatpush1.msra.mxu0 0.0
    %2817 = vmatprep.subr.mxu0 0.0
    %2818 = vmatpush1.msra.mxu0 0.0
    %2819 = vmatprep.subr.mxu0 0.0
    %2820 = vmatpush1.msra.mxu0 0.0
    %2821 = vmatprep.subr.mxu0 0.0
    %2822 = vmatpush1.msra.mxu0 0.0
    %2823 = vmatprep.subr.mxu0 0.0
    %2824 = vmatpush1.msra.mxu0 0.0
    %2825 = vmatprep.subr.mxu0 0.0
    %2826 = vmatpush1.msra.mxu0 0.0
    %2827 = vmatprep.subr.mxu0 0.0
    %2828 = vmatpush1.msra.mxu0 0.0
    %2829 = vmatprep.subr.mxu0 0.0
    %2830 = vmatpush1.msra.mxu0 0.0
    %2831 = vmatprep.subr.mxu0 0.0
    %2832 = vmatpush1.msra.mxu0 0.0
    %2833 = vmatprep.subr.mxu0 0.0
    %2834 = vmatpush1.msra.mxu0 0.0
    %2835 = vmatprep.subr.mxu0 0.0
    %2836 = vmatpush1.msra.mxu0 0.0
    %2837 = vmatprep.subr.mxu0 0.0
    %2838 = vmatpush1.msra.mxu0 0.0
    %2839 = vmatprep.subr.mxu0 0.0
    %2840 = vmatpush1.msra.mxu0 0.0
    %2841 = vmatprep.subr.mxu0 0.0
    %2842 = vmatpush1.msra.mxu0 0.0
    %2843 = vmatprep.subr.mxu0 0.0
    %2844 = vmatpush1.msra.mxu0 0.0
    %2845 = vmatprep.subr.mxu0 0.0
    %2846 = vmatpush1.msra.mxu0 0.0
    %2847 = vmatprep.subr.mxu0 0.0
    %2848 = vmatpush1.msra.mxu0 0.0
    %2849 = vmatprep.subr.mxu0 0.0
    %2850 = vmatpush1.msra.mxu0 0.0
    %2851 = vmatprep.subr.mxu0 0.0
    %2852 = vmatpush1.msra.mxu0 0.0
    %2853 = vmatprep.subr.mxu0 0.0
    %2854 = vmatpush1.msra.mxu0 0.0
    %2855 = vmatprep.subr.mxu0 0.0
    %2856 = vmatpush1.msra.mxu0 0.0
    %2857 = vmatprep.subr.mxu0 0.0
    %2858 = vmatpush1.msra.mxu0 0.0
    %2859 = vmatprep.subr.mxu0 0.0
    %2860 = vmatpush1.msra.mxu0 0.0
    %2861 = vmatprep.subr.mxu0 0.0
    %2862 = vmatpush1.msra.mxu0 0.0
    %2863 = vmatprep.subr.mxu0 0.0
    %2864 = vmatpush1.msra.mxu0 0.0
    %2865 = vmatprep.subr.mxu0 0.0
    %2866 = vmatpush1.msra.mxu0 0.0
    %2867 = vmatprep.subr.mxu0 0.0
    %2868 = vmatpush1.msra.mxu0 0.0
    %2869 = vmatprep.subr.mxu0 0.0
    %2870 = vmatpush1.msra.mxu0 0.0
    %2871 = vmatprep.subr.mxu0 0.0
    %2872 = vmatpush1.msra.mxu0 0.0
    %2873 = vmatprep.subr.mxu0 0.0
    %2874 = vmatpush1.msra.mxu0 0.0
    %2875 = vmatprep.mubr.f32.mxu0 0.0
    %2876 = vmatmul.mubr.f32.gmra.mrb[0].mxu0 %v2729
    %v2877 = vpop.f32.mrb[0].mxu0
    %v2878 = vadd.f32 0.0, %v2877
    %v2879 = vpop.f32.mrb[0].mxu0
    %v2880 = vadd.f32 0.0, %v2879
    %2881 = vdwg.mxu0
    %v2882 = vmul.f32 %v2807, %v2807
    %v2883 = vmul.f32 %v2809, %v2809
    %v2884 = vmul.f32 %v2878, %v2878
    %v2885 = vmul.f32 %v2880, %v2880
    %v2890 = vrot.slane %v2882, 7
    %v2891 = vrot.slane %v2883, 7
    %v2892 = vrot.slane %v2884, 7
    %v2893 = vrot.slane %v2885, 7
    %v2898 = vsub.f32 %v2807, %v2890
    %v2899 = vsub.f32 %v2809, %v2891
    %v2900 = vsub.f32 %v2878, %v2892
    %v2901 = vsub.f32 %v2880, %v2893
    %v2902 = vmax.f32 %v2898, 0.0
    %v2903 = vmax.f32 %v2899, 0.0
    %v2904 = vmax.f32 %v2900, 0.0
    %v2905 = vmax.f32 %v2901, 0.0
    %v2906 = vadd.f32 %v2902, 1e-05
    %v2907 = vadd.f32 %v2903, 1e-05
    %v2908 = vadd.f32 %v2904, 1e-05
    %v2909 = vadd.f32 %v2905, 1e-05
    %v2910 = vrsqrt.pop %v2906
    %v2911 = vrsqrt.pop %v2907
    %v2912 = vrsqrt.pop %v2908
    %v2913 = vrsqrt.pop %v2909
    %v2918 = vrot.slane %v2910, 1
    %v2919 = vrot.slane %v2911, 1
    %v2920 = vrot.slane %v2912, 1
    %v2921 = vrot.slane %v2913, 1
    %v2926 = vmul.f32 %v159, %v2918
    %v2927 = vmul.f32 %v160, %v2919
    %v2928 = vmul.f32 %v161, %v2920
    %v2929 = vmul.f32 %v162, %v2921
    %v2930 = vmul.f32 %v2807, %v2926
    %v2931 = vmul.f32 %v2809, %v2927
    %v2932 = vmul.f32 %v2878, %v2928
    %v2933 = vmul.f32 %v2880, %v2929
    %v2938 = vrot.slane %v2930, 7
    %v2939 = vrot.slane %v2931, 7
    %v2940 = vrot.slane %v2932, 7
    %v2941 = vrot.slane %v2933, 7
    %v2946 = vsub.f32 %v159, %v2938
    %v2947 = vsub.f32 %v160, %v2939
    %v2948 = vsub.f32 %v161, %v2940
    %v2949 = vsub.f32 %v162, %v2941
    %v2950 = vlaneseq
    %v2951 = vshrl.u32 %v2950, 7
    %v2952 = vsub.s32 0, %v2951
    %v2953 = vrot.slane %v2926, %v2952
    %v2954 = vlaneseq
    %v2955 = vshrl.u32 %v2954, 7
    %v2956 = vsub.s32 0, %v2955
    %v2957 = vrot.slane %v2927, %v2956
    %v2958 = vlaneseq
    %v2959 = vshrl.u32 %v2958, 7
    %v2960 = vsub.s32 0, %v2959
    %v2961 = vrot.slane %v2928, %v2960
    %v2962 = vlaneseq
    %v2963 = vshrl.u32 %v2962, 7
    %v2964 = vsub.s32 0, %v2963
    %v2965 = vrot.slane %v2929, %v2964
    %v2966 = vmul.f32 %v2509, %v2953
    %v2967 = vmul.f32 %v2510, %v2957
    %v2968 = vmul.f32 %v2511, %v2961
    %v2969 = vmul.f32 %v2512, %v2965
    %v2970 = vlaneseq
    %v2971 = vshrl.u32 %v2970, 7
    %v2972 = vsub.s32 1, %v2971
    %v2973 = vrot.slane %v2946, %v2972
    %v2974 = vlaneseq
    %v2975 = vshrl.u32 %v2974, 7
    %v2976 = vsub.s32 1, %v2975
    %v2977 = vrot.slane %v2947, %v2976
    %v2978 = vlaneseq
    %v2979 = vshrl.u32 %v2978, 7
    %v2980 = vsub.s32 1, %v2979
    %v2981 = vrot.slane %v2948, %v2980
    %v2982 = vlaneseq
    %v2983 = vshrl.u32 %v2982, 7
    %v2984 = vsub.s32 1, %v2983
    %v2985 = vrot.slane %v2949, %v2984
    %v2986 = vadd.f32 %v2966, %v2973
    %v2987 = vadd.f32 %v2967, %v2977
    %v2988 = vadd.f32 %v2968, %v2981
    %v2989 = vadd.f32 %v2969, %v2985
    %v2990 = vmax.f32 %v2986, 0.0
    %v2991 = vmax.f32 %v2987, 0.0
    %v2992 = vmax.f32 %v2988, 0.0
    %v2993 = vmax.f32 %v2989, 0.0
    %v2994 = vpack.c.bf16 %v2990, %v2990
    %v2995 = vpack.c.bf16 %v2991, %v2991
    %v2996 = vpack.c.bf16 %v2992, %v2992
    %v2997 = vpack.c.bf16 %v2993, %v2993
    %v2998 = vld [vmem:[#allocation5] sm:$0xff]
    %v2999 = vld [vmem:[#allocation5 + $0x8] sm:$0xff]
    %v3000 = vld [vmem:[#allocation5 + $0x10] sm:$0xff]
    %v3001 = vld [vmem:[#allocation5 + $0x18] sm:$0xff]
    %v3002 = vld [vmem:[#allocation5 + $0x20] sm:$0xff]
    %v3003 = vld [vmem:[#allocation5 + $0x28] sm:$0xff]
    %v3004 = vld [vmem:[#allocation5 + $0x30] sm:$0xff]
    %v3005 = vld [vmem:[#allocation5 + $0x38] sm:$0xff]
    %v3006 = vld [vmem:[#allocation5 + $0x40] sm:$0xff]
    %v3007 = vld [vmem:[#allocation5 + $0x48] sm:$0xff]
    %v3008 = vld [vmem:[#allocation5 + $0x50] sm:$0xff]
    %v3009 = vld [vmem:[#allocation5 + $0x58] sm:$0xff]
    %v3010 = vld [vmem:[#allocation5 + $0x60] sm:$0xff]
    %v3011 = vld [vmem:[#allocation5 + $0x68] sm:$0xff]
    %v3012 = vld [vmem:[#allocation5 + $0x70] sm:$0xff]
    %v3013 = vld [vmem:[#allocation5 + $0x78] sm:$0xff]
    %v3014 = vld [vmem:[#allocation5 + $0x80] sm:$0xff]
    %v3015 = vld [vmem:[#allocation5 + $0x88] sm:$0xff]
    %v3016 = vld [vmem:[#allocation5 + $0x90] sm:$0xff]
    %v3017 = vld [vmem:[#allocation5 + $0x98] sm:$0xff]
    %v3018 = vld [vmem:[#allocation5 + $0xa0] sm:$0xff]
    %v3019 = vld [vmem:[#allocation5 + $0xa8] sm:$0xff]
    %v3020 = vld [vmem:[#allocation5 + $0xb0] sm:$0xff]
    %v3021 = vld [vmem:[#allocation5 + $0xb8] sm:$0xff]
    %v3022 = vld [vmem:[#allocation5 + $0xc0] sm:$0xff]
    %v3023 = vld [vmem:[#allocation5 + $0xc8] sm:$0xff]
    %v3024 = vld [vmem:[#allocation5 + $0xd0] sm:$0xff]
    %v3025 = vld [vmem:[#allocation5 + $0xd8] sm:$0xff]
    %v3026 = vld [vmem:[#allocation5 + $0xe0] sm:$0xff]
    %v3027 = vld [vmem:[#allocation5 + $0xe8] sm:$0xff]
    %v3028 = vld [vmem:[#allocation5 + $0xf0] sm:$0xff]
    %v3029 = vld [vmem:[#allocation5 + $0xf8] sm:$0xff]
    %v3030 = vld [vmem:[#allocation5 + $0x100] sm:$0xff]
    %v3031 = vld [vmem:[#allocation5 + $0x108] sm:$0xff]
    %v3032 = vld [vmem:[#allocation5 + $0x110] sm:$0xff]
    %v3033 = vld [vmem:[#allocation5 + $0x118] sm:$0xff]
    %v3034 = vld [vmem:[#allocation5 + $0x120] sm:$0xff]
    %v3035 = vld [vmem:[#allocation5 + $0x128] sm:$0xff]
    %v3036 = vld [vmem:[#allocation5 + $0x130] sm:$0xff]
    %v3037 = vld [vmem:[#allocation5 + $0x138] sm:$0xff]
    %v3038 = vld [vmem:[#allocation5 + $0x140] sm:$0xff]
    %v3039 = vld [vmem:[#allocation5 + $0x148] sm:$0xff]
    %v3040 = vld [vmem:[#allocation5 + $0x150] sm:$0xff]
    %v3041 = vld [vmem:[#allocation5 + $0x158] sm:$0xff]
    %v3042 = vld [vmem:[#allocation5 + $0x160] sm:$0xff]
    %v3043 = vld [vmem:[#allocation5 + $0x168] sm:$0xff]
    %v3044 = vld [vmem:[#allocation5 + $0x170] sm:$0xff]
    %v3045 = vld [vmem:[#allocation5 + $0x178] sm:$0xff]
    %v3046 = vld [vmem:[#allocation5 + $0x180] sm:$0xff]
    %v3047 = vld [vmem:[#allocation5 + $0x188] sm:$0xff]
    %v3048 = vld [vmem:[#allocation5 + $0x190] sm:$0xff]
    %v3049 = vld [vmem:[#allocation5 + $0x198] sm:$0xff]
    %v3050 = vld [vmem:[#allocation5 + $0x1a0] sm:$0xff]
    %v3051 = vld [vmem:[#allocation5 + $0x1a8] sm:$0xff]
    %v3052 = vld [vmem:[#allocation5 + $0x1b0] sm:$0xff]
    %v3053 = vld [vmem:[#allocation5 + $0x1b8] sm:$0xff]
    %v3054 = vld [vmem:[#allocation5 + $0x1c0] sm:$0xff]
    %v3055 = vld [vmem:[#allocation5 + $0x1c8] sm:$0xff]
    %v3056 = vld [vmem:[#allocation5 + $0x1d0] sm:$0xff]
    %v3057 = vld [vmem:[#allocation5 + $0x1d8] sm:$0xff]
    %v3058 = vld [vmem:[#allocation5 + $0x1e0] sm:$0xff]
    %v3059 = vld [vmem:[#allocation5 + $0x1e8] sm:$0xff]
    %v3060 = vld [vmem:[#allocation5 + $0x1f0] sm:$0xff]
    %v3061 = vld [vmem:[#allocation5 + $0x1f8] sm:$0xff]
    %v3062 = vld [vmem:[#allocation5 + $0x200] sm:$0xff]
    %v3063 = vld [vmem:[#allocation5 + $0x208] sm:$0xff]
    %v3064 = vld [vmem:[#allocation5 + $0x210] sm:$0xff]
    %v3065 = vld [vmem:[#allocation5 + $0x218] sm:$0xff]
    %v3066 = vld [vmem:[#allocation5 + $0x220] sm:$0xff]
    %v3067 = vld [vmem:[#allocation5 + $0x228] sm:$0xff]
    %v3068 = vld [vmem:[#allocation5 + $0x230] sm:$0xff]
    %v3069 = vld [vmem:[#allocation5 + $0x238] sm:$0xff]
    %v3070 = vld [vmem:[#allocation5 + $0x240] sm:$0xff]
    %v3071 = vld [vmem:[#allocation5 + $0x248] sm:$0xff]
    %v3072 = vld [vmem:[#allocation5 + $0x250] sm:$0xff]
    %v3073 = vld [vmem:[#allocation5 + $0x258] sm:$0xff]
    %v3074 = vld [vmem:[#allocation5 + $0x260] sm:$0xff]
    %v3075 = vld [vmem:[#allocation5 + $0x268] sm:$0xff]
    %v3076 = vld [vmem:[#allocation5 + $0x270] sm:$0xff]
    %v3077 = vld [vmem:[#allocation5 + $0x278] sm:$0xff]
    %v3078 = vld [vmem:[#allocation5 + $0x280] sm:$0xff]
    %v3079 = vld [vmem:[#allocation5 + $0x288] sm:$0xff]
    %v3080 = vld [vmem:[#allocation5 + $0x290] sm:$0xff]
    %v3081 = vld [vmem:[#allocation5 + $0x298] sm:$0xff]
    %v3082 = vld [vmem:[#allocation5 + $0x2a0] sm:$0xff]
    %v3083 = vld [vmem:[#allocation5 + $0x2a8] sm:$0xff]
    %v3084 = vld [vmem:[#allocation5 + $0x2b0] sm:$0xff]
    %v3085 = vld [vmem:[#allocation5 + $0x2b8] sm:$0xff]
    %v3086 = vld [vmem:[#allocation5 + $0x2c0] sm:$0xff]
    %v3087 = vld [vmem:[#allocation5 + $0x2c8] sm:$0xff]
    %v3088 = vld [vmem:[#allocation5 + $0x2d0] sm:$0xff]
    %v3089 = vld [vmem:[#allocation5 + $0x2d8] sm:$0xff]
    %v3090 = vld [vmem:[#allocation5 + $0x2e0] sm:$0xff]
    %v3091 = vld [vmem:[#allocation5 + $0x2e8] sm:$0xff]
    %v3092 = vld [vmem:[#allocation5 + $0x2f0] sm:$0xff]
    %v3093 = vld [vmem:[#allocation5 + $0x2f8] sm:$0xff]
    %v3094 = vld [vmem:[#allocation5 + $0x300] sm:$0xff]
    %v3095 = vld [vmem:[#allocation5 + $0x308] sm:$0xff]
    %v3096 = vld [vmem:[#allocation5 + $0x310] sm:$0xff]
    %v3097 = vld [vmem:[#allocation5 + $0x318] sm:$0xff]
    %v3098 = vld [vmem:[#allocation5 + $0x320] sm:$0xff]
    %v3099 = vld [vmem:[#allocation5 + $0x328] sm:$0xff]
    %v3100 = vld [vmem:[#allocation5 + $0x330] sm:$0xff]
    %v3101 = vld [vmem:[#allocation5 + $0x338] sm:$0xff]
    %v3102 = vld [vmem:[#allocation5 + $0x340] sm:$0xff]
    %v3103 = vld [vmem:[#allocation5 + $0x348] sm:$0xff]
    %v3104 = vld [vmem:[#allocation5 + $0x350] sm:$0xff]
    %v3105 = vld [vmem:[#allocation5 + $0x358] sm:$0xff]
    %v3106 = vld [vmem:[#allocation5 + $0x360] sm:$0xff]
    %v3107 = vld [vmem:[#allocation5 + $0x368] sm:$0xff]
    %v3108 = vld [vmem:[#allocation5 + $0x370] sm:$0xff]
    %v3109 = vld [vmem:[#allocation5 + $0x378] sm:$0xff]
    %v3110 = vld [vmem:[#allocation5 + $0x380] sm:$0xff]
    %v3111 = vld [vmem:[#allocation5 + $0x388] sm:$0xff]
    %v3112 = vld [vmem:[#allocation5 + $0x390] sm:$0xff]
    %v3113 = vld [vmem:[#allocation5 + $0x398] sm:$0xff]
    %v3114 = vld [vmem:[#allocation5 + $0x3a0] sm:$0xff]
    %v3115 = vld [vmem:[#allocation5 + $0x3a8] sm:$0xff]
    %v3116 = vld [vmem:[#allocation5 + $0x3b0] sm:$0xff]
    %v3117 = vld [vmem:[#allocation5 + $0x3b8] sm:$0xff]
    %v3118 = vld [vmem:[#allocation5 + $0x3c0] sm:$0xff]
    %v3119 = vld [vmem:[#allocation5 + $0x3c8] sm:$0xff]
    %v3120 = vld [vmem:[#allocation5 + $0x3d0] sm:$0xff]
    %v3121 = vld [vmem:[#allocation5 + $0x3d8] sm:$0xff]
    %v3122 = vld [vmem:[#allocation5 + $0x3e0] sm:$0xff]
    %v3123 = vld [vmem:[#allocation5 + $0x3e8] sm:$0xff]
    %v3124 = vld [vmem:[#allocation5 + $0x3f0] sm:$0xff]
    %v3125 = vld [vmem:[#allocation5 + $0x3f8] sm:$0xff]
    %v3254 = vunpack.c.l.b16 %v2998
    %v3255 = vunpack.c.h.b16 %v2998
    %v3256 = vunpack.c.l.b16 %v2999
    %v3257 = vunpack.c.h.b16 %v2999
    %v3258 = vunpack.c.l.b16 %v3000
    %v3259 = vunpack.c.h.b16 %v3000
    %v3260 = vunpack.c.l.b16 %v3001
    %v3261 = vunpack.c.h.b16 %v3001
    %v3262 = vunpack.c.l.b16 %v3002
    %v3263 = vunpack.c.h.b16 %v3002
    %v3264 = vunpack.c.l.b16 %v3003
    %v3265 = vunpack.c.h.b16 %v3003
    %v3266 = vunpack.c.l.b16 %v3004
    %v3267 = vunpack.c.h.b16 %v3004
    %v3268 = vunpack.c.l.b16 %v3005
    %v3269 = vunpack.c.h.b16 %v3005
    %v3270 = vunpack.c.l.b16 %v3006
    %v3271 = vunpack.c.h.b16 %v3006
    %v3272 = vunpack.c.l.b16 %v3007
    %v3273 = vunpack.c.h.b16 %v3007
    %v3274 = vunpack.c.l.b16 %v3008
    %v3275 = vunpack.c.h.b16 %v3008
    %v3276 = vunpack.c.l.b16 %v3009
    %v3277 = vunpack.c.h.b16 %v3009
    %v3278 = vunpack.c.l.b16 %v3010
    %v3279 = vunpack.c.h.b16 %v3010
    %v3280 = vunpack.c.l.b16 %v3011
    %v3281 = vunpack.c.h.b16 %v3011
    %v3282 = vunpack.c.l.b16 %v3012
    %v3283 = vunpack.c.h.b16 %v3012
    %v3284 = vunpack.c.l.b16 %v3013
    %v3285 = vunpack.c.h.b16 %v3013
    %v3286 = vunpack.c.l.b16 %v3014
    %v3287 = vunpack.c.h.b16 %v3014
    %v3288 = vunpack.c.l.b16 %v3015
    %v3289 = vunpack.c.h.b16 %v3015
    %v3290 = vunpack.c.l.b16 %v3016
    %v3291 = vunpack.c.h.b16 %v3016
    %v3292 = vunpack.c.l.b16 %v3017
    %v3293 = vunpack.c.h.b16 %v3017
    %v3294 = vunpack.c.l.b16 %v3018
    %v3295 = vunpack.c.h.b16 %v3018
    %v3296 = vunpack.c.l.b16 %v3019
    %v3297 = vunpack.c.h.b16 %v3019
    %v3298 = vunpack.c.l.b16 %v3020
    %v3299 = vunpack.c.h.b16 %v3020
    %v3300 = vunpack.c.l.b16 %v3021
    %v3301 = vunpack.c.h.b16 %v3021
    %v3302 = vunpack.c.l.b16 %v3022
    %v3303 = vunpack.c.h.b16 %v3022
    %v3304 = vunpack.c.l.b16 %v3023
    %v3305 = vunpack.c.h.b16 %v3023
    %v3306 = vunpack.c.l.b16 %v3024
    %v3307 = vunpack.c.h.b16 %v3024
    %v3308 = vunpack.c.l.b16 %v3025
    %v3309 = vunpack.c.h.b16 %v3025
    %v3310 = vunpack.c.l.b16 %v3026
    %v3311 = vunpack.c.h.b16 %v3026
    %v3312 = vunpack.c.l.b16 %v3027
    %v3313 = vunpack.c.h.b16 %v3027
    %v3314 = vunpack.c.l.b16 %v3028
    %v3315 = vunpack.c.h.b16 %v3028
    %v3316 = vunpack.c.l.b16 %v3029
    %v3317 = vunpack.c.h.b16 %v3029
    %v3318 = vunpack.c.l.b16 %v3030
    %v3319 = vunpack.c.h.b16 %v3030
    %v3320 = vunpack.c.l.b16 %v3031
    %v3321 = vunpack.c.h.b16 %v3031
    %v3322 = vunpack.c.l.b16 %v3032
    %v3323 = vunpack.c.h.b16 %v3032
    %v3324 = vunpack.c.l.b16 %v3033
    %v3325 = vunpack.c.h.b16 %v3033
    %v3326 = vunpack.c.l.b16 %v3034
    %v3327 = vunpack.c.h.b16 %v3034
    %v3328 = vunpack.c.l.b16 %v3035
    %v3329 = vunpack.c.h.b16 %v3035
    %v3330 = vunpack.c.l.b16 %v3036
    %v3331 = vunpack.c.h.b16 %v3036
    %v3332 = vunpack.c.l.b16 %v3037
    %v3333 = vunpack.c.h.b16 %v3037
    %v3334 = vunpack.c.l.b16 %v3038
    %v3335 = vunpack.c.h.b16 %v3038
    %v3336 = vunpack.c.l.b16 %v3039
    %v3337 = vunpack.c.h.b16 %v3039
    %v3338 = vunpack.c.l.b16 %v3040
    %v3339 = vunpack.c.h.b16 %v3040
    %v3340 = vunpack.c.l.b16 %v3041
    %v3341 = vunpack.c.h.b16 %v3041
    %v3342 = vunpack.c.l.b16 %v3042
    %v3343 = vunpack.c.h.b16 %v3042
    %v3344 = vunpack.c.l.b16 %v3043
    %v3345 = vunpack.c.h.b16 %v3043
    %v3346 = vunpack.c.l.b16 %v3044
    %v3347 = vunpack.c.h.b16 %v3044
    %v3348 = vunpack.c.l.b16 %v3045
    %v3349 = vunpack.c.h.b16 %v3045
    %v3350 = vunpack.c.l.b16 %v3046
    %v3351 = vunpack.c.h.b16 %v3046
    %v3352 = vunpack.c.l.b16 %v3047
    %v3353 = vunpack.c.h.b16 %v3047
    %v3354 = vunpack.c.l.b16 %v3048
    %v3355 = vunpack.c.h.b16 %v3048
    %v3356 = vunpack.c.l.b16 %v3049
    %v3357 = vunpack.c.h.b16 %v3049
    %v3358 = vunpack.c.l.b16 %v3050
    %v3359 = vunpack.c.h.b16 %v3050
    %v3360 = vunpack.c.l.b16 %v3051
    %v3361 = vunpack.c.h.b16 %v3051
    %v3362 = vunpack.c.l.b16 %v3052
    %v3363 = vunpack.c.h.b16 %v3052
    %v3364 = vunpack.c.l.b16 %v3053
    %v3365 = vunpack.c.h.b16 %v3053
    %v3366 = vunpack.c.l.b16 %v3054
    %v3367 = vunpack.c.h.b16 %v3054
    %v3368 = vunpack.c.l.b16 %v3055
    %v3369 = vunpack.c.h.b16 %v3055
    %v3370 = vunpack.c.l.b16 %v3056
    %v3371 = vunpack.c.h.b16 %v3056
    %v3372 = vunpack.c.l.b16 %v3057
    %v3373 = vunpack.c.h.b16 %v3057
    %v3374 = vunpack.c.l.b16 %v3058
    %v3375 = vunpack.c.h.b16 %v3058
    %v3376 = vunpack.c.l.b16 %v3059
    %v3377 = vunpack.c.h.b16 %v3059
    %v3378 = vunpack.c.l.b16 %v3060
    %v3379 = vunpack.c.h.b16 %v3060
    %v3380 = vunpack.c.l.b16 %v3061
    %v3381 = vunpack.c.h.b16 %v3061
    %v3382 = vunpack.c.l.b16 %v3062
    %v3383 = vunpack.c.h.b16 %v3062
    %v3384 = vunpack.c.l.b16 %v3063
    %v3385 = vunpack.c.h.b16 %v3063
    %v3386 = vunpack.c.l.b16 %v3064
    %v3387 = vunpack.c.h.b16 %v3064
    %v3388 = vunpack.c.l.b16 %v3065
    %v3389 = vunpack.c.h.b16 %v3065
    %v3390 = vunpack.c.l.b16 %v3066
    %v3391 = vunpack.c.h.b16 %v3066
    %v3392 = vunpack.c.l.b16 %v3067
    %v3393 = vunpack.c.h.b16 %v3067
    %v3394 = vunpack.c.l.b16 %v3068
    %v3395 = vunpack.c.h.b16 %v3068
    %v3396 = vunpack.c.l.b16 %v3069
    %v3397 = vunpack.c.h.b16 %v3069
    %v3398 = vunpack.c.l.b16 %v3070
    %v3399 = vunpack.c.h.b16 %v3070
    %v3400 = vunpack.c.l.b16 %v3071
    %v3401 = vunpack.c.h.b16 %v3071
    %v3402 = vunpack.c.l.b16 %v3072
    %v3403 = vunpack.c.h.b16 %v3072
    %v3404 = vunpack.c.l.b16 %v3073
    %v3405 = vunpack.c.h.b16 %v3073
    %v3406 = vunpack.c.l.b16 %v3074
    %v3407 = vunpack.c.h.b16 %v3074
    %v3408 = vunpack.c.l.b16 %v3075
    %v3409 = vunpack.c.h.b16 %v3075
    %v3410 = vunpack.c.l.b16 %v3076
    %v3411 = vunpack.c.h.b16 %v3076
    %v3412 = vunpack.c.l.b16 %v3077
    %v3413 = vunpack.c.h.b16 %v3077
    %v3414 = vunpack.c.l.b16 %v3078
    %v3415 = vunpack.c.h.b16 %v3078
    %v3416 = vunpack.c.l.b16 %v3079
    %v3417 = vunpack.c.h.b16 %v3079
    %v3418 = vunpack.c.l.b16 %v3080
    %v3419 = vunpack.c.h.b16 %v3080
    %v3420 = vunpack.c.l.b16 %v3081
    %v3421 = vunpack.c.h.b16 %v3081
    %v3422 = vunpack.c.l.b16 %v3082
    %v3423 = vunpack.c.h.b16 %v3082
    %v3424 = vunpack.c.l.b16 %v3083
    %v3425 = vunpack.c.h.b16 %v3083
    %v3426 = vunpack.c.l.b16 %v3084
    %v3427 = vunpack.c.h.b16 %v3084
    %v3428 = vunpack.c.l.b16 %v3085
    %v3429 = vunpack.c.h.b16 %v3085
    %v3430 = vunpack.c.l.b16 %v3086
    %v3431 = vunpack.c.h.b16 %v3086
    %v3432 = vunpack.c.l.b16 %v3087
    %v3433 = vunpack.c.h.b16 %v3087
    %v3434 = vunpack.c.l.b16 %v3088
    %v3435 = vunpack.c.h.b16 %v3088
    %v3436 = vunpack.c.l.b16 %v3089
    %v3437 = vunpack.c.h.b16 %v3089
    %v3438 = vunpack.c.l.b16 %v3090
    %v3439 = vunpack.c.h.b16 %v3090
    %v3440 = vunpack.c.l.b16 %v3091
    %v3441 = vunpack.c.h.b16 %v3091
    %v3442 = vunpack.c.l.b16 %v3092
    %v3443 = vunpack.c.h.b16 %v3092
    %v3444 = vunpack.c.l.b16 %v3093
    %v3445 = vunpack.c.h.b16 %v3093
    %v3446 = vunpack.c.l.b16 %v3094
    %v3447 = vunpack.c.h.b16 %v3094
    %v3448 = vunpack.c.l.b16 %v3095
    %v3449 = vunpack.c.h.b16 %v3095
    %v3450 = vunpack.c.l.b16 %v3096
    %v3451 = vunpack.c.h.b16 %v3096
    %v3452 = vunpack.c.l.b16 %v3097
    %v3453 = vunpack.c.h.b16 %v3097
    %v3454 = vunpack.c.l.b16 %v3098
    %v3455 = vunpack.c.h.b16 %v3098
    %v3456 = vunpack.c.l.b16 %v3099
    %v3457 = vunpack.c.h.b16 %v3099
    %v3458 = vunpack.c.l.b16 %v3100
    %v3459 = vunpack.c.h.b16 %v3100
    %v3460 = vunpack.c.l.b16 %v3101
    %v3461 = vunpack.c.h.b16 %v3101
    %v3462 = vunpack.c.l.b16 %v3102
    %v3463 = vunpack.c.h.b16 %v3102
    %v3464 = vunpack.c.l.b16 %v3103
    %v3465 = vunpack.c.h.b16 %v3103
    %v3466 = vunpack.c.l.b16 %v3104
    %v3467 = vunpack.c.h.b16 %v3104
    %v3468 = vunpack.c.l.b16 %v3105
    %v3469 = vunpack.c.h.b16 %v3105
    %v3470 = vunpack.c.l.b16 %v3106
    %v3471 = vunpack.c.h.b16 %v3106
    %v3472 = vunpack.c.l.b16 %v3107
    %v3473 = vunpack.c.h.b16 %v3107
    %v3474 = vunpack.c.l.b16 %v3108
    %v3475 = vunpack.c.h.b16 %v3108
    %v3476 = vunpack.c.l.b16 %v3109
    %v3477 = vunpack.c.h.b16 %v3109
    %v3478 = vunpack.c.l.b16 %v3110
    %v3479 = vunpack.c.h.b16 %v3110
    %v3480 = vunpack.c.l.b16 %v3111
    %v3481 = vunpack.c.h.b16 %v3111
    %v3482 = vunpack.c.l.b16 %v3112
    %v3483 = vunpack.c.h.b16 %v3112
    %v3484 = vunpack.c.l.b16 %v3113
    %v3485 = vunpack.c.h.b16 %v3113
    %v3486 = vunpack.c.l.b16 %v3114
    %v3487 = vunpack.c.h.b16 %v3114
    %v3488 = vunpack.c.l.b16 %v3115
    %v3489 = vunpack.c.h.b16 %v3115
    %v3490 = vunpack.c.l.b16 %v3116
    %v3491 = vunpack.c.h.b16 %v3116
    %v3492 = vunpack.c.l.b16 %v3117
    %v3493 = vunpack.c.h.b16 %v3117
    %v3494 = vunpack.c.l.b16 %v3118
    %v3495 = vunpack.c.h.b16 %v3118
    %v3496 = vunpack.c.l.b16 %v3119
    %v3497 = vunpack.c.h.b16 %v3119
    %v3498 = vunpack.c.l.b16 %v3120
    %v3499 = vunpack.c.h.b16 %v3120
    %v3500 = vunpack.c.l.b16 %v3121
    %v3501 = vunpack.c.h.b16 %v3121
    %v3502 = vunpack.c.l.b16 %v3122
    %v3503 = vunpack.c.h.b16 %v3122
    %v3504 = vunpack.c.l.b16 %v3123
    %v3505 = vunpack.c.h.b16 %v3123
    %v3506 = vunpack.c.l.b16 %v3124
    %v3507 = vunpack.c.h.b16 %v3124
    %v3508 = vunpack.c.l.b16 %v3125
    %v3509 = vunpack.c.h.b16 %v3125
    %v3510 = vpack.c.b16 %v3258, %v3254
    %v3511 = vpack.c.b16 %v3259, %v3255
    %v3512 = vpack.c.b16 %v3260, %v3256
    %v3513 = vpack.c.b16 %v3261, %v3257
    %v3514 = vpack.c.b16 %v3266, %v3262
    %v3515 = vpack.c.b16 %v3267, %v3263
    %v3516 = vpack.c.b16 %v3268, %v3264
    %v3517 = vpack.c.b16 %v3269, %v3265
    %v3518 = vpack.c.b16 %v3274, %v3270
    %v3519 = vpack.c.b16 %v3275, %v3271
    %v3520 = vpack.c.b16 %v3276, %v3272
    %v3521 = vpack.c.b16 %v3277, %v3273
    %v3522 = vpack.c.b16 %v3282, %v3278
    %v3523 = vpack.c.b16 %v3283, %v3279
    %v3524 = vpack.c.b16 %v3284, %v3280
    %v3525 = vpack.c.b16 %v3285, %v3281
    %v3526 = vpack.c.b16 %v3290, %v3286
    %v3527 = vpack.c.b16 %v3291, %v3287
    %v3528 = vpack.c.b16 %v3292, %v3288
    %v3529 = vpack.c.b16 %v3293, %v3289
    %v3530 = vpack.c.b16 %v3298, %v3294
    %v3531 = vpack.c.b16 %v3299, %v3295
    %v3532 = vpack.c.b16 %v3300, %v3296
    %v3533 = vpack.c.b16 %v3301, %v3297
    %v3534 = vpack.c.b16 %v3306, %v3302
    %v3535 = vpack.c.b16 %v3307, %v3303
    %v3536 = vpack.c.b16 %v3308, %v3304
    %v3537 = vpack.c.b16 %v3309, %v3305
    %v3538 = vpack.c.b16 %v3314, %v3310
    %v3539 = vpack.c.b16 %v3315, %v3311
    %v3540 = vpack.c.b16 %v3316, %v3312
    %v3541 = vpack.c.b16 %v3317, %v3313
    %v3542 = vpack.c.b16 %v3322, %v3318
    %v3543 = vpack.c.b16 %v3323, %v3319
    %v3544 = vpack.c.b16 %v3324, %v3320
    %v3545 = vpack.c.b16 %v3325, %v3321
    %v3546 = vpack.c.b16 %v3330, %v3326
    %v3547 = vpack.c.b16 %v3331, %v3327
    %v3548 = vpack.c.b16 %v3332, %v3328
    %v3549 = vpack.c.b16 %v3333, %v3329
    %v3550 = vpack.c.b16 %v3338, %v3334
    %v3551 = vpack.c.b16 %v3339, %v3335
    %v3552 = vpack.c.b16 %v3340, %v3336
    %v3553 = vpack.c.b16 %v3341, %v3337
    %v3554 = vpack.c.b16 %v3346, %v3342
    %v3555 = vpack.c.b16 %v3347, %v3343
    %v3556 = vpack.c.b16 %v3348, %v3344
    %v3557 = vpack.c.b16 %v3349, %v3345
    %v3558 = vpack.c.b16 %v3354, %v3350
    %v3559 = vpack.c.b16 %v3355, %v3351
    %v3560 = vpack.c.b16 %v3356, %v3352
    %v3561 = vpack.c.b16 %v3357, %v3353
    %v3562 = vpack.c.b16 %v3362, %v3358
    %v3563 = vpack.c.b16 %v3363, %v3359
    %v3564 = vpack.c.b16 %v3364, %v3360
    %v3565 = vpack.c.b16 %v3365, %v3361
    %v3566 = vpack.c.b16 %v3370, %v3366
    %v3567 = vpack.c.b16 %v3371, %v3367
    %v3568 = vpack.c.b16 %v3372, %v3368
    %v3569 = vpack.c.b16 %v3373, %v3369
    %v3570 = vpack.c.b16 %v3378, %v3374
    %v3571 = vpack.c.b16 %v3379, %v3375
    %v3572 = vpack.c.b16 %v3380, %v3376
    %v3573 = vpack.c.b16 %v3381, %v3377
    %v3574 = vpack.c.b16 %v3386, %v3382
    %v3575 = vpack.c.b16 %v3387, %v3383
    %v3576 = vpack.c.b16 %v3388, %v3384
    %v3577 = vpack.c.b16 %v3389, %v3385
    %v3578 = vpack.c.b16 %v3394, %v3390
    %v3579 = vpack.c.b16 %v3395, %v3391
    %v3580 = vpack.c.b16 %v3396, %v3392
    %v3581 = vpack.c.b16 %v3397, %v3393
    %v3582 = vpack.c.b16 %v3402, %v3398
    %v3583 = vpack.c.b16 %v3403, %v3399
    %v3584 = vpack.c.b16 %v3404, %v3400
    %v3585 = vpack.c.b16 %v3405, %v3401
    %v3586 = vpack.c.b16 %v3410, %v3406
    %v3587 = vpack.c.b16 %v3411, %v3407
    %v3588 = vpack.c.b16 %v3412, %v3408
    %v3589 = vpack.c.b16 %v3413, %v3409
    %v3590 = vpack.c.b16 %v3418, %v3414
    %v3591 = vpack.c.b16 %v3419, %v3415
    %v3592 = vpack.c.b16 %v3420, %v3416
    %v3593 = vpack.c.b16 %v3421, %v3417
    %v3594 = vpack.c.b16 %v3426, %v3422
    %v3595 = vpack.c.b16 %v3427, %v3423
    %v3596 = vpack.c.b16 %v3428, %v3424
    %v3597 = vpack.c.b16 %v3429, %v3425
    %v3598 = vpack.c.b16 %v3434, %v3430
    %v3599 = vpack.c.b16 %v3435, %v3431
    %v3600 = vpack.c.b16 %v3436, %v3432
    %v3601 = vpack.c.b16 %v3437, %v3433
    %v3602 = vpack.c.b16 %v3442, %v3438
    %v3603 = vpack.c.b16 %v3443, %v3439
    %v3604 = vpack.c.b16 %v3444, %v3440
    %v3605 = vpack.c.b16 %v3445, %v3441
    %v3606 = vpack.c.b16 %v3450, %v3446
    %v3607 = vpack.c.b16 %v3451, %v3447
    %v3608 = vpack.c.b16 %v3452, %v3448
    %v3609 = vpack.c.b16 %v3453, %v3449
    %v3610 = vpack.c.b16 %v3458, %v3454
    %v3611 = vpack.c.b16 %v3459, %v3455
    %v3612 = vpack.c.b16 %v3460, %v3456
    %v3613 = vpack.c.b16 %v3461, %v3457
    %v3614 = vpack.c.b16 %v3466, %v3462
    %v3615 = vpack.c.b16 %v3467, %v3463
    %v3616 = vpack.c.b16 %v3468, %v3464
    %v3617 = vpack.c.b16 %v3469, %v3465
    %v3618 = vpack.c.b16 %v3474, %v3470
    %v3619 = vpack.c.b16 %v3475, %v3471
    %v3620 = vpack.c.b16 %v3476, %v3472
    %v3621 = vpack.c.b16 %v3477, %v3473
    %v3622 = vpack.c.b16 %v3482, %v3478
    %v3623 = vpack.c.b16 %v3483, %v3479
    %v3624 = vpack.c.b16 %v3484, %v3480
    %v3625 = vpack.c.b16 %v3485, %v3481
    %v3626 = vpack.c.b16 %v3490, %v3486
    %v3627 = vpack.c.b16 %v3491, %v3487
    %v3628 = vpack.c.b16 %v3492, %v3488
    %v3629 = vpack.c.b16 %v3493, %v3489
    %v3630 = vpack.c.b16 %v3498, %v3494
    %v3631 = vpack.c.b16 %v3499, %v3495
    %v3632 = vpack.c.b16 %v3500, %v3496
    %v3633 = vpack.c.b16 %v3501, %v3497
    %v3634 = vpack.c.b16 %v3506, %v3502
    %v3635 = vpack.c.b16 %v3507, %v3503
    %v3636 = vpack.c.b16 %v3508, %v3504
    %v3637 = vpack.c.b16 %v3509, %v3505
    %3766 = vmatprep.subr.bf16.mxu0 %v3511
    %3767 = vmatpush1.bf16.msra.mxu0 %v3510
    %3768 = vmatprep.subr.bf16.mxu0 %v3515
    %3769 = vmatpush1.bf16.msra.mxu0 %v3514
    %3770 = vmatprep.subr.bf16.mxu0 %v3519
    %3771 = vmatpush1.bf16.msra.mxu0 %v3518
    %3772 = vmatprep.subr.bf16.mxu0 %v3523
    %3773 = vmatpush1.bf16.msra.mxu0 %v3522
    %3774 = vmatprep.subr.bf16.mxu0 %v3527
    %3775 = vmatpush1.bf16.msra.mxu0 %v3526
    %3776 = vmatprep.subr.bf16.mxu0 %v3531
    %3777 = vmatpush1.bf16.msra.mxu0 %v3530
    %3778 = vmatprep.subr.bf16.mxu0 %v3535
    %3779 = vmatpush1.bf16.msra.mxu0 %v3534
    %3780 = vmatprep.subr.bf16.mxu0 %v3539
    %3781 = vmatpush1.bf16.msra.mxu0 %v3538
    %3782 = vmatprep.subr.bf16.mxu0 %v3543
    %3783 = vmatpush1.bf16.msra.mxu0 %v3542
    %3784 = vmatprep.subr.bf16.mxu0 %v3547
    %3785 = vmatpush1.bf16.msra.mxu0 %v3546
    %3786 = vmatprep.subr.bf16.mxu0 %v3551
    %3787 = vmatpush1.bf16.msra.mxu0 %v3550
    %3788 = vmatprep.subr.bf16.mxu0 %v3555
    %3789 = vmatpush1.bf16.msra.mxu0 %v3554
    %3790 = vmatprep.subr.bf16.mxu0 %v3559
    %3791 = vmatpush1.bf16.msra.mxu0 %v3558
    %3792 = vmatprep.subr.bf16.mxu0 %v3563
    %3793 = vmatpush1.bf16.msra.mxu0 %v3562
    %3794 = vmatprep.subr.bf16.mxu0 %v3567
    %3795 = vmatpush1.bf16.msra.mxu0 %v3566
    %3796 = vmatprep.subr.bf16.mxu0 %v3571
    %3797 = vmatpush1.bf16.msra.mxu0 %v3570
    %3798 = vmatprep.mubr.bf16.mxu0 %v2995
    %3799 = vmatmul.mubr.bf16.gmra.mrb[0].mxu0 %v2994
    %v3800 = vpop.f32.mrb[0].mxu0
    %v3801 = vadd.f32 0.0, %v3800
    %v3802 = vpop.f32.mrb[0].mxu0
    %v3803 = vadd.f32 0.0, %v3802
    %v3804 = vpop.f32.mrb[0].mxu0
    %v3805 = vpop.f32.mrb[0].mxu0
    %3806 = vdwg.mxu0
    %3807 = vmatprep.subr.bf16.mxu0 %v3575
    %3808 = vmatpush1.bf16.msra.mxu0 %v3574
    %3809 = vmatprep.subr.bf16.mxu0 %v3579
    %3810 = vmatpush1.bf16.msra.mxu0 %v3578
    %3811 = vmatprep.subr.bf16.mxu0 %v3583
    %3812 = vmatpush1.bf16.msra.mxu0 %v3582
    %3813 = vmatprep.subr.bf16.mxu0 %v3587
    %3814 = vmatpush1.bf16.msra.mxu0 %v3586
    %3815 = vmatprep.subr.bf16.mxu0 %v3591
    %3816 = vmatpush1.bf16.msra.mxu0 %v3590
    %3817 = vmatprep.subr.bf16.mxu0 %v3595
    %3818 = vmatpush1.bf16.msra.mxu0 %v3594
    %3819 = vmatprep.subr.bf16.mxu0 %v3599
    %3820 = vmatpush1.bf16.msra.mxu0 %v3598
    %3821 = vmatprep.subr.bf16.mxu0 %v3603
    %3822 = vmatpush1.bf16.msra.mxu0 %v3602
    %3823 = vmatprep.subr.bf16.mxu0 %v3607
    %3824 = vmatpush1.bf16.msra.mxu0 %v3606
    %3825 = vmatprep.subr.bf16.mxu0 %v3611
    %3826 = vmatpush1.bf16.msra.mxu0 %v3610
    %3827 = vmatprep.subr.bf16.mxu0 %v3615
    %3828 = vmatpush1.bf16.msra.mxu0 %v3614
    %3829 = vmatprep.subr.bf16.mxu0 %v3619
    %3830 = vmatpush1.bf16.msra.mxu0 %v3618
    %3831 = vmatprep.subr.bf16.mxu0 %v3623
    %3832 = vmatpush1.bf16.msra.mxu0 %v3622
    %3833 = vmatprep.subr.bf16.mxu0 %v3627
    %3834 = vmatpush1.bf16.msra.mxu0 %v3626
    %3835 = vmatprep.subr.bf16.mxu0 %v3631
    %3836 = vmatpush1.bf16.msra.mxu0 %v3630
    %3837 = vmatprep.subr.bf16.mxu0 %v3635
    %3838 = vmatpush1.bf16.msra.mxu0 %v3634
    %3839 = vmatprep.mubr.bf16.mxu0 %v2997
    %3840 = vmatmul.mubr.bf16.gmra.mrb[0].mxu0 %v2996
    %v3841 = vpop.f32.mrb[0].mxu0
    %v3842 = vadd.f32 %v3801, %v3841
    %v3843 = vpop.f32.mrb[0].mxu0
    %v3844 = vadd.f32 %v3803, %v3843
    %v3845 = vpop.f32.mrb[0].mxu0
    %v3846 = vpop.f32.mrb[0].mxu0
    %3847 = vdwg.mxu0
    %3848 = vmatprep.subr.bf16.mxu0 %v3513
    %3849 = vmatpush1.bf16.msra.mxu0 %v3512
    %3850 = vmatprep.subr.bf16.mxu0 %v3517
    %3851 = vmatpush1.bf16.msra.mxu0 %v3516
    %3852 = vmatprep.subr.bf16.mxu0 %v3521
    %3853 = vmatpush1.bf16.msra.mxu0 %v3520
    %3854 = vmatprep.subr.bf16.mxu0 %v3525
    %3855 = vmatpush1.bf16.msra.mxu0 %v3524
    %3856 = vmatprep.subr.bf16.mxu0 %v3529
    %3857 = vmatpush1.bf16.msra.mxu0 %v3528
    %3858 = vmatprep.subr.bf16.mxu0 %v3533
    %3859 = vmatpush1.bf16.msra.mxu0 %v3532
    %3860 = vmatprep.subr.bf16.mxu0 %v3537
    %3861 = vmatpush1.bf16.msra.mxu0 %v3536
    %3862 = vmatprep.subr.bf16.mxu0 %v3541
    %3863 = vmatpush1.bf16.msra.mxu0 %v3540
    %3864 = vmatprep.subr.bf16.mxu0 %v3545
    %3865 = vmatpush1.bf16.msra.mxu0 %v3544
    %3866 = vmatprep.subr.bf16.mxu0 %v3549
    %3867 = vmatpush1.bf16.msra.mxu0 %v3548
    %3868 = vmatprep.subr.bf16.mxu0 %v3553
    %3869 = vmatpush1.bf16.msra.mxu0 %v3552
    %3870 = vmatprep.subr.bf16.mxu0 %v3557
    %3871 = vmatpush1.bf16.msra.mxu0 %v3556
    %3872 = vmatprep.subr.bf16.mxu0 %v3561
    %3873 = vmatpush1.bf16.msra.mxu0 %v3560
    %3874 = vmatprep.subr.bf16.mxu0 %v3565
    %3875 = vmatpush1.bf16.msra.mxu0 %v3564
    %3876 = vmatprep.subr.bf16.mxu0 %v3569
    %3877 = vmatpush1.bf16.msra.mxu0 %v3568
    %3878 = vmatprep.subr.bf16.mxu0 %v3573
    %3879 = vmatpush1.bf16.msra.mxu0 %v3572
    %3880 = vmatprep.mubr.bf16.mxu0 %v2995
    %3881 = vmatmul.mubr.bf16.gmra.mrb[0].mxu0 %v2994
    %v3882 = vpop.f32.mrb[0].mxu0
    %v3883 = vadd.f32 0.0, %v3882
    %v3884 = vpop.f32.mrb[0].mxu0
    %v3885 = vadd.f32 0.0, %v3884
    %v3886 = vpop.f32.mrb[0].mxu0
    %v3887 = vpop.f32.mrb[0].mxu0
    %3888 = vdwg.mxu0
    %3889 = vmatprep.subr.bf16.mxu0 %v3577
    %3890 = vmatpush1.bf16.msra.mxu0 %v3576
    %3891 = vmatprep.subr.bf16.mxu0 %v3581
    %3892 = vmatpush1.bf16.msra.mxu0 %v3580
    %3893 = vmatprep.subr.bf16.mxu0 %v3585
    %3894 = vmatpush1.bf16.msra.mxu0 %v3584
    %3895 = vmatprep.subr.bf16.mxu0 %v3589
    %3896 = vmatpush1.bf16.msra.mxu0 %v3588
    %3897 = vmatprep.subr.bf16.mxu0 %v3593
    %3898 = vmatpush1.bf16.msra.mxu0 %v3592
    %3899 = vmatprep.subr.bf16.mxu0 %v3597
    %3900 = vmatpush1.bf16.msra.mxu0 %v3596
    %3901 = vmatprep.subr.bf16.mxu0 %v3601
    %3902 = vmatpush1.bf16.msra.mxu0 %v3600
    %3903 = vmatprep.subr.bf16.mxu0 %v3605
    %3904 = vmatpush1.bf16.msra.mxu0 %v3604
    %3905 = vmatprep.subr.bf16.mxu0 %v3609
    %3906 = vmatpush1.bf16.msra.mxu0 %v3608
    %3907 = vmatprep.subr.bf16.mxu0 %v3613
    %3908 = vmatpush1.bf16.msra.mxu0 %v3612
    %3909 = vmatprep.subr.bf16.mxu0 %v3617
    %3910 = vmatpush1.bf16.msra.mxu0 %v3616
    %3911 = vmatprep.subr.bf16.mxu0 %v3621
    %3912 = vmatpush1.bf16.msra.mxu0 %v3620
    %3913 = vmatprep.subr.bf16.mxu0 %v3625
    %3914 = vmatpush1.bf16.msra.mxu0 %v3624
    %3915 = vmatprep.subr.bf16.mxu0 %v3629
    %3916 = vmatpush1.bf16.msra.mxu0 %v3628
    %3917 = vmatprep.subr.bf16.mxu0 %v3633
    %3918 = vmatpush1.bf16.msra.mxu0 %v3632
    %3919 = vmatprep.subr.bf16.mxu0 %v3637
    %3920 = vmatpush1.bf16.msra.mxu0 %v3636
    %3921 = vmatprep.mubr.bf16.mxu0 %v2997
    %3922 = vmatmul.mubr.bf16.gmra.mrb[0].mxu0 %v2996
    %v3923 = vpop.f32.mrb[0].mxu0
    %v3924 = vadd.f32 %v3883, %v3923
    %v3925 = vpop.f32.mrb[0].mxu0
    %v3926 = vadd.f32 %v3885, %v3925
    %v3927 = vpop.f32.mrb[0].mxu0
    %v3928 = vpop.f32.mrb[0].mxu0
    %3929 = vdwg.mxu0
    %v3930 = vsel %vm2513, %v3842, 0.0
    %v3931 = vrot.slane %v3930, 4
    %v3932 = vadd.f32 %v3930, %v3931
    %v3933 = vrot.slane %v3932, 2
    %v3934 = vadd.f32 %v3932, %v3933
    %v3935 = vrot.slane %v3934, 1
    %v3936 = vadd.f32 %v3934, %v3935
    %v3937 = vsel %vm2513, %v3844, 0.0
    %v3938 = vrot.slane %v3937, 4
    %v3939 = vadd.f32 %v3937, %v3938
    %v3940 = vrot.slane %v3939, 2
    %v3941 = vadd.f32 %v3939, %v3940
    %v3942 = vrot.slane %v3941, 1
    %v3943 = vadd.f32 %v3941, %v3942
    %v3944 = vsel %vm2513, %v3924, 0.0
    %v3945 = vrot.slane %v3944, 4
    %v3946 = vadd.f32 %v3944, %v3945
    %v3947 = vrot.slane %v3946, 2
    %v3948 = vadd.f32 %v3946, %v3947
    %v3949 = vrot.slane %v3948, 1
    %v3950 = vadd.f32 %v3948, %v3949
    %v3951 = vsel %vm2513, %v3926, 0.0
    %v3952 = vrot.slane %v3951, 4
    %v3953 = vadd.f32 %v3951, %v3952
    %v3954 = vrot.slane %v3953, 2
    %v3955 = vadd.f32 %v3953, %v3954
    %v3956 = vrot.slane %v3955, 1
    %v3957 = vadd.f32 %v3955, %v3956
    %v3958 = vmul.f32 %v3842, %v3842
    %v3959 = vmul.f32 %v3844, %v3844
    %v3960 = vmul.f32 %v3924, %v3924
    %v3961 = vmul.f32 %v3926, %v3926
    %v3962 = vsel %vm2513, %v3958, 0.0
    %v3963 = vrot.slane %v3962, 4
    %v3964 = vadd.f32 %v3962, %v3963
    %v3965 = vrot.slane %v3964, 2
    %v3966 = vadd.f32 %v3964, %v3965
    %v3967 = vrot.slane %v3966, 1
    %v3968 = vadd.f32 %v3966, %v3967
    %v3969 = vsel %vm2513, %v3959, 0.0
    %v3970 = vrot.slane %v3969, 4
    %v3971 = vadd.f32 %v3969, %v3970
    %v3972 = vrot.slane %v3971, 2
    %v3973 = vadd.f32 %v3971, %v3972
    %v3974 = vrot.slane %v3973, 1
    %v3975 = vadd.f32 %v3973, %v3974
    %v3976 = vsel %vm2513, %v3960, 0.0
    %v3977 = vrot.slane %v3976, 4
    %v3978 = vadd.f32 %v3976, %v3977
    %v3979 = vrot.slane %v3978, 2
    %v3980 = vadd.f32 %v3978, %v3979
    %v3981 = vrot.slane %v3980, 1
    %v3982 = vadd.f32 %v3980, %v3981
    %v3983 = vsel %vm2513, %v3961, 0.0
    %v3984 = vrot.slane %v3983, 4
    %v3985 = vadd.f32 %v3983, %v3984
    %v3986 = vrot.slane %v3985, 2
    %v3987 = vadd.f32 %v3985, %v3986
    %v3988 = vrot.slane %v3987, 1
    %v3989 = vadd.f32 %v3987, %v3988
    %v3990 = vsel %vm2574, %v3936, %v3968
    %v3991 = vsel %vm2574, %v3943, %v3975
    %v3992 = vsel %vm2574, %v3950, %v3982
    %v3993 = vsel %vm2574, %v3957, %v3989
    %v3994 = vmul.f32 %v3990, 0.00390625
    %v3995 = vmul.f32 %v3991, 0.00390625
    %v3996 = vmul.f32 %v3992, 0.00390625
    %v3997 = vmul.f32 %v3993, 0.00390625
    %3998 = vmatprep.subr.mxu0 0.0
    %3999 = vmatpush1.msra.mxu0 %v93
    %4000 = vmatprep.subr.mxu0 0.0
    %4001 = vmatpush1.msra.mxu0 %v94
    %4002 = vmatprep.subr.mxu0 0.0
    %4003 = vmatpush1.msra.mxu0 %v95
    %4004 = vmatprep.subr.mxu0 0.0
    %4005 = vmatpush1.msra.mxu0 %v96
    %4006 = vmatprep.subr.mxu0 0.0
    %4007 = vmatpush1.msra.mxu0 %v97
    %4008 = vmatprep.subr.mxu0 0.0
    %4009 = vmatpush1.msra.mxu0 %v98
    %4010 = vmatprep.subr.mxu0 0.0
    %4011 = vmatpush1.msra.mxu0 %v99
    %4012 = vmatprep.subr.mxu0 0.0
    %4013 = vmatpush1.msra.mxu0 %v100
    %4014 = vmatprep.subr.mxu0 0.0
    %4015 = vmatpush1.msra.mxu0 %v101
    %4016 = vmatprep.subr.mxu0 0.0
    %4017 = vmatpush1.msra.mxu0 %v102
    %4018 = vmatprep.subr.mxu0 0.0
    %4019 = vmatpush1.msra.mxu0 %v103
    %4020 = vmatprep.subr.mxu0 0.0
    %4021 = vmatpush1.msra.mxu0 %v104
    %4022 = vmatprep.subr.mxu0 0.0
    %4023 = vmatpush1.msra.mxu0 %v105
    %4024 = vmatprep.subr.mxu0 0.0
    %4025 = vmatpush1.msra.mxu0 %v106
    %4026 = vmatprep.subr.mxu0 0.0
    %4027 = vmatpush1.msra.mxu0 %v107
    %4028 = vmatprep.subr.mxu0 0.0
    %4029 = vmatpush1.msra.mxu0 %v108
    %4030 = vmatprep.subr.mxu0 0.0
    %4031 = vmatpush1.msra.mxu0 %v109
    %4032 = vmatprep.subr.mxu0 0.0
    %4033 = vmatpush1.msra.mxu0 %v110
    %4034 = vmatprep.subr.mxu0 0.0
    %4035 = vmatpush1.msra.mxu0 %v111
    %4036 = vmatprep.subr.mxu0 0.0
    %4037 = vmatpush1.msra.mxu0 %v112
    %4038 = vmatprep.subr.mxu0 0.0
    %4039 = vmatpush1.msra.mxu0 %v113
    %4040 = vmatprep.subr.mxu0 0.0
    %4041 = vmatpush1.msra.mxu0 %v114
    %4042 = vmatprep.subr.mxu0 0.0
    %4043 = vmatpush1.msra.mxu0 %v115
    %4044 = vmatprep.subr.mxu0 0.0
    %4045 = vmatpush1.msra.mxu0 %v116
    %4046 = vmatprep.subr.mxu0 0.0
    %4047 = vmatpush1.msra.mxu0 %v117
    %4048 = vmatprep.subr.mxu0 0.0
    %4049 = vmatpush1.msra.mxu0 %v118
    %4050 = vmatprep.subr.mxu0 0.0
    %4051 = vmatpush1.msra.mxu0 %v119
    %4052 = vmatprep.subr.mxu0 0.0
    %4053 = vmatpush1.msra.mxu0 %v120
    %4054 = vmatprep.subr.mxu0 0.0
    %4055 = vmatpush1.msra.mxu0 %v121
    %4056 = vmatprep.subr.mxu0 0.0
    %4057 = vmatpush1.msra.mxu0 %v122
    %4058 = vmatprep.subr.mxu0 0.0
    %4059 = vmatpush1.msra.mxu0 %v123
    %4060 = vmatprep.subr.mxu0 0.0
    %4061 = vmatpush1.msra.mxu0 %v124
    %4062 = vmatprep.mubr.f32.mxu0 %v3995
    %4063 = vmatmul.mubr.f32.gmra.mrb[0].mxu0 %v3994
    %v4064 = vpop.f32.mrb[0].mxu0
    %v4065 = vadd.f32 0.0, %v4064
    %v4066 = vpop.f32.mrb[0].mxu0
    %4067 = vdwg.mxu0
    %4068 = vmatprep.subr.mxu0 0.0
    %4069 = vmatpush1.msra.mxu0 %v125
    %4070 = vmatprep.subr.mxu0 0.0
    %4071 = vmatpush1.msra.mxu0 %v126
    %4072 = vmatprep.subr.mxu0 0.0
    %4073 = vmatpush1.msra.mxu0 %v127
    %4074 = vmatprep.subr.mxu0 0.0
    %4075 = vmatpush1.msra.mxu0 %v128
    %4076 = vmatprep.subr.mxu0 0.0
    %4077 = vmatpush1.msra.mxu0 %v129
    %4078 = vmatprep.subr.mxu0 0.0
    %4079 = vmatpush1.msra.mxu0 %v130
    %4080 = vmatprep.subr.mxu0 0.0
    %4081 = vmatpush1.msra.mxu0 %v131
    %4082 = vmatprep.subr.mxu0 0.0
    %4083 = vmatpush1.msra.mxu0 %v132
    %4084 = vmatprep.subr.mxu0 0.0
    %4085 = vmatpush1.msra.mxu0 %v133
    %4086 = vmatprep.subr.mxu0 0.0
    %4087 = vmatpush1.msra.mxu0 %v134
    %4088 = vmatprep.subr.mxu0 0.0
    %4089 = vmatpush1.msra.mxu0 %v135
    %4090 = vmatprep.subr.mxu0 0.0
    %4091 = vmatpush1.msra.mxu0 %v136
    %4092 = vmatprep.subr.mxu0 0.0
    %4093 = vmatpush1.msra.mxu0 %v137
    %4094 = vmatprep.subr.mxu0 0.0
    %4095 = vmatpush1.msra.mxu0 %v138
    %4096 = vmatprep.subr.mxu0 0.0
    %4097 = vmatpush1.msra.mxu0 %v139
    %4098 = vmatprep.subr.mxu0 0.0
    %4099 = vmatpush1.msra.mxu0 %v140
    %4100 = vmatprep.subr.mxu0 0.0
    %4101 = vmatpush1.msra.mxu0 %v141
    %4102 = vmatprep.subr.mxu0 0.0
    %4103 = vmatpush1.msra.mxu0 %v142
    %4104 = vmatprep.subr.mxu0 0.0
    %4105 = vmatpush1.msra.mxu0 %v143
    %4106 = vmatprep.subr.mxu0 0.0
    %4107 = vmatpush1.msra.mxu0 %v144
    %4108 = vmatprep.subr.mxu0 0.0
    %4109 = vmatpush1.msra.mxu0 %v145
    %4110 = vmatprep.subr.mxu0 0.0
    %4111 = vmatpush1.msra.mxu0 %v146
    %4112 = vmatprep.subr.mxu0 0.0
    %4113 = vmatpush1.msra.mxu0 %v147
    %4114 = vmatprep.subr.mxu0 0.0
    %4115 = vmatpush1.msra.mxu0 %v148
    %4116 = vmatprep.subr.mxu0 0.0
    %4117 = vmatpush1.msra.mxu0 %v149
    %4118 = vmatprep.subr.mxu0 0.0
    %4119 = vmatpush1.msra.mxu0 %v150
    %4120 = vmatprep.subr.mxu0 0.0
    %4121 = vmatpush1.msra.mxu0 %v151
    %4122 = vmatprep.subr.mxu0 0.0
    %4123 = vmatpush1.msra.mxu0 %v152
    %4124 = vmatprep.subr.mxu0 0.0
    %4125 = vmatpush1.msra.mxu0 %v153
    %4126 = vmatprep.subr.mxu0 0.0
    %4127 = vmatpush1.msra.mxu0 %v154
    %4128 = vmatprep.subr.mxu0 0.0
    %4129 = vmatpush1.msra.mxu0 %v155
    %4130 = vmatprep.subr.mxu0 0.0
    %4131 = vmatpush1.msra.mxu0 %v156
    %4132 = vmatprep.mubr.f32.mxu0 %v3997
    %4133 = vmatmul.mubr.f32.gmra.mrb[0].mxu0 %v3996
    %v4134 = vpop.f32.mrb[0].mxu0
    %v4135 = vadd.f32 %v4065, %v4134
    %v4136 = vpop.f32.mrb[0].mxu0
    %4137 = vdwg.mxu0
    %v4139 = vsel %vm2727, %v4135, 0
    %4141 = vmatprep.subr.mxu0 %v2734
    %4142 = vmatpush1.msra.mxu0 %v2732
    %4143 = vmatprep.subr.mxu0 0.0
    %4144 = vmatpush1.msra.mxu0 0.0
    %4145 = vmatprep.subr.mxu0 0.0
    %4146 = vmatpush1.msra.mxu0 0.0
    %4147 = vmatprep.subr.mxu0 0.0
    %4148 = vmatpush1.msra.mxu0 0.0
    %4149 = vmatprep.subr.mxu0 0.0
    %4150 = vmatpush1.msra.mxu0 0.0
    %4151 = vmatprep.subr.mxu0 0.0
    %4152 = vmatpush1.msra.mxu0 0.0
    %4153 = vmatprep.subr.mxu0 0.0
    %4154 = vmatpush1.msra.mxu0 0.0
    %4155 = vmatprep.subr.mxu0 0.0
    %4156 = vmatpush1.msra.mxu0 0.0
    %4157 = vmatprep.subr.mxu0 0.0
    %4158 = vmatpush1.msra.mxu0 0.0
    %4159 = vmatprep.subr.mxu0 0.0
    %4160 = vmatpush1.msra.mxu0 0.0
    %4161 = vmatprep.subr.mxu0 0.0
    %4162 = vmatpush1.msra.mxu0 0.0
    %4163 = vmatprep.subr.mxu0 0.0
    %4164 = vmatpush1.msra.mxu0 0.0
    %4165 = vmatprep.subr.mxu0 0.0
    %4166 = vmatpush1.msra.mxu0 0.0
    %4167 = vmatprep.subr.mxu0 0.0
    %4168 = vmatpush1.msra.mxu0 0.0
    %4169 = vmatprep.subr.mxu0 0.0
    %4170 = vmatpush1.msra.mxu0 0.0
    %4171 = vmatprep.subr.mxu0 0.0
    %4172 = vmatpush1.msra.mxu0 0.0
    %4173 = vmatprep.subr.mxu0 0.0
    %4174 = vmatpush1.msra.mxu0 0.0
    %4175 = vmatprep.subr.mxu0 0.0
    %4176 = vmatpush1.msra.mxu0 0.0
    %4177 = vmatprep.subr.mxu0 0.0
    %4178 = vmatpush1.msra.mxu0 0.0
    %4179 = vmatprep.subr.mxu0 0.0
    %4180 = vmatpush1.msra.mxu0 0.0
    %4181 = vmatprep.subr.mxu0 0.0
    %4182 = vmatpush1.msra.mxu0 0.0
    %4183 = vmatprep.subr.mxu0 0.0
    %4184 = vmatpush1.msra.mxu0 0.0
    %4185 = vmatprep.subr.mxu0 0.0
    %4186 = vmatpush1.msra.mxu0 0.0
    %4187 = vmatprep.subr.mxu0 0.0
    %4188 = vmatpush1.msra.mxu0 0.0
    %4189 = vmatprep.subr.mxu0 0.0
    %4190 = vmatpush1.msra.mxu0 0.0
    %4191 = vmatprep.subr.mxu0 0.0
    %4192 = vmatpush1.msra.mxu0 0.0
    %4193 = vmatprep.subr.mxu0 0.0
    %4194 = vmatpush1.msra.mxu0 0.0
    %4195 = vmatprep.subr.mxu0 0.0
    %4196 = vmatpush1.msra.mxu0 0.0
    %4197 = vmatprep.subr.mxu0 0.0
    %4198 = vmatpush1.msra.mxu0 0.0
    %4199 = vmatprep.subr.mxu0 0.0
    %4200 = vmatpush1.msra.mxu0 0.0
    %4201 = vmatprep.subr.mxu0 0.0
    %4202 = vmatpush1.msra.mxu0 0.0
    %4203 = vmatprep.subr.mxu0 0.0
    %4204 = vmatpush1.msra.mxu0 0.0
    %4205 = vmatprep.mubr.f32.mxu0 0.0
    %4206 = vmatmul.mubr.f32.gmra.mrb[0].mxu0 %v4139
    %v4207 = vpop.f32.mrb[0].mxu0
    %v4208 = vadd.f32 0.0, %v4207
    %v4209 = vpop.f32.mrb[0].mxu0
    %v4210 = vadd.f32 0.0, %v4209
    %4211 = vdwg.mxu0
    %4212 = vmatprep.subr.mxu0 %v2738
    %4213 = vmatpush1.msra.mxu0 %v2736
    %4214 = vmatprep.subr.mxu0 0.0
    %4215 = vmatpush1.msra.mxu0 0.0
    %4216 = vmatprep.subr.mxu0 0.0
    %4217 = vmatpush1.msra.mxu0 0.0
    %4218 = vmatprep.subr.mxu0 0.0
    %4219 = vmatpush1.msra.mxu0 0.0
    %4220 = vmatprep.subr.mxu0 0.0
    %4221 = vmatpush1.msra.mxu0 0.0
    %4222 = vmatprep.subr.mxu0 0.0
    %4223 = vmatpush1.msra.mxu0 0.0
    %4224 = vmatprep.subr.mxu0 0.0
    %4225 = vmatpush1.msra.mxu0 0.0
    %4226 = vmatprep.subr.mxu0 0.0
    %4227 = vmatpush1.msra.mxu0 0.0
    %4228 = vmatprep.subr.mxu0 0.0
    %4229 = vmatpush1.msra.mxu0 0.0
    %4230 = vmatprep.subr.mxu0 0.0
    %4231 = vmatpush1.msra.mxu0 0.0
    %4232 = vmatprep.subr.mxu0 0.0
    %4233 = vmatpush1.msra.mxu0 0.0
    %4234 = vmatprep.subr.mxu0 0.0
    %4235 = vmatpush1.msra.mxu0 0.0
    %4236 = vmatprep.subr.mxu0 0.0
    %4237 = vmatpush1.msra.mxu0 0.0
    %4238 = vmatprep.subr.mxu0 0.0
    %4239 = vmatpush1.msra.mxu0 0.0
    %4240 = vmatprep.subr.mxu0 0.0
    %4241 = vmatpush1.msra.mxu0 0.0
    %4242 = vmatprep.subr.mxu0 0.0
    %4243 = vmatpush1.msra.mxu0 0.0
    %4244 = vmatprep.subr.mxu0 0.0
    %4245 = vmatpush1.msra.mxu0 0.0
    %4246 = vmatprep.subr.mxu0 0.0
    %4247 = vmatpush1.msra.mxu0 0.0
    %4248 = vmatprep.subr.mxu0 0.0
    %4249 = vmatpush1.msra.mxu0 0.0
    %4250 = vmatprep.subr.mxu0 0.0
    %4251 = vmatpush1.msra.mxu0 0.0
    %4252 = vmatprep.subr.mxu0 0.0
    %4253 = vmatpush1.msra.mxu0 0.0
    %4254 = vmatprep.subr.mxu0 0.0
    %4255 = vmatpush1.msra.mxu0 0.0
    %4256 = vmatprep.subr.mxu0 0.0
    %4257 = vmatpush1.msra.mxu0 0.0
    %4258 = vmatprep.subr.mxu0 0.0
    %4259 = vmatpush1.msra.mxu0 0.0
    %4260 = vmatprep.subr.mxu0 0.0
    %4261 = vmatpush1.msra.mxu0 0.0
    %4262 = vmatprep.subr.mxu0 0.0
    %4263 = vmatpush1.msra.mxu0 0.0
    %4264 = vmatprep.subr.mxu0 0.0
    %4265 = vmatpush1.msra.mxu0 0.0
    %4266 = vmatprep.subr.mxu0 0.0
    %4267 = vmatpush1.msra.mxu0 0.0
    %4268 = vmatprep.subr.mxu0 0.0
    %4269 = vmatpush1.msra.mxu0 0.0
    %4270 = vmatprep.subr.mxu0 0.0
    %4271 = vmatpush1.msra.mxu0 0.0
    %4272 = vmatprep.subr.mxu0 0.0
    %4273 = vmatpush1.msra.mxu0 0.0
    %4274 = vmatprep.subr.mxu0 0.0
    %4275 = vmatpush1.msra.mxu0 0.0
    %4276 = vmatprep.mubr.f32.mxu0 0.0
    %4277 = vmatmul.mubr.f32.gmra.mrb[0].mxu0 %v4139
    %v4278 = vpop.f32.mrb[0].mxu0
    %v4279 = vadd.f32 0.0, %v4278
    %v4280 = vpop.f32.mrb[0].mxu0
    %v4281 = vadd.f32 0.0, %v4280
    %4282 = vdwg.mxu0
    %v4283 = vmul.f32 %v4208, %v4208
    %v4284 = vmul.f32 %v4210, %v4210
    %v4285 = vmul.f32 %v4279, %v4279
    %v4286 = vmul.f32 %v4281, %v4281
    %v4291 = vrot.slane %v4283, 7
    %v4292 = vrot.slane %v4284, 7
    %v4293 = vrot.slane %v4285, 7
    %v4294 = vrot.slane %v4286, 7
    %v4299 = vsub.f32 %v4208, %v4291
    %v4300 = vsub.f32 %v4210, %v4292
    %v4301 = vsub.f32 %v4279, %v4293
    %v4302 = vsub.f32 %v4281, %v4294
    %v4303 = vmax.f32 %v4299, 0.0
    %v4304 = vmax.f32 %v4300, 0.0
    %v4305 = vmax.f32 %v4301, 0.0
    %v4306 = vmax.f32 %v4302, 0.0
    %v4307 = vadd.f32 %v4303, 1e-05
    %v4308 = vadd.f32 %v4304, 1e-05
    %v4309 = vadd.f32 %v4305, 1e-05
    %v4310 = vadd.f32 %v4306, 1e-05
    %v4311 = vrsqrt.pop %v4307
    %v4312 = vrsqrt.pop %v4308
    %v4313 = vrsqrt.pop %v4309
    %v4314 = vrsqrt.pop %v4310
    %v4319 = vrot.slane %v4311, 7
    %v4320 = vrot.slane %v4312, 7
    %v4321 = vrot.slane %v4313, 7
    %v4322 = vrot.slane %v4314, 7
    %v4327 = vmul.f32 %v159, %v4319
    %v4328 = vmul.f32 %v160, %v4320
    %v4329 = vmul.f32 %v161, %v4321
    %v4330 = vmul.f32 %v162, %v4322
    %v4335 = vrot.slane %v4327, 2
    %v4336 = vrot.slane %v4328, 2
    %v4337 = vrot.slane %v4329, 2
    %v4338 = vrot.slane %v4330, 2
    %v4343 = vmul.f32 %v4208, %v4335
    %v4344 = vmul.f32 %v4210, %v4336
    %v4345 = vmul.f32 %v4279, %v4337
    %v4346 = vmul.f32 %v4281, %v4338
    %v4351 = vrot.slane %v4343, 5
    %v4352 = vrot.slane %v4344, 5
    %v4353 = vrot.slane %v4345, 5
    %v4354 = vrot.slane %v4346, 5
    %v4359 = vsub.f32 %v159, %v4351
    %v4360 = vsub.f32 %v160, %v4352
    %v4361 = vsub.f32 %v161, %v4353
    %v4362 = vsub.f32 %v162, %v4354
    %v4363 = vlaneseq
    %v4364 = vshrl.u32 %v4363, 7
    %v4365 = vsub.s32 2, %v4364
    %v4366 = vrot.slane %v4327, %v4365
    %v4367 = vlaneseq
    %v4368 = vshrl.u32 %v4367, 7
    %v4369 = vsub.s32 2, %v4368
    %v4370 = vrot.slane %v4328, %v4369
    %v4371 = vlaneseq
    %v4372 = vshrl.u32 %v4371, 7
    %v4373 = vsub.s32 2, %v4372
    %v4374 = vrot.slane %v4329, %v4373
    %v4375 = vlaneseq
    %v4376 = vshrl.u32 %v4375, 7
    %v4377 = vsub.s32 2, %v4376
    %v4378 = vrot.slane %v4330, %v4377
    %v4379 = vmul.f32 %v3842, %v4366
    %v4380 = vmul.f32 %v3844, %v4370
    %v4381 = vmul.f32 %v3924, %v4374
    %v4382 = vmul.f32 %v3926, %v4378
    %v4383 = vlaneseq
    %v4384 = vshrl.u32 %v4383, 7
    %v4385 = vsub.s32 3, %v4384
    %v4386 = vrot.slane %v4359, %v4385
    %v4387 = vlaneseq
    %v4388 = vshrl.u32 %v4387, 7
    %v4389 = vsub.s32 3, %v4388
    %v4390 = vrot.slane %v4360, %v4389
    %v4391 = vlaneseq
    %v4392 = vshrl.u32 %v4391, 7
    %v4393 = vsub.s32 3, %v4392
    %v4394 = vrot.slane %v4361, %v4393
    %v4395 = vlaneseq
    %v4396 = vshrl.u32 %v4395, 7
    %v4397 = vsub.s32 3, %v4396
    %v4398 = vrot.slane %v4362, %v4397
    %v4399 = vadd.f32 %v4379, %v4386
    %v4400 = vadd.f32 %v4380, %v4390
    %v4401 = vadd.f32 %v4381, %v4394
    %v4402 = vadd.f32 %v4382, %v4398
    %v4403 = vmax.f32 %v4399, 0.0
    %v4404 = vmax.f32 %v4400, 0.0
    %v4405 = vmax.f32 %v4401, 0.0
    %v4406 = vmax.f32 %v4402, 0.0
    %v4407 = vpack.c.bf16 %v4403, %v4403
    %v4408 = vpack.c.bf16 %v4404, %v4404
    %v4409 = vpack.c.bf16 %v4405, %v4405
    %v4410 = vpack.c.bf16 %v4406, %v4406
    %v4411 = vld [vmem:[#allocation7] sm:$0xff]
    %v4412 = vld [vmem:[#allocation7 + $0x8] sm:$0xff]
    %v4413 = vld [vmem:[#allocation7 + $0x10] sm:$0xff]
    %v4414 = vld [vmem:[#allocation7 + $0x18] sm:$0xff]
    %v4415 = vld [vmem:[#allocation7 + $0x20] sm:$0xff]
    %v4416 = vld [vmem:[#allocation7 + $0x28] sm:$0xff]
    %v4417 = vld [vmem:[#allocation7 + $0x30] sm:$0xff]
    %v4418 = vld [vmem:[#allocation7 + $0x38] sm:$0xff]
    %v4419 = vld [vmem:[#allocation7 + $0x40] sm:$0xff]
    %v4420 = vld [vmem:[#allocation7 + $0x48] sm:$0xff]
    %v4421 = vld [vmem:[#allocation7 + $0x50] sm:$0xff]
    %v4422 = vld [vmem:[#allocation7 + $0x58] sm:$0xff]
    %v4423 = vld [vmem:[#allocation7 + $0x60] sm:$0xff]
    %v4424 = vld [vmem:[#allocation7 + $0x68] sm:$0xff]
    %v4425 = vld [vmem:[#allocation7 + $0x70] sm:$0xff]
    %v4426 = vld [vmem:[#allocation7 + $0x78] sm:$0xff]
    %v4427 = vld [vmem:[#allocation7 + $0x80] sm:$0xff]
    %v4428 = vld [vmem:[#allocation7 + $0x88] sm:$0xff]
    %v4429 = vld [vmem:[#allocation7 + $0x90] sm:$0xff]
    %v4430 = vld [vmem:[#allocation7 + $0x98] sm:$0xff]
    %v4431 = vld [vmem:[#allocation7 + $0xa0] sm:$0xff]
    %v4432 = vld [vmem:[#allocation7 + $0xa8] sm:$0xff]
    %v4433 = vld [vmem:[#allocation7 + $0xb0] sm:$0xff]
    %v4434 = vld [vmem:[#allocation7 + $0xb8] sm:$0xff]
    %v4435 = vld [vmem:[#allocation7 + $0xc0] sm:$0xff]
    %v4436 = vld [vmem:[#allocation7 + $0xc8] sm:$0xff]
    %v4437 = vld [vmem:[#allocation7 + $0xd0] sm:$0xff]
    %v4438 = vld [vmem:[#allocation7 + $0xd8] sm:$0xff]
    %v4439 = vld [vmem:[#allocation7 + $0xe0] sm:$0xff]
    %v4440 = vld [vmem:[#allocation7 + $0xe8] sm:$0xff]
    %v4441 = vld [vmem:[#allocation7 + $0xf0] sm:$0xff]
    %v4442 = vld [vmem:[#allocation7 + $0xf8] sm:$0xff]
    %v4443 = vld [vmem:[#allocation7 + $0x100] sm:$0xff]
    %v4444 = vld [vmem:[#allocation7 + $0x108] sm:$0xff]
    %v4445 = vld [vmem:[#allocation7 + $0x110] sm:$0xff]
    %v4446 = vld [vmem:[#allocation7 + $0x118] sm:$0xff]
    %v4447 = vld [vmem:[#allocation7 + $0x120] sm:$0xff]
    %v4448 = vld [vmem:[#allocation7 + $0x128] sm:$0xff]
    %v4449 = vld [vmem:[#allocation7 + $0x130] sm:$0xff]
    %v4450 = vld [vmem:[#allocation7 + $0x138] sm:$0xff]
    %v4451 = vld [vmem:[#allocation7 + $0x140] sm:$0xff]
    %v4452 = vld [vmem:[#allocation7 + $0x148] sm:$0xff]
    %v4453 = vld [vmem:[#allocation7 + $0x150] sm:$0xff]
    %v4454 = vld [vmem:[#allocation7 + $0x158] sm:$0xff]
    %v4455 = vld [vmem:[#allocation7 + $0x160] sm:$0xff]
    %v4456 = vld [vmem:[#allocation7 + $0x168] sm:$0xff]
    %v4457 = vld [vmem:[#allocation7 + $0x170] sm:$0xff]
    %v4458 = vld [vmem:[#allocation7 + $0x178] sm:$0xff]
    %v4459 = vld [vmem:[#allocation7 + $0x180] sm:$0xff]
    %v4460 = vld [vmem:[#allocation7 + $0x188] sm:$0xff]
    %v4461 = vld [vmem:[#allocation7 + $0x190] sm:$0xff]
    %v4462 = vld [vmem:[#allocation7 + $0x198] sm:$0xff]
    %v4463 = vld [vmem:[#allocation7 + $0x1a0] sm:$0xff]
    %v4464 = vld [vmem:[#allocation7 + $0x1a8] sm:$0xff]
    %v4465 = vld [vmem:[#allocation7 + $0x1b0] sm:$0xff]
    %v4466 = vld [vmem:[#allocation7 + $0x1b8] sm:$0xff]
    %v4467 = vld [vmem:[#allocation7 + $0x1c0] sm:$0xff]
    %v4468 = vld [vmem:[#allocation7 + $0x1c8] sm:$0xff]
    %v4469 = vld [vmem:[#allocation7 + $0x1d0] sm:$0xff]
    %v4470 = vld [vmem:[#allocation7 + $0x1d8] sm:$0xff]
    %v4471 = vld [vmem:[#allocation7 + $0x1e0] sm:$0xff]
    %v4472 = vld [vmem:[#allocation7 + $0x1e8] sm:$0xff]
    %v4473 = vld [vmem:[#allocation7 + $0x1f0] sm:$0xff]
    %v4474 = vld [vmem:[#allocation7 + $0x1f8] sm:$0xff]
    %v4475 = vld [vmem:[#allocation7 + $0x200] sm:$0xff]
    %v4476 = vld [vmem:[#allocation7 + $0x208] sm:$0xff]
    %v4477 = vld [vmem:[#allocation7 + $0x210] sm:$0xff]
    %v4478 = vld [vmem:[#allocation7 + $0x218] sm:$0xff]
    %v4479 = vld [vmem:[#allocation7 + $0x220] sm:$0xff]
    %v4480 = vld [vmem:[#allocation7 + $0x228] sm:$0xff]
    %v4481 = vld [vmem:[#allocation7 + $0x230] sm:$0xff]
    %v4482 = vld [vmem:[#allocation7 + $0x238] sm:$0xff]
    %v4483 = vld [vmem:[#allocation7 + $0x240] sm:$0xff]
    %v4484 = vld [vmem:[#allocation7 + $0x248] sm:$0xff]
    %v4485 = vld [vmem:[#allocation7 + $0x250] sm:$0xff]
    %v4486 = vld [vmem:[#allocation7 + $0x258] sm:$0xff]
    %v4487 = vld [vmem:[#allocation7 + $0x260] sm:$0xff]
    %v4488 = vld [vmem:[#allocation7 + $0x268] sm:$0xff]
    %v4489 = vld [vmem:[#allocation7 + $0x270] sm:$0xff]
    %v4490 = vld [vmem:[#allocation7 + $0x278] sm:$0xff]
    %v4491 = vld [vmem:[#allocation7 + $0x280] sm:$0xff]
    %v4492 = vld [vmem:[#allocation7 + $0x288] sm:$0xff]
    %v4493 = vld [vmem:[#allocation7 + $0x290] sm:$0xff]
    %v4494 = vld [vmem:[#allocation7 + $0x298] sm:$0xff]
    %v4495 = vld [vmem:[#allocation7 + $0x2a0] sm:$0xff]
    %v4496 = vld [vmem:[#allocation7 + $0x2a8] sm:$0xff]
    %v4497 = vld [vmem:[#allocation7 + $0x2b0] sm:$0xff]
    %v4498 = vld [vmem:[#allocation7 + $0x2b8] sm:$0xff]
    %v4499 = vld [vmem:[#allocation7 + $0x2c0] sm:$0xff]
    %v4500 = vld [vmem:[#allocation7 + $0x2c8] sm:$0xff]
    %v4501 = vld [vmem:[#allocation7 + $0x2d0] sm:$0xff]
    %v4502 = vld [vmem:[#allocation7 + $0x2d8] sm:$0xff]
    %v4503 = vld [vmem:[#allocation7 + $0x2e0] sm:$0xff]
    %v4504 = vld [vmem:[#allocation7 + $0x2e8] sm:$0xff]
    %v4505 = vld [vmem:[#allocation7 + $0x2f0] sm:$0xff]
    %v4506 = vld [vmem:[#allocation7 + $0x2f8] sm:$0xff]
    %v4507 = vld [vmem:[#allocation7 + $0x300] sm:$0xff]
    %v4508 = vld [vmem:[#allocation7 + $0x308] sm:$0xff]
    %v4509 = vld [vmem:[#allocation7 + $0x310] sm:$0xff]
    %v4510 = vld [vmem:[#allocation7 + $0x318] sm:$0xff]
    %v4511 = vld [vmem:[#allocation7 + $0x320] sm:$0xff]
    %v4512 = vld [vmem:[#allocation7 + $0x328] sm:$0xff]
    %v4513 = vld [vmem:[#allocation7 + $0x330] sm:$0xff]
    %v4514 = vld [vmem:[#allocation7 + $0x338] sm:$0xff]
    %v4515 = vld [vmem:[#allocation7 + $0x340] sm:$0xff]
    %v4516 = vld [vmem:[#allocation7 + $0x348] sm:$0xff]
    %v4517 = vld [vmem:[#allocation7 + $0x350] sm:$0xff]
    %v4518 = vld [vmem:[#allocation7 + $0x358] sm:$0xff]
    %v4519 = vld [vmem:[#allocation7 + $0x360] sm:$0xff]
    %v4520 = vld [vmem:[#allocation7 + $0x368] sm:$0xff]
    %v4521 = vld [vmem:[#allocation7 + $0x370] sm:$0xff]
    %v4522 = vld [vmem:[#allocation7 + $0x378] sm:$0xff]
    %v4523 = vld [vmem:[#allocation7 + $0x380] sm:$0xff]
    %v4524 = vld [vmem:[#allocation7 + $0x388] sm:$0xff]
    %v4525 = vld [vmem:[#allocation7 + $0x390] sm:$0xff]
    %v4526 = vld [vmem:[#allocation7 + $0x398] sm:$0xff]
    %v4527 = vld [vmem:[#allocation7 + $0x3a0] sm:$0xff]
    %v4528 = vld [vmem:[#allocation7 + $0x3a8] sm:$0xff]
    %v4529 = vld [vmem:[#allocation7 + $0x3b0] sm:$0xff]
    %v4530 = vld [vmem:[#allocation7 + $0x3b8] sm:$0xff]
    %v4531 = vld [vmem:[#allocation7 + $0x3c0] sm:$0xff]
    %v4532 = vld [vmem:[#allocation7 + $0x3c8] sm:$0xff]
    %v4533 = vld [vmem:[#allocation7 + $0x3d0] sm:$0xff]
    %v4534 = vld [vmem:[#allocation7 + $0x3d8] sm:$0xff]
    %v4535 = vld [vmem:[#allocation7 + $0x3e0] sm:$0xff]
    %v4536 = vld [vmem:[#allocation7 + $0x3e8] sm:$0xff]
    %v4537 = vld [vmem:[#allocation7 + $0x3f0] sm:$0xff]
    %v4538 = vld [vmem:[#allocation7 + $0x3f8] sm:$0xff]
    %v4667 = vunpack.c.l.b16 %v4411
    %v4668 = vunpack.c.h.b16 %v4411
    %v4669 = vunpack.c.l.b16 %v4412
    %v4670 = vunpack.c.h.b16 %v4412
    %v4671 = vunpack.c.l.b16 %v4413
    %v4672 = vunpack.c.h.b16 %v4413
    %v4673 = vunpack.c.l.b16 %v4414
    %v4674 = vunpack.c.h.b16 %v4414
    %v4675 = vunpack.c.l.b16 %v4415
    %v4676 = vunpack.c.h.b16 %v4415
    %v4677 = vunpack.c.l.b16 %v4416
    %v4678 = vunpack.c.h.b16 %v4416
    %v4679 = vunpack.c.l.b16 %v4417
    %v4680 = vunpack.c.h.b16 %v4417
    %v4681 = vunpack.c.l.b16 %v4418
    %v4682 = vunpack.c.h.b16 %v4418
    %v4683 = vunpack.c.l.b16 %v4419
    %v4684 = vunpack.c.h.b16 %v4419
    %v4685 = vunpack.c.l.b16 %v4420
    %v4686 = vunpack.c.h.b16 %v4420
    %v4687 = vunpack.c.l.b16 %v4421
    %v4688 = vunpack.c.h.b16 %v4421
    %v4689 = vunpack.c.l.b16 %v4422
    %v4690 = vunpack.c.h.b16 %v4422
    %v4691 = vunpack.c.l.b16 %v4423
    %v4692 = vunpack.c.h.b16 %v4423
    %v4693 = vunpack.c.l.b16 %v4424
    %v4694 = vunpack.c.h.b16 %v4424
    %v4695 = vunpack.c.l.b16 %v4425
    %v4696 = vunpack.c.h.b16 %v4425
    %v4697 = vunpack.c.l.b16 %v4426
    %v4698 = vunpack.c.h.b16 %v4426
    %v4699 = vunpack.c.l.b16 %v4427
    %v4700 = vunpack.c.h.b16 %v4427
    %v4701 = vunpack.c.l.b16 %v4428
    %v4702 = vunpack.c.h.b16 %v4428
    %v4703 = vunpack.c.l.b16 %v4429
    %v4704 = vunpack.c.h.b16 %v4429
    %v4705 = vunpack.c.l.b16 %v4430
    %v4706 = vunpack.c.h.b16 %v4430
    %v4707 = vunpack.c.l.b16 %v4431
    %v4708 = vunpack.c.h.b16 %v4431
    %v4709 = vunpack.c.l.b16 %v4432
    %v4710 = vunpack.c.h.b16 %v4432
    %v4711 = vunpack.c.l.b16 %v4433
    %v4712 = vunpack.c.h.b16 %v4433
    %v4713 = vunpack.c.l.b16 %v4434
    %v4714 = vunpack.c.h.b16 %v4434
    %v4715 = vunpack.c.l.b16 %v4435
    %v4716 = vunpack.c.h.b16 %v4435
    %v4717 = vunpack.c.l.b16 %v4436
    %v4718 = vunpack.c.h.b16 %v4436
    %v4719 = vunpack.c.l.b16 %v4437
    %v4720 = vunpack.c.h.b16 %v4437
    %v4721 = vunpack.c.l.b16 %v4438
    %v4722 = vunpack.c.h.b16 %v4438
    %v4723 = vunpack.c.l.b16 %v4439
    %v4724 = vunpack.c.h.b16 %v4439
    %v4725 = vunpack.c.l.b16 %v4440
    %v4726 = vunpack.c.h.b16 %v4440
    %v4727 = vunpack.c.l.b16 %v4441
    %v4728 = vunpack.c.h.b16 %v4441
    %v4729 = vunpack.c.l.b16 %v4442
    %v4730 = vunpack.c.h.b16 %v4442
    %v4731 = vunpack.c.l.b16 %v4443
    %v4732 = vunpack.c.h.b16 %v4443
    %v4733 = vunpack.c.l.b16 %v4444
    %v4734 = vunpack.c.h.b16 %v4444
    %v4735 = vunpack.c.l.b16 %v4445
    %v4736 = vunpack.c.h.b16 %v4445
    %v4737 = vunpack.c.l.b16 %v4446
    %v4738 = vunpack.c.h.b16 %v4446
    %v4739 = vunpack.c.l.b16 %v4447
    %v4740 = vunpack.c.h.b16 %v4447
    %v4741 = vunpack.c.l.b16 %v4448
    %v4742 = vunpack.c.h.b16 %v4448
    %v4743 = vunpack.c.l.b16 %v4449
    %v4744 = vunpack.c.h.b16 %v4449
    %v4745 = vunpack.c.l.b16 %v4450
    %v4746 = vunpack.c.h.b16 %v4450
    %v4747 = vunpack.c.l.b16 %v4451
    %v4748 = vunpack.c.h.b16 %v4451
    %v4749 = vunpack.c.l.b16 %v4452
    %v4750 = vunpack.c.h.b16 %v4452
    %v4751 = vunpack.c.l.b16 %v4453
    %v4752 = vunpack.c.h.b16 %v4453
    %v4753 = vunpack.c.l.b16 %v4454
    %v4754 = vunpack.c.h.b16 %v4454
    %v4755 = vunpack.c.l.b16 %v4455
    %v4756 = vunpack.c.h.b16 %v4455
    %v4757 = vunpack.c.l.b16 %v4456
    %v4758 = vunpack.c.h.b16 %v4456
    %v4759 = vunpack.c.l.b16 %v4457
    %v4760 = vunpack.c.h.b16 %v4457
    %v4761 = vunpack.c.l.b16 %v4458
    %v4762 = vunpack.c.h.b16 %v4458
    %v4763 = vunpack.c.l.b16 %v4459
    %v4764 = vunpack.c.h.b16 %v4459
    %v4765 = vunpack.c.l.b16 %v4460
    %v4766 = vunpack.c.h.b16 %v4460
    %v4767 = vunpack.c.l.b16 %v4461
    %v4768 = vunpack.c.h.b16 %v4461
    %v4769 = vunpack.c.l.b16 %v4462
    %v4770 = vunpack.c.h.b16 %v4462
    %v4771 = vunpack.c.l.b16 %v4463
    %v4772 = vunpack.c.h.b16 %v4463
    %v4773 = vunpack.c.l.b16 %v4464
    %v4774 = vunpack.c.h.b16 %v4464
    %v4775 = vunpack.c.l.b16 %v4465
    %v4776 = vunpack.c.h.b16 %v4465
    %v4777 = vunpack.c.l.b16 %v4466
    %v4778 = vunpack.c.h.b16 %v4466
    %v4779 = vunpack.c.l.b16 %v4467
    %v4780 = vunpack.c.h.b16 %v4467
    %v4781 = vunpack.c.l.b16 %v4468
    %v4782 = vunpack.c.h.b16 %v4468
    %v4783 = vunpack.c.l.b16 %v4469
    %v4784 = vunpack.c.h.b16 %v4469
    %v4785 = vunpack.c.l.b16 %v4470
    %v4786 = vunpack.c.h.b16 %v4470
    %v4787 = vunpack.c.l.b16 %v4471
    %v4788 = vunpack.c.h.b16 %v4471
    %v4789 = vunpack.c.l.b16 %v4472
    %v4790 = vunpack.c.h.b16 %v4472
    %v4791 = vunpack.c.l.b16 %v4473
    %v4792 = vunpack.c.h.b16 %v4473
    %v4793 = vunpack.c.l.b16 %v4474
    %v4794 = vunpack.c.h.b16 %v4474
    %v4795 = vunpack.c.l.b16 %v4475
    %v4796 = vunpack.c.h.b16 %v4475
    %v4797 = vunpack.c.l.b16 %v4476
    %v4798 = vunpack.c.h.b16 %v4476
    %v4799 = vunpack.c.l.b16 %v4477
    %v4800 = vunpack.c.h.b16 %v4477
    %v4801 = vunpack.c.l.b16 %v4478
    %v4802 = vunpack.c.h.b16 %v4478
    %v4803 = vunpack.c.l.b16 %v4479
    %v4804 = vunpack.c.h.b16 %v4479
    %v4805 = vunpack.c.l.b16 %v4480
    %v4806 = vunpack.c.h.b16 %v4480
    %v4807 = vunpack.c.l.b16 %v4481
    %v4808 = vunpack.c.h.b16 %v4481
    %v4809 = vunpack.c.l.b16 %v4482
    %v4810 = vunpack.c.h.b16 %v4482
    %v4811 = vunpack.c.l.b16 %v4483
    %v4812 = vunpack.c.h.b16 %v4483
    %v4813 = vunpack.c.l.b16 %v4484
    %v4814 = vunpack.c.h.b16 %v4484
    %v4815 = vunpack.c.l.b16 %v4485
    %v4816 = vunpack.c.h.b16 %v4485
    %v4817 = vunpack.c.l.b16 %v4486
    %v4818 = vunpack.c.h.b16 %v4486
    %v4819 = vunpack.c.l.b16 %v4487
    %v4820 = vunpack.c.h.b16 %v4487
    %v4821 = vunpack.c.l.b16 %v4488
    %v4822 = vunpack.c.h.b16 %v4488
    %v4823 = vunpack.c.l.b16 %v4489
    %v4824 = vunpack.c.h.b16 %v4489
    %v4825 = vunpack.c.l.b16 %v4490
    %v4826 = vunpack.c.h.b16 %v4490
    %v4827 = vunpack.c.l.b16 %v4491
    %v4828 = vunpack.c.h.b16 %v4491
    %v4829 = vunpack.c.l.b16 %v4492
    %v4830 = vunpack.c.h.b16 %v4492
    %v4831 = vunpack.c.l.b16 %v4493
    %v4832 = vunpack.c.h.b16 %v4493
    %v4833 = vunpack.c.l.b16 %v4494
    %v4834 = vunpack.c.h.b16 %v4494
    %v4835 = vunpack.c.l.b16 %v4495
    %v4836 = vunpack.c.h.b16 %v4495
    %v4837 = vunpack.c.l.b16 %v4496
    %v4838 = vunpack.c.h.b16 %v4496
    %v4839 = vunpack.c.l.b16 %v4497
    %v4840 = vunpack.c.h.b16 %v4497
    %v4841 = vunpack.c.l.b16 %v4498
    %v4842 = vunpack.c.h.b16 %v4498
    %v4843 = vunpack.c.l.b16 %v4499
    %v4844 = vunpack.c.h.b16 %v4499
    %v4845 = vunpack.c.l.b16 %v4500
    %v4846 = vunpack.c.h.b16 %v4500
    %v4847 = vunpack.c.l.b16 %v4501
    %v4848 = vunpack.c.h.b16 %v4501
    %v4849 = vunpack.c.l.b16 %v4502
    %v4850 = vunpack.c.h.b16 %v4502
    %v4851 = vunpack.c.l.b16 %v4503
    %v4852 = vunpack.c.h.b16 %v4503
    %v4853 = vunpack.c.l.b16 %v4504
    %v4854 = vunpack.c.h.b16 %v4504
    %v4855 = vunpack.c.l.b16 %v4505
    %v4856 = vunpack.c.h.b16 %v4505
    %v4857 = vunpack.c.l.b16 %v4506
    %v4858 = vunpack.c.h.b16 %v4506
    %v4859 = vunpack.c.l.b16 %v4507
    %v4860 = vunpack.c.h.b16 %v4507
    %v4861 = vunpack.c.l.b16 %v4508
    %v4862 = vunpack.c.h.b16 %v4508
    %v4863 = vunpack.c.l.b16 %v4509
    %v4864 = vunpack.c.h.b16 %v4509
    %v4865 = vunpack.c.l.b16 %v4510
    %v4866 = vunpack.c.h.b16 %v4510
    %v4867 = vunpack.c.l.b16 %v4511
    %v4868 = vunpack.c.h.b16 %v4511
    %v4869 = vunpack.c.l.b16 %v4512
    %v4870 = vunpack.c.h.b16 %v4512
    %v4871 = vunpack.c.l.b16 %v4513
    %v4872 = vunpack.c.h.b16 %v4513
    %v4873 = vunpack.c.l.b16 %v4514
    %v4874 = vunpack.c.h.b16 %v4514
    %v4875 = vunpack.c.l.b16 %v4515
    %v4876 = vunpack.c.h.b16 %v4515
    %v4877 = vunpack.c.l.b16 %v4516
    %v4878 = vunpack.c.h.b16 %v4516
    %v4879 = vunpack.c.l.b16 %v4517
    %v4880 = vunpack.c.h.b16 %v4517
    %v4881 = vunpack.c.l.b16 %v4518
    %v4882 = vunpack.c.h.b16 %v4518
    %v4883 = vunpack.c.l.b16 %v4519
    %v4884 = vunpack.c.h.b16 %v4519
    %v4885 = vunpack.c.l.b16 %v4520
    %v4886 = vunpack.c.h.b16 %v4520
    %v4887 = vunpack.c.l.b16 %v4521
    %v4888 = vunpack.c.h.b16 %v4521
    %v4889 = vunpack.c.l.b16 %v4522
    %v4890 = vunpack.c.h.b16 %v4522
    %v4891 = vunpack.c.l.b16 %v4523
    %v4892 = vunpack.c.h.b16 %v4523
    %v4893 = vunpack.c.l.b16 %v4524
    %v4894 = vunpack.c.h.b16 %v4524
    %v4895 = vunpack.c.l.b16 %v4525
    %v4896 = vunpack.c.h.b16 %v4525
    %v4897 = vunpack.c.l.b16 %v4526
    %v4898 = vunpack.c.h.b16 %v4526
    %v4899 = vunpack.c.l.b16 %v4527
    %v4900 = vunpack.c.h.b16 %v4527
    %v4901 = vunpack.c.l.b16 %v4528
    %v4902 = vunpack.c.h.b16 %v4528
    %v4903 = vunpack.c.l.b16 %v4529
    %v4904 = vunpack.c.h.b16 %v4529
    %v4905 = vunpack.c.l.b16 %v4530
    %v4906 = vunpack.c.h.b16 %v4530
    %v4907 = vunpack.c.l.b16 %v4531
    %v4908 = vunpack.c.h.b16 %v4531
    %v4909 = vunpack.c.l.b16 %v4532
    %v4910 = vunpack.c.h.b16 %v4532
    %v4911 = vunpack.c.l.b16 %v4533
    %v4912 = vunpack.c.h.b16 %v4533
    %v4913 = vunpack.c.l.b16 %v4534
    %v4914 = vunpack.c.h.b16 %v4534
    %v4915 = vunpack.c.l.b16 %v4535
    %v4916 = vunpack.c.h.b16 %v4535
    %v4917 = vunpack.c.l.b16 %v4536
    %v4918 = vunpack.c.h.b16 %v4536
    %v4919 = vunpack.c.l.b16 %v4537
    %v4920 = vunpack.c.h.b16 %v4537
    %v4921 = vunpack.c.l.b16 %v4538
    %v4922 = vunpack.c.h.b16 %v4538
    %v4923 = vpack.c.b16 %v4671, %v4667
    %v4924 = vpack.c.b16 %v4672, %v4668
    %v4925 = vpack.c.b16 %v4673, %v4669
    %v4926 = vpack.c.b16 %v4674, %v4670
    %v4927 = vpack.c.b16 %v4679, %v4675
    %v4928 = vpack.c.b16 %v4680, %v4676
    %v4929 = vpack.c.b16 %v4681, %v4677
    %v4930 = vpack.c.b16 %v4682, %v4678
    %v4931 = vpack.c.b16 %v4687, %v4683
    %v4932 = vpack.c.b16 %v4688, %v4684
    %v4933 = vpack.c.b16 %v4689, %v4685
    %v4934 = vpack.c.b16 %v4690, %v4686
    %v4935 = vpack.c.b16 %v4695, %v4691
    %v4936 = vpack.c.b16 %v4696, %v4692
    %v4937 = vpack.c.b16 %v4697, %v4693
    %v4938 = vpack.c.b16 %v4698, %v4694
    %v4939 = vpack.c.b16 %v4703, %v4699
    %v4940 = vpack.c.b16 %v4704, %v4700
    %v4941 = vpack.c.b16 %v4705, %v4701
    %v4942 = vpack.c.b16 %v4706, %v4702
    %v4943 = vpack.c.b16 %v4711, %v4707
    %v4944 = vpack.c.b16 %v4712, %v4708
    %v4945 = vpack.c.b16 %v4713, %v4709
    %v4946 = vpack.c.b16 %v4714, %v4710
    %v4947 = vpack.c.b16 %v4719, %v4715
    %v4948 = vpack.c.b16 %v4720, %v4716
    %v4949 = vpack.c.b16 %v4721, %v4717
    %v4950 = vpack.c.b16 %v4722, %v4718
    %v4951 = vpack.c.b16 %v4727, %v4723
    %v4952 = vpack.c.b16 %v4728, %v4724
    %v4953 = vpack.c.b16 %v4729, %v4725
    %v4954 = vpack.c.b16 %v4730, %v4726
    %v4955 = vpack.c.b16 %v4735, %v4731
    %v4956 = vpack.c.b16 %v4736, %v4732
    %v4957 = vpack.c.b16 %v4737, %v4733
    %v4958 = vpack.c.b16 %v4738, %v4734
    %v4959 = vpack.c.b16 %v4743, %v4739
    %v4960 = vpack.c.b16 %v4744, %v4740
    %v4961 = vpack.c.b16 %v4745, %v4741
    %v4962 = vpack.c.b16 %v4746, %v4742
    %v4963 = vpack.c.b16 %v4751, %v4747
    %v4964 = vpack.c.b16 %v4752, %v4748
    %v4965 = vpack.c.b16 %v4753, %v4749
    %v4966 = vpack.c.b16 %v4754, %v4750
    %v4967 = vpack.c.b16 %v4759, %v4755
    %v4968 = vpack.c.b16 %v4760, %v4756
    %v4969 = vpack.c.b16 %v4761, %v4757
    %v4970 = vpack.c.b16 %v4762, %v4758
    %v4971 = vpack.c.b16 %v4767, %v4763
    %v4972 = vpack.c.b16 %v4768, %v4764
    %v4973 = vpack.c.b16 %v4769, %v4765
    %v4974 = vpack.c.b16 %v4770, %v4766
    %v4975 = vpack.c.b16 %v4775, %v4771
    %v4976 = vpack.c.b16 %v4776, %v4772
    %v4977 = vpack.c.b16 %v4777, %v4773
    %v4978 = vpack.c.b16 %v4778, %v4774
    %v4979 = vpack.c.b16 %v4783, %v4779
    %v4980 = vpack.c.b16 %v4784, %v4780
    %v4981 = vpack.c.b16 %v4785, %v4781
    %v4982 = vpack.c.b16 %v4786, %v4782
    %v4983 = vpack.c.b16 %v4791, %v4787
    %v4984 = vpack.c.b16 %v4792, %v4788
    %v4985 = vpack.c.b16 %v4793, %v4789
    %v4986 = vpack.c.b16 %v4794, %v4790
    %v4987 = vpack.c.b16 %v4799, %v4795
    %v4988 = vpack.c.b16 %v4800, %v4796
    %v4989 = vpack.c.b16 %v4801, %v4797
    %v4990 = vpack.c.b16 %v4802, %v4798
    %v4991 = vpack.c.b16 %v4807, %v4803
    %v4992 = vpack.c.b16 %v4808, %v4804
    %v4993 = vpack.c.b16 %v4809, %v4805
    %v4994 = vpack.c.b16 %v4810, %v4806
    %v4995 = vpack.c.b16 %v4815, %v4811
    %v4996 = vpack.c.b16 %v4816, %v4812
    %v4997 = vpack.c.b16 %v4817, %v4813
    %v4998 = vpack.c.b16 %v4818, %v4814
    %v4999 = vpack.c.b16 %v4823, %v4819
    %v5000 = vpack.c.b16 %v4824, %v4820
    %v5001 = vpack.c.b16 %v4825, %v4821
    %v5002 = vpack.c.b16 %v4826, %v4822
    %v5003 = vpack.c.b16 %v4831, %v4827
    %v5004 = vpack.c.b16 %v4832, %v4828
    %v5005 = vpack.c.b16 %v4833, %v4829
    %v5006 = vpack.c.b16 %v4834, %v4830
    %v5007 = vpack.c.b16 %v4839, %v4835
    %v5008 = vpack.c.b16 %v4840, %v4836
    %v5009 = vpack.c.b16 %v4841, %v4837
    %v5010 = vpack.c.b16 %v4842, %v4838
    %v5011 = vpack.c.b16 %v4847, %v4843
    %v5012 = vpack.c.b16 %v4848, %v4844
    %v5013 = vpack.c.b16 %v4849, %v4845
    %v5014 = vpack.c.b16 %v4850, %v4846
    %v5015 = vpack.c.b16 %v4855, %v4851
    %v5016 = vpack.c.b16 %v4856, %v4852
    %v5017 = vpack.c.b16 %v4857, %v4853
    %v5018 = vpack.c.b16 %v4858, %v4854
    %v5019 = vpack.c.b16 %v4863, %v4859
    %v5020 = vpack.c.b16 %v4864, %v4860
    %v5021 = vpack.c.b16 %v4865, %v4861
    %v5022 = vpack.c.b16 %v4866, %v4862
    %v5023 = vpack.c.b16 %v4871, %v4867
    %v5024 = vpack.c.b16 %v4872, %v4868
    %v5025 = vpack.c.b16 %v4873, %v4869
    %v5026 = vpack.c.b16 %v4874, %v4870
    %v5027 = vpack.c.b16 %v4879, %v4875
    %v5028 = vpack.c.b16 %v4880, %v4876
    %v5029 = vpack.c.b16 %v4881, %v4877
    %v5030 = vpack.c.b16 %v4882, %v4878
    %v5031 = vpack.c.b16 %v4887, %v4883
    %v5032 = vpack.c.b16 %v4888, %v4884
    %v5033 = vpack.c.b16 %v4889, %v4885
    %v5034 = vpack.c.b16 %v4890, %v4886
    %v5035 = vpack.c.b16 %v4895, %v4891
    %v5036 = vpack.c.b16 %v4896, %v4892
    %v5037 = vpack.c.b16 %v4897, %v4893
    %v5038 = vpack.c.b16 %v4898, %v4894
    %v5039 = vpack.c.b16 %v4903, %v4899
    %v5040 = vpack.c.b16 %v4904, %v4900
    %v5041 = vpack.c.b16 %v4905, %v4901
    %v5042 = vpack.c.b16 %v4906, %v4902
    %v5043 = vpack.c.b16 %v4911, %v4907
    %v5044 = vpack.c.b16 %v4912, %v4908
    %v5045 = vpack.c.b16 %v4913, %v4909
    %v5046 = vpack.c.b16 %v4914, %v4910
    %v5047 = vpack.c.b16 %v4919, %v4915
    %v5048 = vpack.c.b16 %v4920, %v4916
    %v5049 = vpack.c.b16 %v4921, %v4917
    %v5050 = vpack.c.b16 %v4922, %v4918
    %5179 = vmatprep.subr.bf16.mxu0 %v4924
    %5180 = vmatpush1.bf16.msra.mxu0 %v4923
    %5181 = vmatprep.subr.bf16.mxu0 %v4928
    %5182 = vmatpush1.bf16.msra.mxu0 %v4927
    %5183 = vmatprep.subr.bf16.mxu0 %v4932
    %5184 = vmatpush1.bf16.msra.mxu0 %v4931
    %5185 = vmatprep.subr.bf16.mxu0 %v4936
    %5186 = vmatpush1.bf16.msra.mxu0 %v4935
    %5187 = vmatprep.subr.bf16.mxu0 %v4940
    %5188 = vmatpush1.bf16.msra.mxu0 %v4939
    %5189 = vmatprep.subr.bf16.mxu0 %v4944
    %5190 = vmatpush1.bf16.msra.mxu0 %v4943
    %5191 = vmatprep.subr.bf16.mxu0 %v4948
    %5192 = vmatpush1.bf16.msra.mxu0 %v4947
    %5193 = vmatprep.subr.bf16.mxu0 %v4952
    %5194 = vmatpush1.bf16.msra.mxu0 %v4951
    %5195 = vmatprep.subr.bf16.mxu0 %v4956
    %5196 = vmatpush1.bf16.msra.mxu0 %v4955
    %5197 = vmatprep.subr.bf16.mxu0 %v4960
    %5198 = vmatpush1.bf16.msra.mxu0 %v4959
    %5199 = vmatprep.subr.bf16.mxu0 %v4964
    %5200 = vmatpush1.bf16.msra.mxu0 %v4963
    %5201 = vmatprep.subr.bf16.mxu0 %v4968
    %5202 = vmatpush1.bf16.msra.mxu0 %v4967
    %5203 = vmatprep.subr.bf16.mxu0 %v4972
    %5204 = vmatpush1.bf16.msra.mxu0 %v4971
    %5205 = vmatprep.subr.bf16.mxu0 %v4976
    %5206 = vmatpush1.bf16.msra.mxu0 %v4975
    %5207 = vmatprep.subr.bf16.mxu0 %v4980
    %5208 = vmatpush1.bf16.msra.mxu0 %v4979
    %5209 = vmatprep.subr.bf16.mxu0 %v4984
    %5210 = vmatpush1.bf16.msra.mxu0 %v4983
    %5211 = vmatprep.mubr.bf16.mxu0 %v4408
    %5212 = vmatmul.mubr.bf16.gmra.mrb[0].mxu0 %v4407
    %v5213 = vpop.f32.mrb[0].mxu0
    %v5214 = vadd.f32 0.0, %v5213
    %v5215 = vpop.f32.mrb[0].mxu0
    %v5216 = vadd.f32 0.0, %v5215
    %v5217 = vpop.f32.mrb[0].mxu0
    %v5218 = vpop.f32.mrb[0].mxu0
    %5219 = vdwg.mxu0
    %5220 = vmatprep.subr.bf16.mxu0 %v4988
    %5221 = vmatpush1.bf16.msra.mxu0 %v4987
    %5222 = vmatprep.subr.bf16.mxu0 %v4992
    %5223 = vmatpush1.bf16.msra.mxu0 %v4991
    %5224 = vmatprep.subr.bf16.mxu0 %v4996
    %5225 = vmatpush1.bf16.msra.mxu0 %v4995
    %5226 = vmatprep.subr.bf16.mxu0 %v5000
    %5227 = vmatpush1.bf16.msra.mxu0 %v4999
    %5228 = vmatprep.subr.bf16.mxu0 %v5004
    %5229 = vmatpush1.bf16.msra.mxu0 %v5003
    %5230 = vmatprep.subr.bf16.mxu0 %v5008
    %5231 = vmatpush1.bf16.msra.mxu0 %v5007
    %5232 = vmatprep.subr.bf16.mxu0 %v5012
    %5233 = vmatpush1.bf16.msra.mxu0 %v5011
    %5234 = vmatprep.subr.bf16.mxu0 %v5016
    %5235 = vmatpush1.bf16.msra.mxu0 %v5015
    %5236 = vmatprep.subr.bf16.mxu0 %v5020
    %5237 = vmatpush1.bf16.msra.mxu0 %v5019
    %5238 = vmatprep.subr.bf16.mxu0 %v5024
    %5239 = vmatpush1.bf16.msra.mxu0 %v5023
    %5240 = vmatprep.subr.bf16.mxu0 %v5028
    %5241 = vmatpush1.bf16.msra.mxu0 %v5027
    %5242 = vmatprep.subr.bf16.mxu0 %v5032
    %5243 = vmatpush1.bf16.msra.mxu0 %v5031
    %5244 = vmatprep.subr.bf16.mxu0 %v5036
    %5245 = vmatpush1.bf16.msra.mxu0 %v5035
    %5246 = vmatprep.subr.bf16.mxu0 %v5040
    %5247 = vmatpush1.bf16.msra.mxu0 %v5039
    %5248 = vmatprep.subr.bf16.mxu0 %v5044
    %5249 = vmatpush1.bf16.msra.mxu0 %v5043
    %5250 = vmatprep.subr.bf16.mxu0 %v5048
    %5251 = vmatpush1.bf16.msra.mxu0 %v5047
    %5252 = vmatprep.mubr.bf16.mxu0 %v4410
    %5253 = vmatmul.mubr.bf16.gmra.mrb[0].mxu0 %v4409
    %v5254 = vpop.f32.mrb[0].mxu0
    %v5255 = vadd.f32 %v5214, %v5254
    %v5256 = vpop.f32.mrb[0].mxu0
    %v5257 = vadd.f32 %v5216, %v5256
    %v5258 = vpop.f32.mrb[0].mxu0
    %v5259 = vpop.f32.mrb[0].mxu0
    %5260 = vdwg.mxu0
    %5261 = vmatprep.subr.bf16.mxu0 %v4926
    %5262 = vmatpush1.bf16.msra.mxu0 %v4925
    %5263 = vmatprep.subr.bf16.mxu0 %v4930
    %5264 = vmatpush1.bf16.msra.mxu0 %v4929
    %5265 = vmatprep.subr.bf16.mxu0 %v4934
    %5266 = vmatpush1.bf16.msra.mxu0 %v4933
    %5267 = vmatprep.subr.bf16.mxu0 %v4938
    %5268 = vmatpush1.bf16.msra.mxu0 %v4937
    %5269 = vmatprep.subr.bf16.mxu0 %v4942
    %5270 = vmatpush1.bf16.msra.mxu0 %v4941
    %5271 = vmatprep.subr.bf16.mxu0 %v4946
    %5272 = vmatpush1.bf16.msra.mxu0 %v4945
    %5273 = vmatprep.subr.bf16.mxu0 %v4950
    %5274 = vmatpush1.bf16.msra.mxu0 %v4949
    %5275 = vmatprep.subr.bf16.mxu0 %v4954
    %5276 = vmatpush1.bf16.msra.mxu0 %v4953
    %5277 = vmatprep.subr.bf16.mxu0 %v4958
    %5278 = vmatpush1.bf16.msra.mxu0 %v4957
    %5279 = vmatprep.subr.bf16.mxu0 %v4962
    %5280 = vmatpush1.bf16.msra.mxu0 %v4961
    %5281 = vmatprep.subr.bf16.mxu0 %v4966
    %5282 = vmatpush1.bf16.msra.mxu0 %v4965
    %5283 = vmatprep.subr.bf16.mxu0 %v4970
    %5284 = vmatpush1.bf16.msra.mxu0 %v4969
    %5285 = vmatprep.subr.bf16.mxu0 %v4974
    %5286 = vmatpush1.bf16.msra.mxu0 %v4973
    %5287 = vmatprep.subr.bf16.mxu0 %v4978
    %5288 = vmatpush1.bf16.msra.mxu0 %v4977
    %5289 = vmatprep.subr.bf16.mxu0 %v4982
    %5290 = vmatpush1.bf16.msra.mxu0 %v4981
    %5291 = vmatprep.subr.bf16.mxu0 %v4986
    %5292 = vmatpush1.bf16.msra.mxu0 %v4985
    %5293 = vmatprep.mubr.bf16.mxu0 %v4408
    %5294 = vmatmul.mubr.bf16.gmra.mrb[0].mxu0 %v4407
    %v5295 = vpop.f32.mrb[0].mxu0
    %v5296 = vadd.f32 0.0, %v5295
    %v5297 = vpop.f32.mrb[0].mxu0
    %v5298 = vadd.f32 0.0, %v5297
    %v5299 = vpop.f32.mrb[0].mxu0
    %v5300 = vpop.f32.mrb[0].mxu0
    %5301 = vdwg.mxu0
    %5302 = vmatprep.subr.bf16.mxu0 %v4990
    %5303 = vmatpush1.bf16.msra.mxu0 %v4989
    %5304 = vmatprep.subr.bf16.mxu0 %v4994
    %5305 = vmatpush1.bf16.msra.mxu0 %v4993
    %5306 = vmatprep.subr.bf16.mxu0 %v4998
    %5307 = vmatpush1.bf16.msra.mxu0 %v4997
    %5308 = vmatprep.subr.bf16.mxu0 %v5002
    %5309 = vmatpush1.bf16.msra.mxu0 %v5001
    %5310 = vmatprep.subr.bf16.mxu0 %v5006
    %5311 = vmatpush1.bf16.msra.mxu0 %v5005
    %5312 = vmatprep.subr.bf16.mxu0 %v5010
    %5313 = vmatpush1.bf16.msra.mxu0 %v5009
    %5314 = vmatprep.subr.bf16.mxu0 %v5014
    %5315 = vmatpush1.bf16.msra.mxu0 %v5013
    %5316 = vmatprep.subr.bf16.mxu0 %v5018
    %5317 = vmatpush1.bf16.msra.mxu0 %v5017
    %5318 = vmatprep.subr.bf16.mxu0 %v5022
    %5319 = vmatpush1.bf16.msra.mxu0 %v5021
    %5320 = vmatprep.subr.bf16.mxu0 %v5026
    %5321 = vmatpush1.bf16.msra.mxu0 %v5025
    %5322 = vmatprep.subr.bf16.mxu0 %v5030
    %5323 = vmatpush1.bf16.msra.mxu0 %v5029
    %5324 = vmatprep.subr.bf16.mxu0 %v5034
    %5325 = vmatpush1.bf16.msra.mxu0 %v5033
    %5326 = vmatprep.subr.bf16.mxu0 %v5038
    %5327 = vmatpush1.bf16.msra.mxu0 %v5037
    %5328 = vmatprep.subr.bf16.mxu0 %v5042
    %5329 = vmatpush1.bf16.msra.mxu0 %v5041
    %5330 = vmatprep.subr.bf16.mxu0 %v5046
    %5331 = vmatpush1.bf16.msra.mxu0 %v5045
    %5332 = vmatprep.subr.bf16.mxu0 %v5050
    %5333 = vmatpush1.bf16.msra.mxu0 %v5049
    %5334 = vmatprep.mubr.bf16.mxu0 %v4410
    %5335 = vmatmul.mubr.bf16.gmra.mrb[0].mxu0 %v4409
    %v5336 = vpop.f32.mrb[0].mxu0
    %v5337 = vadd.f32 %v5296, %v5336
    %v5338 = vpop.f32.mrb[0].mxu0
    %v5339 = vadd.f32 %v5298, %v5338
    %v5340 = vpop.f32.mrb[0].mxu0
    %v5341 = vpop.f32.mrb[0].mxu0
    %5342 = vdwg.mxu0
    %v5343 = vsel %vm2513, %v5255, 0.0
    %v5344 = vrot.slane %v5343, 4
    %v5345 = vadd.f32 %v5343, %v5344
    %v5346 = vrot.slane %v5345, 2
    %v5347 = vadd.f32 %v5345, %v5346
    %v5348 = vrot.slane %v5347, 1
    %v5349 = vadd.f32 %v5347, %v5348
    %v5350 = vsel %vm2513, %v5257, 0.0
    %v5351 = vrot.slane %v5350, 4
    %v5352 = vadd.f32 %v5350, %v5351
    %v5353 = vrot.slane %v5352, 2
    %v5354 = vadd.f32 %v5352, %v5353
    %v5355 = vrot.slane %v5354, 1
    %v5356 = vadd.f32 %v5354, %v5355
    %v5357 = vsel %vm2513, %v5337, 0.0
    %v5358 = vrot.slane %v5357, 4
    %v5359 = vadd.f32 %v5357, %v5358
    %v5360 = vrot.slane %v5359, 2
    %v5361 = vadd.f32 %v5359, %v5360
    %v5362 = vrot.slane %v5361, 1
    %v5363 = vadd.f32 %v5361, %v5362
    %v5364 = vsel %vm2513, %v5339, 0.0
    %v5365 = vrot.slane %v5364, 4
    %v5366 = vadd.f32 %v5364, %v5365
    %v5367 = vrot.slane %v5366, 2
    %v5368 = vadd.f32 %v5366, %v5367
    %v5369 = vrot.slane %v5368, 1
    %v5370 = vadd.f32 %v5368, %v5369
    %v5371 = vmul.f32 %v5255, %v5255
    %v5372 = vmul.f32 %v5257, %v5257
    %v5373 = vmul.f32 %v5337, %v5337
    %v5374 = vmul.f32 %v5339, %v5339
    %v5375 = vsel %vm2513, %v5371, 0.0
    %v5376 = vrot.slane %v5375, 4
    %v5377 = vadd.f32 %v5375, %v5376
    %v5378 = vrot.slane %v5377, 2
    %v5379 = vadd.f32 %v5377, %v5378
    %v5380 = vrot.slane %v5379, 1
    %v5381 = vadd.f32 %v5379, %v5380
    %v5382 = vsel %vm2513, %v5372, 0.0
    %v5383 = vrot.slane %v5382, 4
    %v5384 = vadd.f32 %v5382, %v5383
    %v5385 = vrot.slane %v5384, 2
    %v5386 = vadd.f32 %v5384, %v5385
    %v5387 = vrot.slane %v5386, 1
    %v5388 = vadd.f32 %v5386, %v5387
    %v5389 = vsel %vm2513, %v5373, 0.0
    %v5390 = vrot.slane %v5389, 4
    %v5391 = vadd.f32 %v5389, %v5390
    %v5392 = vrot.slane %v5391, 2
    %v5393 = vadd.f32 %v5391, %v5392
    %v5394 = vrot.slane %v5393, 1
    %v5395 = vadd.f32 %v5393, %v5394
    %v5396 = vsel %vm2513, %v5374, 0.0
    %v5397 = vrot.slane %v5396, 4
    %v5398 = vadd.f32 %v5396, %v5397
    %v5399 = vrot.slane %v5398, 2
    %v5400 = vadd.f32 %v5398, %v5399
    %v5401 = vrot.slane %v5400, 1
    %v5402 = vadd.f32 %v5400, %v5401
    %v5403 = vsel %vm2574, %v5349, %v5381
    %v5404 = vsel %vm2574, %v5356, %v5388
    %v5405 = vsel %vm2574, %v5363, %v5395
    %v5406 = vsel %vm2574, %v5370, %v5402
    %v5407 = vmul.f32 %v5403, 0.00390625
    %v5408 = vmul.f32 %v5404, 0.00390625
    %v5409 = vmul.f32 %v5405, 0.00390625
    %v5410 = vmul.f32 %v5406, 0.00390625
    %5411 = vmatprep.subr.mxu0 0.0
    %5412 = vmatpush1.msra.mxu0 %v93
    %5413 = vmatprep.subr.mxu0 0.0
    %5414 = vmatpush1.msra.mxu0 %v94
    %5415 = vmatprep.subr.mxu0 0.0
    %5416 = vmatpush1.msra.mxu0 %v95
    %5417 = vmatprep.subr.mxu0 0.0
    %5418 = vmatpush1.msra.mxu0 %v96
    %5419 = vmatprep.subr.mxu0 0.0
    %5420 = vmatpush1.msra.mxu0 %v97
    %5421 = vmatprep.subr.mxu0 0.0
    %5422 = vmatpush1.msra.mxu0 %v98
    %5423 = vmatprep.subr.mxu0 0.0
    %5424 = vmatpush1.msra.mxu0 %v99
    %5425 = vmatprep.subr.mxu0 0.0
    %5426 = vmatpush1.msra.mxu0 %v100
    %5427 = vmatprep.subr.mxu0 0.0
    %5428 = vmatpush1.msra.mxu0 %v101
    %5429 = vmatprep.subr.mxu0 0.0
    %5430 = vmatpush1.msra.mxu0 %v102
    %5431 = vmatprep.subr.mxu0 0.0
    %5432 = vmatpush1.msra.mxu0 %v103
    %5433 = vmatprep.subr.mxu0 0.0
    %5434 = vmatpush1.msra.mxu0 %v104
    %5435 = vmatprep.subr.mxu0 0.0
    %5436 = vmatpush1.msra.mxu0 %v105
    %5437 = vmatprep.subr.mxu0 0.0
    %5438 = vmatpush1.msra.mxu0 %v106
    %5439 = vmatprep.subr.mxu0 0.0
    %5440 = vmatpush1.msra.mxu0 %v107
    %5441 = vmatprep.subr.mxu0 0.0
    %5442 = vmatpush1.msra.mxu0 %v108
    %5443 = vmatprep.subr.mxu0 0.0
    %5444 = vmatpush1.msra.mxu0 %v109
    %5445 = vmatprep.subr.mxu0 0.0
    %5446 = vmatpush1.msra.mxu0 %v110
    %5447 = vmatprep.subr.mxu0 0.0
    %5448 = vmatpush1.msra.mxu0 %v111
    %5449 = vmatprep.subr.mxu0 0.0
    %5450 = vmatpush1.msra.mxu0 %v112
    %5451 = vmatprep.subr.mxu0 0.0
    %5452 = vmatpush1.msra.mxu0 %v113
    %5453 = vmatprep.subr.mxu0 0.0
    %5454 = vmatpush1.msra.mxu0 %v114
    %5455 = vmatprep.subr.mxu0 0.0
    %5456 = vmatpush1.msra.mxu0 %v115
    %5457 = vmatprep.subr.mxu0 0.0
    %5458 = vmatpush1.msra.mxu0 %v116
    %5459 = vmatprep.subr.mxu0 0.0
    %5460 = vmatpush1.msra.mxu0 %v117
    %5461 = vmatprep.subr.mxu0 0.0
    %5462 = vmatpush1.msra.mxu0 %v118
    %5463 = vmatprep.subr.mxu0 0.0
    %5464 = vmatpush1.msra.mxu0 %v119
    %5465 = vmatprep.subr.mxu0 0.0
    %5466 = vmatpush1.msra.mxu0 %v120
    %5467 = vmatprep.subr.mxu0 0.0
    %5468 = vmatpush1.msra.mxu0 %v121
    %5469 = vmatprep.subr.mxu0 0.0
    %5470 = vmatpush1.msra.mxu0 %v122
    %5471 = vmatprep.subr.mxu0 0.0
    %5472 = vmatpush1.msra.mxu0 %v123
    %5473 = vmatprep.subr.mxu0 0.0
    %5474 = vmatpush1.msra.mxu0 %v124
    %5475 = vmatprep.mubr.f32.mxu0 %v5408
    %5476 = vmatmul.mubr.f32.gmra.mrb[0].mxu0 %v5407
    %v5477 = vpop.f32.mrb[0].mxu0
    %v5478 = vadd.f32 0.0, %v5477
    %v5479 = vpop.f32.mrb[0].mxu0
    %5480 = vdwg.mxu0
    %5481 = vmatprep.subr.mxu0 0.0
    %5482 = vmatpush1.msra.mxu0 %v125
    %5483 = vmatprep.subr.mxu0 0.0
    %5484 = vmatpush1.msra.mxu0 %v126
    %5485 = vmatprep.subr.mxu0 0.0
    %5486 = vmatpush1.msra.mxu0 %v127
    %5487 = vmatprep.subr.mxu0 0.0
    %5488 = vmatpush1.msra.mxu0 %v128
    %5489 = vmatprep.subr.mxu0 0.0
    %5490 = vmatpush1.msra.mxu0 %v129
    %5491 = vmatprep.subr.mxu0 0.0
    %5492 = vmatpush1.msra.mxu0 %v130
    %5493 = vmatprep.subr.mxu0 0.0
    %5494 = vmatpush1.msra.mxu0 %v131
    %5495 = vmatprep.subr.mxu0 0.0
    %5496 = vmatpush1.msra.mxu0 %v132
    %5497 = vmatprep.subr.mxu0 0.0
    %5498 = vmatpush1.msra.mxu0 %v133
    %5499 = vmatprep.subr.mxu0 0.0
    %5500 = vmatpush1.msra.mxu0 %v134
    %5501 = vmatprep.subr.mxu0 0.0
    %5502 = vmatpush1.msra.mxu0 %v135
    %5503 = vmatprep.subr.mxu0 0.0
    %5504 = vmatpush1.msra.mxu0 %v136
    %5505 = vmatprep.subr.mxu0 0.0
    %5506 = vmatpush1.msra.mxu0 %v137
    %5507 = vmatprep.subr.mxu0 0.0
    %5508 = vmatpush1.msra.mxu0 %v138
    %5509 = vmatprep.subr.mxu0 0.0
    %5510 = vmatpush1.msra.mxu0 %v139
    %5511 = vmatprep.subr.mxu0 0.0
    %5512 = vmatpush1.msra.mxu0 %v140
    %5513 = vmatprep.subr.mxu0 0.0
    %5514 = vmatpush1.msra.mxu0 %v141
    %5515 = vmatprep.subr.mxu0 0.0
    %5516 = vmatpush1.msra.mxu0 %v142
    %5517 = vmatprep.subr.mxu0 0.0
    %5518 = vmatpush1.msra.mxu0 %v143
    %5519 = vmatprep.subr.mxu0 0.0
    %5520 = vmatpush1.msra.mxu0 %v144
    %5521 = vmatprep.subr.mxu0 0.0
    %5522 = vmatpush1.msra.mxu0 %v145
    %5523 = vmatprep.subr.mxu0 0.0
    %5524 = vmatpush1.msra.mxu0 %v146
    %5525 = vmatprep.subr.mxu0 0.0
    %5526 = vmatpush1.msra.mxu0 %v147
    %5527 = vmatprep.subr.mxu0 0.0
    %5528 = vmatpush1.msra.mxu0 %v148
    %5529 = vmatprep.subr.mxu0 0.0
    %5530 = vmatpush1.msra.mxu0 %v149
    %5531 = vmatprep.subr.mxu0 0.0
    %5532 = vmatpush1.msra.mxu0 %v150
    %5533 = vmatprep.subr.mxu0 0.0
    %5534 = vmatpush1.msra.mxu0 %v151
    %5535 = vmatprep.subr.mxu0 0.0
    %5536 = vmatpush1.msra.mxu0 %v152
    %5537 = vmatprep.subr.mxu0 0.0
    %5538 = vmatpush1.msra.mxu0 %v153
    %5539 = vmatprep.subr.mxu0 0.0
    %5540 = vmatpush1.msra.mxu0 %v154
    %5541 = vmatprep.subr.mxu0 0.0
    %5542 = vmatpush1.msra.mxu0 %v155
    %5543 = vmatprep.subr.mxu0 0.0
    %5544 = vmatpush1.msra.mxu0 %v156
    %5545 = vmatprep.mubr.f32.mxu0 %v5410
    %5546 = vmatmul.mubr.f32.gmra.mrb[0].mxu0 %v5409
    %v5547 = vpop.f32.mrb[0].mxu0
    %v5548 = vadd.f32 %v5478, %v5547
    %v5549 = vpop.f32.mrb[0].mxu0
    %5550 = vdwg.mxu0
    %v5552 = vsel %vm2727, %v5548, 0
    %5554 = vmatprep.subr.mxu0 %v2734
    %5555 = vmatpush1.msra.mxu0 %v2732
    %5556 = vmatprep.subr.mxu0 0.0
    %5557 = vmatpush1.msra.mxu0 0.0
    %5558 = vmatprep.subr.mxu0 0.0
    %5559 = vmatpush1.msra.mxu0 0.0
    %5560 = vmatprep.subr.mxu0 0.0
    %5561 = vmatpush1.msra.mxu0 0.0
    %5562 = vmatprep.subr.mxu0 0.0
    %5563 = vmatpush1.msra.mxu0 0.0
    %5564 = vmatprep.subr.mxu0 0.0
    %5565 = vmatpush1.msra.mxu0 0.0
    %5566 = vmatprep.subr.mxu0 0.0
    %5567 = vmatpush1.msra.mxu0 0.0
    %5568 = vmatprep.subr.mxu0 0.0
    %5569 = vmatpush1.msra.mxu0 0.0
    %5570 = vmatprep.subr.mxu0 0.0
    %5571 = vmatpush1.msra.mxu0 0.0
    %5572 = vmatprep.subr.mxu0 0.0
    %5573 = vmatpush1.msra.mxu0 0.0
    %5574 = vmatprep.subr.mxu0 0.0
    %5575 = vmatpush1.msra.mxu0 0.0
    %5576 = vmatprep.subr.mxu0 0.0
    %5577 = vmatpush1.msra.mxu0 0.0
    %5578 = vmatprep.subr.mxu0 0.0
    %5579 = vmatpush1.msra.mxu0 0.0
    %5580 = vmatprep.subr.mxu0 0.0
    %5581 = vmatpush1.msra.mxu0 0.0
    %5582 = vmatprep.subr.mxu0 0.0
    %5583 = vmatpush1.msra.mxu0 0.0
    %5584 = vmatprep.subr.mxu0 0.0
    %5585 = vmatpush1.msra.mxu0 0.0
    %5586 = vmatprep.subr.mxu0 0.0
    %5587 = vmatpush1.msra.mxu0 0.0
    %5588 = vmatprep.subr.mxu0 0.0
    %5589 = vmatpush1.msra.mxu0 0.0
    %5590 = vmatprep.subr.mxu0 0.0
    %5591 = vmatpush1.msra.mxu0 0.0
    %5592 = vmatprep.subr.mxu0 0.0
    %5593 = vmatpush1.msra.mxu0 0.0
    %5594 = vmatprep.subr.mxu0 0.0
    %5595 = vmatpush1.msra.mxu0 0.0
    %5596 = vmatprep.subr.mxu0 0.0
    %5597 = vmatpush1.msra.mxu0 0.0
    %5598 = vmatprep.subr.mxu0 0.0
    %5599 = vmatpush1.msra.mxu0 0.0
    %5600 = vmatprep.subr.mxu0 0.0
    %5601 = vmatpush1.msra.mxu0 0.0
    %5602 = vmatprep.subr.mxu0 0.0
    %5603 = vmatpush1.msra.mxu0 0.0
    %5604 = vmatprep.subr.mxu0 0.0
    %5605 = vmatpush1.msra.mxu0 0.0
    %5606 = vmatprep.subr.mxu0 0.0
    %5607 = vmatpush1.msra.mxu0 0.0
    %5608 = vmatprep.subr.mxu0 0.0
    %5609 = vmatpush1.msra.mxu0 0.0
    %5610 = vmatprep.subr.mxu0 0.0
    %5611 = vmatpush1.msra.mxu0 0.0
    %5612 = vmatprep.subr.mxu0 0.0
    %5613 = vmatpush1.msra.mxu0 0.0
    %5614 = vmatprep.subr.mxu0 0.0
    %5615 = vmatpush1.msra.mxu0 0.0
    %5616 = vmatprep.subr.mxu0 0.0
    %5617 = vmatpush1.msra.mxu0 0.0
    %5618 = vmatprep.mubr.f32.mxu0 0.0
    %5619 = vmatmul.mubr.f32.gmra.mrb[0].mxu0 %v5552
    %v5620 = vpop.f32.mrb[0].mxu0
    %v5621 = vadd.f32 0.0, %v5620
    %v5622 = vpop.f32.mrb[0].mxu0
    %v5623 = vadd.f32 0.0, %v5622
    %5624 = vdwg.mxu0
    %5625 = vmatprep.subr.mxu0 %v2738
    %5626 = vmatpush1.msra.mxu0 %v2736
    %5627 = vmatprep.subr.mxu0 0.0
    %5628 = vmatpush1.msra.mxu0 0.0
    %5629 = vmatprep.subr.mxu0 0.0
    %5630 = vmatpush1.msra.mxu0 0.0
    %5631 = vmatprep.subr.mxu0 0.0
    %5632 = vmatpush1.msra.mxu0 0.0
    %5633 = vmatprep.subr.mxu0 0.0
    %5634 = vmatpush1.msra.mxu0 0.0
    %5635 = vmatprep.subr.mxu0 0.0
    %5636 = vmatpush1.msra.mxu0 0.0
    %5637 = vmatprep.subr.mxu0 0.0
    %5638 = vmatpush1.msra.mxu0 0.0
    %5639 = vmatprep.subr.mxu0 0.0
    %5640 = vmatpush1.msra.mxu0 0.0
    %5641 = vmatprep.subr.mxu0 0.0
    %5642 = vmatpush1.msra.mxu0 0.0
    %5643 = vmatprep.subr.mxu0 0.0
    %5644 = vmatpush1.msra.mxu0 0.0
    %5645 = vmatprep.subr.mxu0 0.0
    %5646 = vmatpush1.msra.mxu0 0.0
    %5647 = vmatprep.subr.mxu0 0.0
    %5648 = vmatpush1.msra.mxu0 0.0
    %5649 = vmatprep.subr.mxu0 0.0
    %5650 = vmatpush1.msra.mxu0 0.0
    %5651 = vmatprep.subr.mxu0 0.0
    %5652 = vmatpush1.msra.mxu0 0.0
    %5653 = vmatprep.subr.mxu0 0.0
    %5654 = vmatpush1.msra.mxu0 0.0
    %5655 = vmatprep.subr.mxu0 0.0
    %5656 = vmatpush1.msra.mxu0 0.0
    %5657 = vmatprep.subr.mxu0 0.0
    %5658 = vmatpush1.msra.mxu0 0.0
    %5659 = vmatprep.subr.mxu0 0.0
    %5660 = vmatpush1.msra.mxu0 0.0
    %5661 = vmatprep.subr.mxu0 0.0
    %5662 = vmatpush1.msra.mxu0 0.0
    %5663 = vmatprep.subr.mxu0 0.0
    %5664 = vmatpush1.msra.mxu0 0.0
    %5665 = vmatprep.subr.mxu0 0.0
    %5666 = vmatpush1.msra.mxu0 0.0
    %5667 = vmatprep.subr.mxu0 0.0
    %5668 = vmatpush1.msra.mxu0 0.0
    %5669 = vmatprep.subr.mxu0 0.0
    %5670 = vmatpush1.msra.mxu0 0.0
    %5671 = vmatprep.subr.mxu0 0.0
    %5672 = vmatpush1.msra.mxu0 0.0
    %5673 = vmatprep.subr.mxu0 0.0
    %5674 = vmatpush1.msra.mxu0 0.0
    %5675 = vmatprep.subr.mxu0 0.0
    %5676 = vmatpush1.msra.mxu0 0.0
    %5677 = vmatprep.subr.mxu0 0.0
    %5678 = vmatpush1.msra.mxu0 0.0
    %5679 = vmatprep.subr.mxu0 0.0
    %5680 = vmatpush1.msra.mxu0 0.0
    %5681 = vmatprep.subr.mxu0 0.0
    %5682 = vmatpush1.msra.mxu0 0.0
    %5683 = vmatprep.subr.mxu0 0.0
    %5684 = vmatpush1.msra.mxu0 0.0
    %5685 = vmatprep.subr.mxu0 0.0
    %5686 = vmatpush1.msra.mxu0 0.0
    %5687 = vmatprep.subr.mxu0 0.0
    %5688 = vmatpush1.msra.mxu0 0.0
    %5689 = vmatprep.mubr.f32.mxu0 0.0
    %5690 = vmatmul.mubr.f32.gmra.mrb[0].mxu0 %v5552
    %v5691 = vpop.f32.mrb[0].mxu0
    %v5692 = vadd.f32 0.0, %v5691
    %v5693 = vpop.f32.mrb[0].mxu0
    %v5694 = vadd.f32 0.0, %v5693
    %5695 = vdwg.mxu0
    %v5696 = vmul.f32 %v5621, %v5621
    %v5697 = vmul.f32 %v5623, %v5623
    %v5698 = vmul.f32 %v5692, %v5692
    %v5699 = vmul.f32 %v5694, %v5694
    %v5704 = vrot.slane %v5696, 7
    %v5705 = vrot.slane %v5697, 7
    %v5706 = vrot.slane %v5698, 7
    %v5707 = vrot.slane %v5699, 7
    %v5712 = vsub.f32 %v5621, %v5704
    %v5713 = vsub.f32 %v5623, %v5705
    %v5714 = vsub.f32 %v5692, %v5706
    %v5715 = vsub.f32 %v5694, %v5707
    %v5716 = vmax.f32 %v5712, 0.0
    %v5717 = vmax.f32 %v5713, 0.0
    %v5718 = vmax.f32 %v5714, 0.0
    %v5719 = vmax.f32 %v5715, 0.0
    %v5720 = vadd.f32 %v5716, 1e-05
    %v5721 = vadd.f32 %v5717, 1e-05
    %v5722 = vadd.f32 %v5718, 1e-05
    %v5723 = vadd.f32 %v5719, 1e-05
    %v5724 = vrsqrt.pop %v5720
    %v5725 = vrsqrt.pop %v5721
    %v5726 = vrsqrt.pop %v5722
    %v5727 = vrsqrt.pop %v5723
    %v5732 = vrot.slane %v5724, 5
    %v5733 = vrot.slane %v5725, 5
    %v5734 = vrot.slane %v5726, 5
    %v5735 = vrot.slane %v5727, 5
    %v5740 = vmul.f32 %v159, %v5732
    %v5741 = vmul.f32 %v160, %v5733
    %v5742 = vmul.f32 %v161, %v5734
    %v5743 = vmul.f32 %v162, %v5735
    %v5748 = vrot.slane %v5740, 4
    %v5749 = vrot.slane %v5741, 4
    %v5750 = vrot.slane %v5742, 4
    %v5751 = vrot.slane %v5743, 4
    %v5756 = vmul.f32 %v5621, %v5748
    %v5757 = vmul.f32 %v5623, %v5749
    %v5758 = vmul.f32 %v5692, %v5750
    %v5759 = vmul.f32 %v5694, %v5751
    %v5764 = vrot.slane %v5756, 3
    %v5765 = vrot.slane %v5757, 3
    %v5766 = vrot.slane %v5758, 3
    %v5767 = vrot.slane %v5759, 3
    %v5772 = vsub.f32 %v159, %v5764
    %v5773 = vsub.f32 %v160, %v5765
    %v5774 = vsub.f32 %v161, %v5766
    %v5775 = vsub.f32 %v162, %v5767
    %v5776 = vlaneseq
    %v5777 = vshrl.u32 %v5776, 7
    %v5778 = vsub.s32 4, %v5777
    %v5779 = vrot.slane %v5740, %v5778
    %v5780 = vlaneseq
    %v5781 = vshrl.u32 %v5780, 7
    %v5782 = vsub.s32 4, %v5781
    %v5783 = vrot.slane %v5741, %v5782
    %v5784 = vlaneseq
    %v5785 = vshrl.u32 %v5784, 7
    %v5786 = vsub.s32 4, %v5785
    %v5787 = vrot.slane %v5742, %v5786
    %v5788 = vlaneseq
    %v5789 = vshrl.u32 %v5788, 7
    %v5790 = vsub.s32 4, %v5789
    %v5791 = vrot.slane %v5743, %v5790
    %v5792 = vmul.f32 %v5255, %v5779
    %v5793 = vmul.f32 %v5257, %v5783
    %v5794 = vmul.f32 %v5337, %v5787
    %v5795 = vmul.f32 %v5339, %v5791
    %v5796 = vlaneseq
    %v5797 = vshrl.u32 %v5796, 7
    %v5798 = vsub.s32 5, %v5797
    %v5799 = vrot.slane %v5772, %v5798
    %v5800 = vlaneseq
    %v5801 = vshrl.u32 %v5800, 7
    %v5802 = vsub.s32 5, %v5801
    %v5803 = vrot.slane %v5773, %v5802
    %v5804 = vlaneseq
    %v5805 = vshrl.u32 %v5804, 7
    %v5806 = vsub.s32 5, %v5805
    %v5807 = vrot.slane %v5774, %v5806
    %v5808 = vlaneseq
    %v5809 = vshrl.u32 %v5808, 7
    %v5810 = vsub.s32 5, %v5809
    %v5811 = vrot.slane %v5775, %v5810
    %v5812 = vadd.f32 %v5792, %v5799
    %v5813 = vadd.f32 %v5793, %v5803
    %v5814 = vadd.f32 %v5794, %v5807
    %v5815 = vadd.f32 %v5795, %v5811
    %v5816 = vmax.f32 %v5812, 0.0
    %v5817 = vmax.f32 %v5813, 0.0
    %v5818 = vmax.f32 %v5814, 0.0
    %v5819 = vmax.f32 %v5815, 0.0
    %v5820 = vadd.f32 %v5816, %v2990
    %v5821 = vadd.f32 %v5817, %v2991
    %v5822 = vadd.f32 %v5818, %v2992
    %v5823 = vadd.f32 %v5819, %v2993
    %v5824 = vpack.c.bf16 %v5820, %v5820
    %v5825 = vpack.c.bf16 %v5821, %v5821
    %v5826 = vpack.c.bf16 %v5822, %v5822
    %v5827 = vpack.c.bf16 %v5823, %v5823
    %v5828 = vld [vmem:[%s5] sm:$0xf]
    %v5829 = vld [vmem:[%s5 + $0x4] sm:$0xf]
    %v5830 = vld [vmem:[%s5 + $0x8] sm:$0xf]
    %v5831 = vld [vmem:[%s5 + $0xc] sm:$0xf]
    %v5832 = vld [vmem:[%s5 + $0x10] sm:$0xf]
    %v5833 = vld [vmem:[%s5 + $0x14] sm:$0xf]
    %v5834 = vld [vmem:[%s5 + $0x18] sm:$0xf]
    %v5835 = vld [vmem:[%s5 + $0x1c] sm:$0xf]
    %v5836 = vld [vmem:[%s5 + $0x20] sm:$0xf]
    %v5837 = vld [vmem:[%s5 + $0x24] sm:$0xf]
    %v5838 = vld [vmem:[%s5 + $0x28] sm:$0xf]
    %v5839 = vld [vmem:[%s5 + $0x2c] sm:$0xf]
    %v5840 = vld [vmem:[%s5 + $0x30] sm:$0xf]
    %v5841 = vld [vmem:[%s5 + $0x34] sm:$0xf]
    %v5842 = vld [vmem:[%s5 + $0x38] sm:$0xf]
    %v5843 = vld [vmem:[%s5 + $0x3c] sm:$0xf]
    %v5844 = vld [vmem:[%s5 + $0x40] sm:$0xf]
    %v5845 = vld [vmem:[%s5 + $0x44] sm:$0xf]
    %v5846 = vld [vmem:[%s5 + $0x48] sm:$0xf]
    %v5847 = vld [vmem:[%s5 + $0x4c] sm:$0xf]
    %v5848 = vld [vmem:[%s5 + $0x50] sm:$0xf]
    %v5849 = vld [vmem:[%s5 + $0x54] sm:$0xf]
    %v5850 = vld [vmem:[%s5 + $0x58] sm:$0xf]
    %v5851 = vld [vmem:[%s5 + $0x5c] sm:$0xf]
    %v5852 = vld [vmem:[%s5 + $0x60] sm:$0xf]
    %v5853 = vld [vmem:[%s5 + $0x64] sm:$0xf]
    %v5854 = vld [vmem:[%s5 + $0x68] sm:$0xf]
    %v5855 = vld [vmem:[%s5 + $0x6c] sm:$0xf]
    %v5856 = vld [vmem:[%s5 + $0x70] sm:$0xf]
    %v5857 = vld [vmem:[%s5 + $0x74] sm:$0xf]
    %v5858 = vld [vmem:[%s5 + $0x78] sm:$0xf]
    %v5859 = vld [vmem:[%s5 + $0x7c] sm:$0xf]
    %v5860 = vld [vmem:[%s5 + $0x80] sm:$0xf]
    %v5861 = vld [vmem:[%s5 + $0x84] sm:$0xf]
    %v5862 = vld [vmem:[%s5 + $0x88] sm:$0xf]
    %v5863 = vld [vmem:[%s5 + $0x8c] sm:$0xf]
    %v5864 = vld [vmem:[%s5 + $0x90] sm:$0xf]
    %v5865 = vld [vmem:[%s5 + $0x94] sm:$0xf]
    %v5866 = vld [vmem:[%s5 + $0x98] sm:$0xf]
    %v5867 = vld [vmem:[%s5 + $0x9c] sm:$0xf]
    %v5868 = vld [vmem:[%s5 + $0xa0] sm:$0xf]
    %v5869 = vld [vmem:[%s5 + $0xa4] sm:$0xf]
    %v5870 = vld [vmem:[%s5 + $0xa8] sm:$0xf]
    %v5871 = vld [vmem:[%s5 + $0xac] sm:$0xf]
    %v5872 = vld [vmem:[%s5 + $0xb0] sm:$0xf]
    %v5873 = vld [vmem:[%s5 + $0xb4] sm:$0xf]
    %v5874 = vld [vmem:[%s5 + $0xb8] sm:$0xf]
    %v5875 = vld [vmem:[%s5 + $0xbc] sm:$0xf]
    %v5876 = vld [vmem:[%s5 + $0xc0] sm:$0xf]
    %v5877 = vld [vmem:[%s5 + $0xc4] sm:$0xf]
    %v5878 = vld [vmem:[%s5 + $0xc8] sm:$0xf]
    %v5879 = vld [vmem:[%s5 + $0xcc] sm:$0xf]
    %v5880 = vld [vmem:[%s5 + $0xd0] sm:$0xf]
    %v5881 = vld [vmem:[%s5 + $0xd4] sm:$0xf]
    %v5882 = vld [vmem:[%s5 + $0xd8] sm:$0xf]
    %v5883 = vld [vmem:[%s5 + $0xdc] sm:$0xf]
    %v5884 = vld [vmem:[%s5 + $0xe0] sm:$0xf]
    %v5885 = vld [vmem:[%s5 + $0xe4] sm:$0xf]
    %v5886 = vld [vmem:[%s5 + $0xe8] sm:$0xf]
    %v5887 = vld [vmem:[%s5 + $0xec] sm:$0xf]
    %v5888 = vld [vmem:[%s5 + $0xf0] sm:$0xf]
    %v5889 = vld [vmem:[%s5 + $0xf4] sm:$0xf]
    %v5890 = vld [vmem:[%s5 + $0xf8] sm:$0xf]
    %v5891 = vld [vmem:[%s5 + $0xfc] sm:$0xf]
    %v5956 = vunpack.c.l.b16 %v5828
    %v5957 = vunpack.c.l.b16 %v5829
    %v5958 = vunpack.c.l.b16 %v5830
    %v5959 = vunpack.c.l.b16 %v5831
    %v5960 = vunpack.c.l.b16 %v5832
    %v5961 = vunpack.c.l.b16 %v5833
    %v5962 = vunpack.c.l.b16 %v5834
    %v5963 = vunpack.c.l.b16 %v5835
    %v5964 = vunpack.c.l.b16 %v5836
    %v5965 = vunpack.c.l.b16 %v5837
    %v5966 = vunpack.c.l.b16 %v5838
    %v5967 = vunpack.c.l.b16 %v5839
    %v5968 = vunpack.c.l.b16 %v5840
    %v5969 = vunpack.c.l.b16 %v5841
    %v5970 = vunpack.c.l.b16 %v5842
    %v5971 = vunpack.c.l.b16 %v5843
    %v5972 = vunpack.c.l.b16 %v5844
    %v5973 = vunpack.c.l.b16 %v5845
    %v5974 = vunpack.c.l.b16 %v5846
    %v5975 = vunpack.c.l.b16 %v5847
    %v5976 = vunpack.c.l.b16 %v5848
    %v5977 = vunpack.c.l.b16 %v5849
    %v5978 = vunpack.c.l.b16 %v5850
    %v5979 = vunpack.c.l.b16 %v5851
    %v5980 = vunpack.c.l.b16 %v5852
    %v5981 = vunpack.c.l.b16 %v5853
    %v5982 = vunpack.c.l.b16 %v5854
    %v5983 = vunpack.c.l.b16 %v5855
    %v5984 = vunpack.c.l.b16 %v5856
    %v5985 = vunpack.c.l.b16 %v5857
    %v5986 = vunpack.c.l.b16 %v5858
    %v5987 = vunpack.c.l.b16 %v5859
    %v5988 = vunpack.c.l.b16 %v5860
    %v5989 = vunpack.c.l.b16 %v5861
    %v5990 = vunpack.c.l.b16 %v5862
    %v5991 = vunpack.c.l.b16 %v5863
    %v5992 = vunpack.c.l.b16 %v5864
    %v5993 = vunpack.c.l.b16 %v5865
    %v5994 = vunpack.c.l.b16 %v5866
    %v5995 = vunpack.c.l.b16 %v5867
    %v5996 = vunpack.c.l.b16 %v5868
    %v5997 = vunpack.c.l.b16 %v5869
    %v5998 = vunpack.c.l.b16 %v5870
    %v5999 = vunpack.c.l.b16 %v5871
    %v6000 = vunpack.c.l.b16 %v5872
    %v6001 = vunpack.c.l.b16 %v5873
    %v6002 = vunpack.c.l.b16 %v5874
    %v6003 = vunpack.c.l.b16 %v5875
    %v6004 = vunpack.c.l.b16 %v5876
    %v6005 = vunpack.c.l.b16 %v5877
    %v6006 = vunpack.c.l.b16 %v5878
    %v6007 = vunpack.c.l.b16 %v5879
    %v6008 = vunpack.c.l.b16 %v5880
    %v6009 = vunpack.c.l.b16 %v5881
    %v6010 = vunpack.c.l.b16 %v5882
    %v6011 = vunpack.c.l.b16 %v5883
    %v6012 = vunpack.c.l.b16 %v5884
    %v6013 = vunpack.c.l.b16 %v5885
    %v6014 = vunpack.c.l.b16 %v5886
    %v6015 = vunpack.c.l.b16 %v5887
    %v6016 = vunpack.c.l.b16 %v5888
    %v6017 = vunpack.c.l.b16 %v5889
    %v6018 = vunpack.c.l.b16 %v5890
    %v6019 = vunpack.c.l.b16 %v5891
    %v6020 = vpack.c.b16 %v5957, %v5956
    %v6021 = vpack.c.b16 %v5959, %v5958
    %v6022 = vpack.c.b16 %v5961, %v5960
    %v6023 = vpack.c.b16 %v5963, %v5962
    %v6024 = vpack.c.b16 %v5965, %v5964
    %v6025 = vpack.c.b16 %v5967, %v5966
    %v6026 = vpack.c.b16 %v5969, %v5968
    %v6027 = vpack.c.b16 %v5971, %v5970
    %v6028 = vpack.c.b16 %v5973, %v5972
    %v6029 = vpack.c.b16 %v5975, %v5974
    %v6030 = vpack.c.b16 %v5977, %v5976
    %v6031 = vpack.c.b16 %v5979, %v5978
    %v6032 = vpack.c.b16 %v5981, %v5980
    %v6033 = vpack.c.b16 %v5983, %v5982
    %v6034 = vpack.c.b16 %v5985, %v5984
    %v6035 = vpack.c.b16 %v5987, %v5986
    %v6036 = vpack.c.b16 %v5989, %v5988
    %v6037 = vpack.c.b16 %v5991, %v5990
    %v6038 = vpack.c.b16 %v5993, %v5992
    %v6039 = vpack.c.b16 %v5995, %v5994
    %v6040 = vpack.c.b16 %v5997, %v5996
    %v6041 = vpack.c.b16 %v5999, %v5998
    %v6042 = vpack.c.b16 %v6001, %v6000
    %v6043 = vpack.c.b16 %v6003, %v6002
    %v6044 = vpack.c.b16 %v6005, %v6004
    %v6045 = vpack.c.b16 %v6007, %v6006
    %v6046 = vpack.c.b16 %v6009, %v6008
    %v6047 = vpack.c.b16 %v6011, %v6010
    %v6048 = vpack.c.b16 %v6013, %v6012
    %v6049 = vpack.c.b16 %v6015, %v6014
    %v6050 = vpack.c.b16 %v6017, %v6016
    %v6051 = vpack.c.b16 %v6019, %v6018
    %6084 = vmatprep.subr.bf16.mxu0 0
    %6085 = vmatpush1.bf16.msra.mxu0 %v6020
    %6086 = vmatprep.subr.bf16.mxu0 0
    %6087 = vmatpush1.bf16.msra.mxu0 %v6021
    %6088 = vmatprep.subr.bf16.mxu0 0
    %6089 = vmatpush1.bf16.msra.mxu0 %v6022
    %6090 = vmatprep.subr.bf16.mxu0 0
    %6091 = vmatpush1.bf16.msra.mxu0 %v6023
    %6092 = vmatprep.subr.bf16.mxu0 0
    %6093 = vmatpush1.bf16.msra.mxu0 %v6024
    %6094 = vmatprep.subr.bf16.mxu0 0
    %6095 = vmatpush1.bf16.msra.mxu0 %v6025
    %6096 = vmatprep.subr.bf16.mxu0 0
    %6097 = vmatpush1.bf16.msra.mxu0 %v6026
    %6098 = vmatprep.subr.bf16.mxu0 0
    %6099 = vmatpush1.bf16.msra.mxu0 %v6027
    %6100 = vmatprep.subr.bf16.mxu0 0
    %6101 = vmatpush1.bf16.msra.mxu0 %v6028
    %6102 = vmatprep.subr.bf16.mxu0 0
    %6103 = vmatpush1.bf16.msra.mxu0 %v6029
    %6104 = vmatprep.subr.bf16.mxu0 0
    %6105 = vmatpush1.bf16.msra.mxu0 %v6030
    %6106 = vmatprep.subr.bf16.mxu0 0
    %6107 = vmatpush1.bf16.msra.mxu0 %v6031
    %6108 = vmatprep.subr.bf16.mxu0 0
    %6109 = vmatpush1.bf16.msra.mxu0 %v6032
    %6110 = vmatprep.subr.bf16.mxu0 0
    %6111 = vmatpush1.bf16.msra.mxu0 %v6033
    %6112 = vmatprep.subr.bf16.mxu0 0
    %6113 = vmatpush1.bf16.msra.mxu0 %v6034
    %6114 = vmatprep.subr.bf16.mxu0 0
    %6115 = vmatpush1.bf16.msra.mxu0 %v6035
    %6116 = vmatprep.mubr.bf16.mxu0 %v5825
    %6117 = vmatmul.mubr.bf16.gmra.mrb[0].mxu0 %v5824
    %v6118 = vpop.f32.mrb[0].mxu0
    %v6119 = vadd.f32 0.0, %v6118
    %v6120 = vpop.f32.mrb[0].mxu0
    %v6121 = vpop.f32.mrb[0].mxu0
    %v6122 = vpop.f32.mrb[0].mxu0
    %6123 = vdwg.mxu0
    %6124 = vmatprep.subr.bf16.mxu0 0
    %6125 = vmatpush1.bf16.msra.mxu0 %v6036
    %6126 = vmatprep.subr.bf16.mxu0 0
    %6127 = vmatpush1.bf16.msra.mxu0 %v6037
    %6128 = vmatprep.subr.bf16.mxu0 0
    %6129 = vmatpush1.bf16.msra.mxu0 %v6038
    %6130 = vmatprep.subr.bf16.mxu0 0
    %6131 = vmatpush1.bf16.msra.mxu0 %v6039
    %6132 = vmatprep.subr.bf16.mxu0 0
    %6133 = vmatpush1.bf16.msra.mxu0 %v6040
    %6134 = vmatprep.subr.bf16.mxu0 0
    %6135 = vmatpush1.bf16.msra.mxu0 %v6041
    %6136 = vmatprep.subr.bf16.mxu0 0
    %6137 = vmatpush1.bf16.msra.mxu0 %v6042
    %6138 = vmatprep.subr.bf16.mxu0 0
    %6139 = vmatpush1.bf16.msra.mxu0 %v6043
    %6140 = vmatprep.subr.bf16.mxu0 0
    %6141 = vmatpush1.bf16.msra.mxu0 %v6044
    %6142 = vmatprep.subr.bf16.mxu0 0
    %6143 = vmatpush1.bf16.msra.mxu0 %v6045
    %6144 = vmatprep.subr.bf16.mxu0 0
    %6145 = vmatpush1.bf16.msra.mxu0 %v6046
    %6146 = vmatprep.subr.bf16.mxu0 0
    %6147 = vmatpush1.bf16.msra.mxu0 %v6047
    %6148 = vmatprep.subr.bf16.mxu0 0
    %6149 = vmatpush1.bf16.msra.mxu0 %v6048
    %6150 = vmatprep.subr.bf16.mxu0 0
    %6151 = vmatpush1.bf16.msra.mxu0 %v6049
    %6152 = vmatprep.subr.bf16.mxu0 0
    %6153 = vmatpush1.bf16.msra.mxu0 %v6050
    %6154 = vmatprep.subr.bf16.mxu0 0
    %6155 = vmatpush1.bf16.msra.mxu0 %v6051
    %6156 = vmatprep.mubr.bf16.mxu0 %v5827
    %6157 = vmatmul.mubr.bf16.gmra.mrb[0].mxu0 %v5826
    %v6158 = vpop.f32.mrb[0].mxu0
    %v6159 = vadd.f32 %v6119, %v6158
    %v6160 = vpop.f32.mrb[0].mxu0
    %v6161 = vpop.f32.mrb[0].mxu0
    %v6162 = vpop.f32.mrb[0].mxu0
    %6163 = vdwg.mxu0
    %vm6164 = vcmask 58368
    %v6165 = vsel %vm6164, %v6159, 0.0
    %6166 = vadd.xlane.f32.xlu0 %v6165
    %v6167 = vpop.xlane.xlu0 %6166
    %v6168 = vrot.slane %v6167, 4
    %v6169 = vadd.f32 %v6167, %v6168
    %v6170 = vrot.slane %v6169, 2
    %v6171 = vadd.f32 %v6169, %v6170
    %v6172 = vrot.slane %v6171, 1
    %v6173 = vadd.f32 %v6171, %v6172
    %s6174 = vtos %v6173
    %v6175 = vstv %s6174
    %v6176 = vmul.f32 %v6159, %v6159
    %v6177 = vsel %vm6164, %v6176, 0.0
    %6178 = vadd.xlane.f32.xlu0 %v6177
    %v6179 = vpop.xlane.xlu0 %6178
    %v6180 = vrot.slane %v6179, 4
    %v6181 = vadd.f32 %v6179, %v6180
    %v6182 = vrot.slane %v6181, 2
    %v6183 = vadd.f32 %v6181, %v6182
    %v6184 = vrot.slane %v6183, 1
    %v6185 = vadd.f32 %v6183, %v6184
    %s6186 = vtos %v6185
    %v6187 = vstv %s6186
    %v6188 = vrcp.pop 16.0
    %v6189 = vmul.f32 %v6175, %v6188
    %v6190 = vmul.f32 %v6187, %v6188
    %v6191 = vmul.f32 %v6189, %v6189
    %v6192 = vsub.f32 %v6190, %v6191
    %v6193 = vmax.f32 %v6192, 0.0
    %s6194 = sld [smem:[#allocation8]]
    %v6195 = vadd.f32 %v6193, 1e-05
    %v6196 = vrsqrt.pop %v6195
    %v6197 = vstv %s6194
    %v6198 = vmul.f32 %v6197, %v6196
    %s6199 = sld [smem:[#allocation8 + $0x1]]
    %v6200 = vmul.f32 %v6189, %v6198
    %v6201 = vstv %s6199
    %v6202 = vsub.f32 %v6201, %v6200
    %v6203 = vmul.f32 %v6159, %v6198
    %v6204 = vadd.f32 %v6203, %v6202
    %v6205 = vmax.f32 %v6204, 0.0
    %v6206 = vld [vmem:[%s9] sm:$0x1]
    %v6208 = vlaneseq
    %v6209 = vshrl.u32 %v6208, 7
    %v6210 = vsub.s32 0, %v6209
    %v6211 = vrot.slane %v6206, %v6210
    %v6213 = vmul.f32 %v6205, %v6211
    %v6214 = vsel %vm6164, %v6213, 0.0
    %6215 = vadd.xlane.f32.xlu0 %v6214
    %v6216 = vpop.xlane.xlu0 %6215
    %s6217 = sld [smem:[#allocation8 + $0x2]]
    %v6218 = vstv %s6217
    %v6219 = vadd.f32 %v6216, %v6218
    %v6220 = vsub.f32 0.0, %v6219
    %v6221 = vmul.f32 %v6220, 1.442695
    %v6222 = vpow.pop %v6221
    %v6223 = vadd.f32 %v6222, 1.0
    %v6224 = vrcp.pop %v6223
    %v6225 = vmul.f32 1.0, %v6224
    %vm6226 = vcmask 1024
    %6227 = vst.msk [vmem:[%s11] sm:$0x3] %vm6226, %v6225
    // Predicated region
    $region62: #{res_cnn_forward.1} parent=1 // pred_check
      _
    $region63: #{res_cnn_forward.1} parent=1 // pred_check_branch
      %6229 = sbr.rel (0) target = $region65
    $region64: #{res_cnn_forward.1} parent=1 // pred_region
      _
    $region65: #{res_cnn_forward.1} parent=1 // pred_fallthru
      _
    // Predicated region
    $region66: #{res_cnn_forward.1} parent=1 // pred_check
      _
    $region67: #{res_cnn_forward.1} parent=1 // pred_check_branch
      %6231 = sbr.rel (0) target = $region69
    $region68: #{res_cnn_forward.1} parent=1 // pred_region
      _
    $region69: #{res_cnn_forward.1} parent=1 // pred_fallthru
      _
    %6232 = vsyncpa [#allocation3], 1
    %6233 = vsyncpa [#allocation6], 1
    %6234 = vsyncpa [#allocation4], 1

</llo_original>
